<compile_context>
chip_gen: v5e
topology: v5e:2x2
jax: 0.10.0
libtpu: 0.0.40
codegen_flags: <defaults>
</compile_context>

<pallas_src>
import functools

import jax
import jax.numpy as jnp
from jax.experimental import pallas as pl
from jax.experimental.pallas import tpu as pltpu

_LANE = 128


def _round_up(v, m):
    return (v + m - 1) // m * m


def _fused_conv_bn_relu_kernel(x_hbm, w_ref, shift_ref, o_ref,
                               xbuf, dma_sem, acc_ref, *,
                               th, wo, stride, dilation):
    """One (batch image, Cout tile, output-row tile) block.

    x_hbm:     (N, Hp, Wp, Cin_pad)       full padded image, raw HBM ref (manual DMA)
    w_ref:     (KH, KW, Cin_pad, TCout)   BN-scale-folded weights (Cout tile)
    shift_ref: (1, TCout)                 folded bias/shift (fp32)
    o_ref:     (1, TH, Wo, TCout)
    xbuf:      (2, slab_h, Wp, Cin_pad)   double-buffered input row slab (VMEM scratch)
    dma_sem:   DMA semaphores (2,)
    acc_ref:   (TH*Wo, TCout) fp32        accumulator scratch
    """
    sh, sw = stride
    dh, dw = dilation
    n_kh, n_kw, cin_p, tcout = w_ref.shape          # static
    slab_h = xbuf.shape[1]
    row_step = th * sh

    n = pl.program_id(0)
    r = pl.program_id(2)                            # output-row tile (innermost axis)
    n_rb = pl.num_programs(2)

    def slab_copy(r_idx, slot):
        # Row slab [r_idx*row_step, r_idx*row_step + slab_h) of image n -> VMEM slot.
        return pltpu.make_async_copy(
            x_hbm.at[n, pl.ds(r_idx * row_step, slab_h)],
            xbuf.at[slot],
            dma_sem.at[slot])

    slot = r % 2

    # Prime the pipeline once per (image, Cout-tile): self-contained per (n, c), so it is
    # correct under any megacore sharding of the parallel axes.
    @pl.when(r == 0)
    def _():
        slab_copy(r, slot).start()

    # Wait for this row tile's slab, then prefetch the next one into the other slot.
    slab_copy(r, slot).wait()

    @pl.when(r + 1 < n_rb)
    def _():
        slab_copy(r + 1, 1 - slot).start()

    # ---- per-tap MXU matmuls accumulated into the fp32 VMEM scratch -----------------
    for kh in range(n_kh):
        for kw in range(n_kw):
            row_span = (th - 1) * sh + 1
            col_span = (wo - 1) * sw + 1
            # Stride-1 (common case): the exact window is read straight off the ref,
            # folding the slice into the vector loads (no slab copies per tap).
            tap = xbuf[slot, pl.ds(kh * dh, row_span), pl.ds(kw * dw, col_span), :]
            if sh > 1 or sw > 1:
                # TODO(synk): strided convs still go through a value-level strided slice.
                tap = jax.lax.slice(tap, (0, 0, 0), tap.shape, strides=(sh, sw, 1))
            contrib = jnp.dot(tap.reshape(th * wo, cin_p), w_ref[kh, kw],
                              preferred_element_type=jnp.float32)
            if kh == 0 and kw == 0:
                acc_ref[...] = contrib
            else:
                acc_ref[...] += contrib

    # Epilogue: BN shift (scale already folded into weights) + ReLU, fp32.
    y = jnp.maximum(acc_ref[...] + shift_ref[...], 0.0)
    o_ref[...] = y.reshape(1, th, wo, tcout).astype(o_ref.dtype)


def fused_conv2d_batchnorm_relu(x_nchw, conv_weight, conv_bias,
                                bn_weight, bn_bias, bn_running_mean,
                                bn_running_var, *, eps=1e-5,
                                stride=(1, 1), padding=(1, 1), dilation=(1, 1),
                                use_bf16_matmul=False):
    """F.conv2d (groups=1) -> BatchNorm2d(eval, running stats) -> ReLU. NCHW in/out."""
    # TODO(synk): groups != 1 and padding_mode != 'zeros' are not implemented
    #             (module defaults are groups=1 and zero padding).
    sh, sw = stride
    ph, pw = padding
    dh, dw = dilation

    out_dtype = jnp.promote_types(x_nchw.dtype, conv_weight.dtype)
    # Optional bf16 MXU path (fp32 accumulation kept); off by default for fp32 parity.
    mxu_dtype = jnp.bfloat16 if use_bf16_matmul else out_dtype

    x = jnp.transpose(x_nchw, (0, 2, 3, 1))                              # NHWC
    w = jnp.transpose(conv_weight, (2, 3, 1, 0)).astype(jnp.float32)     # HWIO

    N, H, W, Cin = x.shape
    KH, KW, _, Cout = w.shape

    Ho = (H + 2 * ph - dh * (KH - 1) - 1) // sh + 1
    Wo = (W + 2 * pw - dw * (KW - 1) - 1) // sw + 1

    # ---- Fold BatchNorm (running stats) + conv bias into weights / shift -------------
    scale = (bn_weight.astype(jnp.float32) /
             jnp.sqrt(bn_running_var.astype(jnp.float32) + eps))
    cbias = (conv_bias if conv_bias is not None
             else jnp.zeros((Cout,), jnp.float32)).astype(jnp.float32)
    shift = (cbias - bn_running_mean.astype(jnp.float32)) * scale \
        + bn_bias.astype(jnp.float32)
    w_folded = (w * scale[None, None, None, :]).astype(mxu_dtype)

    # ---- Lane-dense channel padding ---------------------------------------------------
    # TODO(synk): for tiny-Cin first layers, space-to-depth would avoid most of the
    #             128-lane padding waste; not implemented here.
    cin_p = _round_up(Cin, _LANE)
    tcout = 2 * _LANE if _round_up(Cout, _LANE) >= 2 * _LANE else _LANE  # 256-wide N on v6e/v7x
    cout_p = _round_up(Cout, tcout)
    n_c = cout_p // tcout

    # ---- Output-row tiling: ~256 MXU rows per tile, sublane-aligned when possible ----
    th_max = max(1, min(Ho, max(1, 256 // max(1, Wo))))
    th = th_max
    for t in range(th_max, 0, -1):
        if (t * Wo) % 8 == 0:
            th = t
            break
    n_rb = pl.cdiv(Ho, th)
    ho_pad = n_rb * th

    # ---- Input row-slab (halo) geometry -----------------------------------------------
    slab_h = (th - 1) * sh + (KH - 1) * dh + 1
    row_step = th * sh
    hp_needed = (n_rb - 1) * row_step + slab_h
    extra_h = max(0, hp_needed - (H + 2 * ph))

    # One fused transpose+pad pass in HBM (spatial zero pad + lane pad); the NCHW->NHWC
    # relayout is required anyway, so padding rides along in the same XLA fusion.
    x_pad = jnp.pad(x.astype(mxu_dtype),
                    ((0, 0), (ph, ph + extra_h), (pw, pw), (0, cin_p - Cin)))
    Hp, Wp = x_pad.shape[1], x_pad.shape[2]

    w_pad = jnp.pad(w_folded, ((0, 0), (0, 0), (0, cin_p - Cin), (0, cout_p - Cout)))
    shift_pad = jnp.pad(shift, (0, cout_p - Cout)).reshape(1, cout_p).astype(jnp.float32)

    # Grid: (batch, Cout tiles, output-row tiles); row tiles innermost so the weight tile
    # stays resident while small input slabs stream through the manual double buffer.
    grid = (N, n_c, n_rb)

    kernel = functools.partial(_fused_conv_bn_relu_kernel, th=th, wo=Wo,
                               stride=(sh, sw), dilation=(dh, dw))

    # ---- Right-size the VMEM request from the real tile footprint ---------------------
    isz = jnp.dtype(mxu_dtype).itemsize
    osz = jnp.dtype(out_dtype).itemsize
    vmem_needed = (2 * slab_h * Wp * cin_p * isz            # x slab double buffer
                   + 2 * KH * KW * cin_p * tcout * isz      # weight tile (pipelined)
                   + 2 * th * Wo * tcout * osz              # out tile (pipelined)
                   + th * Wo * tcout * 4                    # fp32 accumulator
                   + 2 * cout_p * 4)                        # shift
    vmem_limit = int(vmem_needed * 1.5) + (8 << 20)
    try:
        phys = getattr(pltpu.get_tpu_info(), "vmem_capacity_bytes", None)
        if phys:
            vmem_limit = min(vmem_limit, int(phys * 0.9))    # generation-aware (v7x: 64 MiB)
    except Exception:
        vmem_limit = min(vmem_limit, 96 << 20)
    vmem_limit = max(vmem_limit, 16 << 20)

    cost = pl.CostEstimate(
        flops=2 * N * Ho * Wo * KH * KW * Cin * Cout,
        transcendentals=0,
        bytes_accessed=int(N * n_c * n_rb * slab_h * Wp * cin_p * isz
                           + N * n_c * KH * KW * cin_p * tcout * isz
                           + N * ho_pad * Wo * cout_p * osz))

    # Batch-shard on megacore when N >= 2 (each image's slabs stay on one core).
    dim_sem = (("parallel", "arbitrary", "arbitrary") if N > 1
               else ("parallel", "parallel", "arbitrary"))

    out = pl.pallas_call(
        kernel,
        out_shape=jax.ShapeDtypeStruct((N, ho_pad, Wo, cout_p), out_dtype),
        grid=grid,
        in_specs=[
            pl.BlockSpec(memory_space=pl.ANY),                                   # x (HBM)
            pl.BlockSpec((KH, KW, cin_p, tcout), lambda n, c, r: (0, 0, 0, c)),  # weights
            pl.BlockSpec((1, tcout), lambda n, c, r: (0, c)),                    # shift
        ],
        out_specs=pl.BlockSpec((1, th, Wo, tcout), lambda n, c, r: (n, r, 0, c)),
        scratch_shapes=[
            pltpu.VMEM((2, slab_h, Wp, cin_p), mxu_dtype),   # input slab double buffer
            pltpu.SemaphoreType.DMA((2,)),
            pltpu.VMEM((th * Wo, tcout), jnp.float32),       # fp32 accumulator
        ],
        compiler_params=pltpu.CompilerParams(
            dimension_semantics=dim_sem,
            vmem_limit_bytes=vmem_limit),
        cost_estimate=cost,
    )(x_pad, w_pad, shift_pad)

    out = out[:, :Ho, :, :Cout]
    return jnp.transpose(out, (0, 3, 1, 2))   # back to NCHW


def _reference(x_nchw, conv_weight, conv_bias, bn_weight, bn_bias,
               bn_mean, bn_var, eps, stride, padding, dilation):
    conv = jax.lax.conv_general_dilated(
        x_nchw, conv_weight, window_strides=stride,
        padding=[(padding[0], padding[0]), (padding[1], padding[1])],
        rhs_dilation=dilation,
        dimension_numbers=('NCHW', 'OIHW', 'NCHW'))
    if conv_bias is not None:
        conv = conv + conv_bias.reshape(1, -1, 1, 1)
    inv = 1.0 / jnp.sqrt(bn_var + eps)
    y = (conv - bn_mean.reshape(1, -1, 1, 1)) * (bn_weight * inv).reshape(1, -1, 1, 1) \
        + bn_bias.reshape(1, -1, 1, 1)
    return jnp.maximum(y, 0.0)


def _run_case(key, N, Cin, H, W, Cout, KH, KW, stride, padding, dilation,
              use_bias=True, eps=1e-5):
    k1, k2, k3, k4, k5, k6, k7 = jax.random.split(key, 7)
    x = jax.random.normal(k1, (N, Cin, H, W), jnp.float32)
    conv_weight = jax.random.normal(k2, (Cout, Cin, KH, KW), jnp.float32) * 0.1
    conv_bias = (jax.random.normal(k3, (Cout,), jnp.float32) * 0.1) if use_bias else None
    bn_weight = jax.random.normal(k4, (Cout,), jnp.float32) * 0.1 + 1.0
    bn_bias = jax.random.normal(k5, (Cout,), jnp.float32) * 0.1
    bn_mean = jax.random.normal(k6, (Cout,), jnp.float32) * 0.1
    bn_var = jax.nn.softplus(jax.random.normal(k7, (Cout,), jnp.float32)) + 0.5

    out = fused_conv2d_batchnorm_relu(
        x, conv_weight, conv_bias, bn_weight, bn_bias, bn_mean, bn_var,
        eps=eps, stride=stride, padding=padding, dilation=dilation)
    out = jax.block_until_ready(out)

    ref = _reference(x, conv_weight, conv_bias, bn_weight, bn_bias,
                     bn_mean, bn_var, eps, stride, padding, dilation)
    assert out.shape == ref.shape, (out.shape, ref.shape)
    err = float(jnp.max(jnp.abs(out - ref)))
    assert jnp.allclose(out, ref, atol=1e-4, rtol=1e-4), err
    return err


if __name__ == "__main__":
    key = jax.random.PRNGKey(0)
    ka, kb = jax.random.split(key, 2)

    # Case A: Conv2d(4 -> 8, 3x3, stride=1, pad=1) + BN(8) + ReLU, batch=2, 16x16.
    _run_case(ka, N=2, Cin=4, H=16, W=16, Cout=8, KH=3, KW=3,
              stride=(1, 1), padding=(1, 1), dilation=(1, 1), use_bias=True)

    # Case B: exercises multiple row tiles (halo prefetch), Cin=3, no conv bias.
    _run_case(kb, N=1, Cin=3, H=20, W=20, Cout=8, KH=3, KW=3,
              stride=(1, 1), padding=(1, 1), dilation=(1, 1), use_bias=False)

    print("KERNEL_OK")
</pallas_src>

<mosaic_0001>
module attributes {stable_mosaic.version = 11 : i64} {
  func.func @_fused_conv_bn_relu_kernel(%arg0: i32, %arg1: i32, %arg2: i32, %arg3: memref<2x18x18x128xf32, #tpu.memory_space<any>>, %arg4: memref<3x3x128x128xf32, #tpu.memory_space<vmem>>, %arg5: memref<1x128xf32, #tpu.memory_space<vmem>>, %arg6: memref<1x16x16x128xf32, #tpu.memory_space<vmem>>, %arg7: memref<2x18x18x128xf32, #tpu.memory_space<vmem>>, %arg8: memref<2x!tpu.dma_semaphore, #tpu.memory_space<semaphore_mem>>, %arg9: memref<256x128xf32, #tpu.memory_space<vmem>>) attributes {dimension_semantics = [#tpu.dimension_semantics<parallel>, #tpu.dimension_semantics<arbitrary>, #tpu.dimension_semantics<arbitrary>], iteration_bounds = array<i64: 2, 1, 1>, scalar_prefetch = 0 : i64, scratch_operands = 3 : i64, tpu.core_type = #tpu.core_type<tc>, window_params = [{}, {transform_indices = @transform_1, window_bounds = array<i64: 3, 3, 128, 128>}, {transform_indices = @transform_2, window_bounds = array<i64: 1, 128>}, {transform_indices = @transform_3, window_bounds = array<i64: 1, 16, 16, 128>}]} {
    %c2_i32 = arith.constant 2 : i32
    %c0_i32 = arith.constant 0 : i32
    %0 = arith.cmpi eq, %c2_i32, %c0_i32 : i32
    %c1_i32 = arith.constant 1 : i32
    %1 = arith.select %0, %c1_i32, %c2_i32 : i32
    %2 = arith.remsi %arg2, %1 : i32
    %c0_i32_0 = arith.constant 0 : i32
    %3 = arith.cmpi ne, %2, %c0_i32_0 : i32
    %c0_i32_1 = arith.constant 0 : i32
    %4 = arith.cmpi slt, %2, %c0_i32_1 : i32
    %c0_i32_2 = arith.constant 0 : i32
    %5 = arith.cmpi slt, %1, %c0_i32_2 : i32
    %6 = arith.xori %4, %5 : i1
    %7 = arith.andi %6, %3 : i1
    %8 = arith.addi %2, %1 : i32
    %9 = arith.select %7, %8, %2 : i32
    %c0_i32_3 = arith.constant 0 : i32
    %10 = arith.cmpi eq, %arg2, %c0_i32_3 : i32
    %11 = arith.extui %10 : i1 to i32
    %c0_i32_4 = arith.constant 0 : i32
    %12 = arith.cmpi ne, %11, %c0_i32_4 : i32
    scf.if %12 {
      %c16_i32_124 = arith.constant 16 : i32
      %120 = arith.muli %arg2, %c16_i32_124 : i32
      %c0_i32_125 = arith.constant 0 : i32
      %c0_i32_126 = arith.constant 0 : i32
      %121 = tpu.memref_slice %arg3[%arg0, %120, %c0_i32_125, %c0_i32_126] : memref<2x18x18x128xf32, #tpu.memory_space<any>> -> memref<1x18x18x128xf32, #tpu.memory_space<any>>
      %122 = tpu.memref_squeeze %121 : memref<1x18x18x128xf32, #tpu.memory_space<any>> -> memref<18x18x128xf32, #tpu.memory_space<any>>
      %c0_i32_127 = arith.constant 0 : i32
      %c0_i32_128 = arith.constant 0 : i32
      %c0_i32_129 = arith.constant 0 : i32
      %123 = tpu.memref_slice %arg7[%9, %c0_i32_127, %c0_i32_128, %c0_i32_129] : memref<2x18x18x128xf32, #tpu.memory_space<vmem>> -> memref<1x18x18x128xf32, #tpu.memory_space<vmem>>
      %124 = tpu.memref_squeeze %123 : memref<1x18x18x128xf32, #tpu.memory_space<vmem>> -> memref<18x18x128xf32, #tpu.memory_space<vmem>>
      %125 = tpu.memref_slice %arg8[%9] : memref<2x!tpu.dma_semaphore, #tpu.memory_space<semaphore_mem>> -> memref<1x!tpu.dma_semaphore, #tpu.memory_space<semaphore_mem>>
      %126 = tpu.memref_squeeze %125 : memref<1x!tpu.dma_semaphore, #tpu.memory_space<semaphore_mem>> -> memref<!tpu.dma_semaphore, #tpu.memory_space<semaphore_mem>>
      tpu.enqueue_dma source(%122 : memref<18x18x128xf32, #tpu.memory_space<any>>) target(%124 : memref<18x18x128xf32, #tpu.memory_space<vmem>>) target_semaphore(%126 : memref<!tpu.dma_semaphore, #tpu.memory_space<semaphore_mem>>)
    } else {
    }
    %c16_i32 = arith.constant 16 : i32
    %13 = arith.muli %arg2, %c16_i32 : i32
    %c0_i32_5 = arith.constant 0 : i32
    %c0_i32_6 = arith.constant 0 : i32
    %14 = tpu.memref_slice %arg3[%arg0, %13, %c0_i32_5, %c0_i32_6] : memref<2x18x18x128xf32, #tpu.memory_space<any>> -> memref<1x18x18x128xf32, #tpu.memory_space<any>>
    %15 = tpu.memref_squeeze %14 : memref<1x18x18x128xf32, #tpu.memory_space<any>> -> memref<18x18x128xf32, #tpu.memory_space<any>>
    %c0_i32_7 = arith.constant 0 : i32
    %c0_i32_8 = arith.constant 0 : i32
    %c0_i32_9 = arith.constant 0 : i32
    %16 = tpu.memref_slice %arg7[%9, %c0_i32_7, %c0_i32_8, %c0_i32_9] : memref<2x18x18x128xf32, #tpu.memory_space<vmem>> -> memref<1x18x18x128xf32, #tpu.memory_space<vmem>>
    %17 = tpu.memref_squeeze %16 : memref<1x18x18x128xf32, #tpu.memory_space<vmem>> -> memref<18x18x128xf32, #tpu.memory_space<vmem>>
    %18 = tpu.memref_slice %arg8[%9] : memref<2x!tpu.dma_semaphore, #tpu.memory_space<semaphore_mem>> -> memref<1x!tpu.dma_semaphore, #tpu.memory_space<semaphore_mem>>
    %19 = tpu.memref_squeeze %18 : memref<1x!tpu.dma_semaphore, #tpu.memory_space<semaphore_mem>> -> memref<!tpu.dma_semaphore, #tpu.memory_space<semaphore_mem>>
    tpu.wait_dma2 semaphore(%19 : memref<!tpu.dma_semaphore, #tpu.memory_space<semaphore_mem>>) src(%15 : memref<18x18x128xf32, #tpu.memory_space<any>>) dst(%17 : memref<18x18x128xf32, #tpu.memory_space<vmem>>)
    %c1_i32_10 = arith.constant 1 : i32
    %20 = arith.addi %arg2, %c1_i32_10 : i32
    %c1_i32_11 = arith.constant 1 : i32
    %21 = arith.cmpi slt, %20, %c1_i32_11 : i32
    %22 = arith.extui %21 : i1 to i32
    %c0_i32_12 = arith.constant 0 : i32
    %23 = arith.cmpi ne, %22, %c0_i32_12 : i32
    scf.if %23 {
      %c1_i32_124 = arith.constant 1 : i32
      %120 = arith.addi %arg2, %c1_i32_124 : i32
      %c1_i32_125 = arith.constant 1 : i32
      %121 = arith.subi %c1_i32_125, %9 : i32
      %c16_i32_126 = arith.constant 16 : i32
      %122 = arith.muli %120, %c16_i32_126 : i32
      %c0_i32_127 = arith.constant 0 : i32
      %c0_i32_128 = arith.constant 0 : i32
      %123 = tpu.memref_slice %arg3[%arg0, %122, %c0_i32_127, %c0_i32_128] : memref<2x18x18x128xf32, #tpu.memory_space<any>> -> memref<1x18x18x128xf32, #tpu.memory_space<any>>
      %124 = tpu.memref_squeeze %123 : memref<1x18x18x128xf32, #tpu.memory_space<any>> -> memref<18x18x128xf32, #tpu.memory_space<any>>
      %c0_i32_129 = arith.constant 0 : i32
      %c0_i32_130 = arith.constant 0 : i32
      %c0_i32_131 = arith.constant 0 : i32
      %125 = tpu.memref_slice %arg7[%121, %c0_i32_129, %c0_i32_130, %c0_i32_131] : memref<2x18x18x128xf32, #tpu.memory_space<vmem>> -> memref<1x18x18x128xf32, #tpu.memory_space<vmem>>
      %126 = tpu.memref_squeeze %125 : memref<1x18x18x128xf32, #tpu.memory_space<vmem>> -> memref<18x18x128xf32, #tpu.memory_space<vmem>>
      %127 = tpu.memref_slice %arg8[%121] : memref<2x!tpu.dma_semaphore, #tpu.memory_space<semaphore_mem>> -> memref<1x!tpu.dma_semaphore, #tpu.memory_space<semaphore_mem>>
      %128 = tpu.memref_squeeze %127 : memref<1x!tpu.dma_semaphore, #tpu.memory_space<semaphore_mem>> -> memref<!tpu.dma_semaphore, #tpu.memory_space<semaphore_mem>>
      tpu.enqueue_dma source(%124 : memref<18x18x128xf32, #tpu.memory_space<any>>) target(%126 : memref<18x18x128xf32, #tpu.memory_space<vmem>>) target_semaphore(%128 : memref<!tpu.dma_semaphore, #tpu.memory_space<semaphore_mem>>)
    } else {
    }
    %24 = arith.index_cast %9 : i32 to index
    %c0 = arith.constant 0 : index
    %c0_13 = arith.constant 0 : index
    %c0_14 = arith.constant 0 : index
    %25 = vector.load %arg7[%24, %c0, %c0_13, %c0_14] : memref<2x18x18x128xf32, #tpu.memory_space<vmem>>, vector<1x16x16x128xf32>
    %26 = vector.shape_cast %25 : vector<1x16x16x128xf32> to vector<16x16x128xf32>
    %27 = vector.shape_cast %26 : vector<16x16x128xf32> to vector<256x128xf32>
    %c0_15 = arith.constant 0 : index
    %c0_16 = arith.constant 0 : index
    %c0_17 = arith.constant 0 : index
    %c0_18 = arith.constant 0 : index
    %28 = vector.load %arg4[%c0_15, %c0_16, %c0_17, %c0_18] : memref<3x3x128x128xf32, #tpu.memory_space<vmem>>, vector<1x1x128x128xf32>
    %29 = vector.shape_cast %28 : vector<1x1x128x128xf32> to vector<128x128xf32>
    %cst = arith.constant dense<0.000000e+00> : vector<256x128xf32>
    %30 = tpu.matmul %27, %29, %cst {dimension_numbers = #tpu.dot_dimension_numbers<[1], [0], [0], [1], [0, 0, 1, 1], [], []>} : vector<256x128xf32>, vector<128x128xf32>, vector<256x128xf32> -> vector<256x128xf32>
    %c0_19 = arith.constant 0 : index
    %c0_20 = arith.constant 0 : index
    %31 = vector.load %arg9[%c0_19, %c0_20] : memref<256x128xf32, #tpu.memory_space<vmem>>, vector<256x128xf32>
    tpu.vector_store %arg9[%c0_19, %c0_20], %30 {strides = array<i32>} : memref<256x128xf32, #tpu.memory_space<vmem>>, vector<256x128xf32>,
    %32 = arith.index_cast %9 : i32 to index
    %c0_21 = arith.constant 0 : index
    %c1 = arith.constant 1 : index
    %c0_22 = arith.constant 0 : index
    %33 = vector.load %arg7[%32, %c0_21, %c1, %c0_22] : memref<2x18x18x128xf32, #tpu.memory_space<vmem>>, vector<1x16x16x128xf32>
    %34 = vector.shape_cast %33 : vector<1x16x16x128xf32> to vector<16x16x128xf32>
    %35 = vector.shape_cast %34 : vector<16x16x128xf32> to vector<256x128xf32>
    %c0_23 = arith.constant 0 : index
    %c1_24 = arith.constant 1 : index
    %c0_25 = arith.constant 0 : index
    %c0_26 = arith.constant 0 : index
    %36 = vector.load %arg4[%c0_23, %c1_24, %c0_25, %c0_26] : memref<3x3x128x128xf32, #tpu.memory_space<vmem>>, vector<1x1x128x128xf32>
    %37 = vector.shape_cast %36 : vector<1x1x128x128xf32> to vector<128x128xf32>
    %cst_27 = arith.constant dense<0.000000e+00> : vector<256x128xf32>
    %38 = tpu.matmul %35, %37, %cst_27 {dimension_numbers = #tpu.dot_dimension_numbers<[1], [0], [0], [1], [0, 0, 1, 1], [], []>} : vector<256x128xf32>, vector<128x128xf32>, vector<256x128xf32> -> vector<256x128xf32>
    %c0_28 = arith.constant 0 : index
    %c0_29 = arith.constant 0 : index
    %39 = vector.load %arg9[%c0_28, %c0_29] : memref<256x128xf32, #tpu.memory_space<vmem>>, vector<256x128xf32>
    %40 = arith.addf %39, %38 : vector<256x128xf32>
    %c0_30 = arith.constant 0 : index
    %c0_31 = arith.constant 0 : index
    %41 = vector.load %arg9[%c0_30, %c0_31] : memref<256x128xf32, #tpu.memory_space<vmem>>, vector<256x128xf32>
    tpu.vector_store %arg9[%c0_30, %c0_31], %40 {strides = array<i32>} : memref<256x128xf32, #tpu.memory_space<vmem>>, vector<256x128xf32>,
    %42 = arith.index_cast %9 : i32 to index
    %c0_32 = arith.constant 0 : index
    %c2 = arith.constant 2 : index
    %c0_33 = arith.constant 0 : index
    %43 = vector.load %arg7[%42, %c0_32, %c2, %c0_33] : memref<2x18x18x128xf32, #tpu.memory_space<vmem>>, vector<1x16x16x128xf32>
    %44 = vector.shape_cast %43 : vector<1x16x16x128xf32> to vector<16x16x128xf32>
    %45 = vector.shape_cast %44 : vector<16x16x128xf32> to vector<256x128xf32>
    %c0_34 = arith.constant 0 : index
    %c2_35 = arith.constant 2 : index
    %c0_36 = arith.constant 0 : index
    %c0_37 = arith.constant 0 : index
    %46 = vector.load %arg4[%c0_34, %c2_35, %c0_36, %c0_37] : memref<3x3x128x128xf32, #tpu.memory_space<vmem>>, vector<1x1x128x128xf32>
    %47 = vector.shape_cast %46 : vector<1x1x128x128xf32> to vector<128x128xf32>
    %cst_38 = arith.constant dense<0.000000e+00> : vector<256x128xf32>
    %48 = tpu.matmul %45, %47, %cst_38 {dimension_numbers = #tpu.dot_dimension_numbers<[1], [0], [0], [1], [0, 0, 1, 1], [], []>} : vector<256x128xf32>, vector<128x128xf32>, vector<256x128xf32> -> vector<256x128xf32>
    %c0_39 = arith.constant 0 : index
    %c0_40 = arith.constant 0 : index
    %49 = vector.load %arg9[%c0_39, %c0_40] : memref<256x128xf32, #tpu.memory_space<vmem>>, vector<256x128xf32>
    %50 = arith.addf %49, %48 : vector<256x128xf32>
    %c0_41 = arith.constant 0 : index
    %c0_42 = arith.constant 0 : index
    %51 = vector.load %arg9[%c0_41, %c0_42] : memref<256x128xf32, #tpu.memory_space<vmem>>, vector<256x128xf32>
    tpu.vector_store %arg9[%c0_41, %c0_42], %50 {strides = array<i32>} : memref<256x128xf32, #tpu.memory_space<vmem>>, vector<256x128xf32>,
    %52 = arith.index_cast %9 : i32 to index
    %c1_43 = arith.constant 1 : index
    %c0_44 = arith.constant 0 : index
    %c0_45 = arith.constant 0 : index
    %53 = vector.load %arg7[%52, %c1_43, %c0_44, %c0_45] : memref<2x18x18x128xf32, #tpu.memory_space<vmem>>, vector<1x16x16x128xf32>
    %54 = vector.shape_cast %53 : vector<1x16x16x128xf32> to vector<16x16x128xf32>
    %55 = vector.shape_cast %54 : vector<16x16x128xf32> to vector<256x128xf32>
    %c1_46 = arith.constant 1 : index
    %c0_47 = arith.constant 0 : index
    %c0_48 = arith.constant 0 : index
    %c0_49 = arith.constant 0 : index
    %56 = vector.load %arg4[%c1_46, %c0_47, %c0_48, %c0_49] : memref<3x3x128x128xf32, #tpu.memory_space<vmem>>, vector<1x1x128x128xf32>
    %57 = vector.shape_cast %56 : vector<1x1x128x128xf32> to vector<128x128xf32>
    %cst_50 = arith.constant dense<0.000000e+00> : vector<256x128xf32>
    %58 = tpu.matmul %55, %57, %cst_50 {dimension_numbers = #tpu.dot_dimension_numbers<[1], [0], [0], [1], [0, 0, 1, 1], [], []>} : vector<256x128xf32>, vector<128x128xf32>, vector<256x128xf32> -> vector<256x128xf32>
    %c0_51 = arith.constant 0 : index
    %c0_52 = arith.constant 0 : index
    %59 = vector.load %arg9[%c0_51, %c0_52] : memref<256x128xf32, #tpu.memory_space<vmem>>, vector<256x128xf32>
    %60 = arith.addf %59, %58 : vector<256x128xf32>
    %c0_53 = arith.constant 0 : index
    %c0_54 = arith.constant 0 : index
    %61 = vector.load %arg9[%c0_53, %c0_54] : memref<256x128xf32, #tpu.memory_space<vmem>>, vector<256x128xf32>
    tpu.vector_store %arg9[%c0_53, %c0_54], %60 {strides = array<i32>} : memref<256x128xf32, #tpu.memory_space<vmem>>, vector<256x128xf32>,
    %62 = arith.index_cast %9 : i32 to index
    %c1_55 = arith.constant 1 : index
    %c1_56 = arith.constant 1 : index
    %c0_57 = arith.constant 0 : index
    %63 = vector.load %arg7[%62, %c1_55, %c1_56, %c0_57] : memref<2x18x18x128xf32, #tpu.memory_space<vmem>>, vector<1x16x16x128xf32>
    %64 = vector.shape_cast %63 : vector<1x16x16x128xf32> to vector<16x16x128xf32>
    %65 = vector.shape_cast %64 : vector<16x16x128xf32> to vector<256x128xf32>
    %c1_58 = arith.constant 1 : index
    %c1_59 = arith.constant 1 : index
    %c0_60 = arith.constant 0 : index
    %c0_61 = arith.constant 0 : index
    %66 = vector.load %arg4[%c1_58, %c1_59, %c0_60, %c0_61] : memref<3x3x128x128xf32, #tpu.memory_space<vmem>>, vector<1x1x128x128xf32>
    %67 = vector.shape_cast %66 : vector<1x1x128x128xf32> to vector<128x128xf32>
    %cst_62 = arith.constant dense<0.000000e+00> : vector<256x128xf32>
    %68 = tpu.matmul %65, %67, %cst_62 {dimension_numbers = #tpu.dot_dimension_numbers<[1], [0], [0], [1], [0, 0, 1, 1], [], []>} : vector<256x128xf32>, vector<128x128xf32>, vector<256x128xf32> -> vector<256x128xf32>
    %c0_63 = arith.constant 0 : index
    %c0_64 = arith.constant 0 : index
    %69 = vector.load %arg9[%c0_63, %c0_64] : memref<256x128xf32, #tpu.memory_space<vmem>>, vector<256x128xf32>
    %70 = arith.addf %69, %68 : vector<256x128xf32>
    %c0_65 = arith.constant 0 : index
    %c0_66 = arith.constant 0 : index
    %71 = vector.load %arg9[%c0_65, %c0_66] : memref<256x128xf32, #tpu.memory_space<vmem>>, vector<256x128xf32>
    tpu.vector_store %arg9[%c0_65, %c0_66], %70 {strides = array<i32>} : memref<256x128xf32, #tpu.memory_space<vmem>>, vector<256x128xf32>,
    %72 = arith.index_cast %9 : i32 to index
    %c1_67 = arith.constant 1 : index
    %c2_68 = arith.constant 2 : index
    %c0_69 = arith.constant 0 : index
    %73 = vector.load %arg7[%72, %c1_67, %c2_68, %c0_69] : memref<2x18x18x128xf32, #tpu.memory_space<vmem>>, vector<1x16x16x128xf32>
    %74 = vector.shape_cast %73 : vector<1x16x16x128xf32> to vector<16x16x128xf32>
    %75 = vector.shape_cast %74 : vector<16x16x128xf32> to vector<256x128xf32>
    %c1_70 = arith.constant 1 : index
    %c2_71 = arith.constant 2 : index
    %c0_72 = arith.constant 0 : index
    %c0_73 = arith.constant 0 : index
    %76 = vector.load %arg4[%c1_70, %c2_71, %c0_72, %c0_73] : memref<3x3x128x128xf32, #tpu.memory_space<vmem>>, vector<1x1x128x128xf32>
    %77 = vector.shape_cast %76 : vector<1x1x128x128xf32> to vector<128x128xf32>
    %cst_74 = arith.constant dense<0.000000e+00> : vector<256x128xf32>
    %78 = tpu.matmul %75, %77, %cst_74 {dimension_numbers = #tpu.dot_dimension_numbers<[1], [0], [0], [1], [0, 0, 1, 1], [], []>} : vector<256x128xf32>, vector<128x128xf32>, vector<256x128xf32> -> vector<256x128xf32>
    %c0_75 = arith.constant 0 : index
    %c0_76 = arith.constant 0 : index
    %79 = vector.load %arg9[%c0_75, %c0_76] : memref<256x128xf32, #tpu.memory_space<vmem>>, vector<256x128xf32>
    %80 = arith.addf %79, %78 : vector<256x128xf32>
    %c0_77 = arith.constant 0 : index
    %c0_78 = arith.constant 0 : index
    %81 = vector.load %arg9[%c0_77, %c0_78] : memref<256x128xf32, #tpu.memory_space<vmem>>, vector<256x128xf32>
    tpu.vector_store %arg9[%c0_77, %c0_78], %80 {strides = array<i32>} : memref<256x128xf32, #tpu.memory_space<vmem>>, vector<256x128xf32>,
    %82 = arith.index_cast %9 : i32 to index
    %c2_79 = arith.constant 2 : index
    %c0_80 = arith.constant 0 : index
    %c0_81 = arith.constant 0 : index
    %83 = vector.load %arg7[%82, %c2_79, %c0_80, %c0_81] : memref<2x18x18x128xf32, #tpu.memory_space<vmem>>, vector<1x16x16x128xf32>
    %84 = vector.shape_cast %83 : vector<1x16x16x128xf32> to vector<16x16x128xf32>
    %85 = vector.shape_cast %84 : vector<16x16x128xf32> to vector<256x128xf32>
    %c2_82 = arith.constant 2 : index
    %c0_83 = arith.constant 0 : index
    %c0_84 = arith.constant 0 : index
    %c0_85 = arith.constant 0 : index
    %86 = vector.load %arg4[%c2_82, %c0_83, %c0_84, %c0_85] : memref<3x3x128x128xf32, #tpu.memory_space<vmem>>, vector<1x1x128x128xf32>
    %87 = vector.shape_cast %86 : vector<1x1x128x128xf32> to vector<128x128xf32>
    %cst_86 = arith.constant dense<0.000000e+00> : vector<256x128xf32>
    %88 = tpu.matmul %85, %87, %cst_86 {dimension_numbers = #tpu.dot_dimension_numbers<[1], [0], [0], [1], [0, 0, 1, 1], [], []>} : vector<256x128xf32>, vector<128x128xf32>, vector<256x128xf32> -> vector<256x128xf32>
    %c0_87 = arith.constant 0 : index
    %c0_88 = arith.constant 0 : index
    %89 = vector.load %arg9[%c0_87, %c0_88] : memref<256x128xf32, #tpu.memory_space<vmem>>, vector<256x128xf32>
    %90 = arith.addf %89, %88 : vector<256x128xf32>
    %c0_89 = arith.constant 0 : index
    %c0_90 = arith.constant 0 : index
    %91 = vector.load %arg9[%c0_89, %c0_90] : memref<256x128xf32, #tpu.memory_space<vmem>>, vector<256x128xf32>
    tpu.vector_store %arg9[%c0_89, %c0_90], %90 {strides = array<i32>} : memref<256x128xf32, #tpu.memory_space<vmem>>, vector<256x128xf32>,
    %92 = arith.index_cast %9 : i32 to index
    %c2_91 = arith.constant 2 : index
    %c1_92 = arith.constant 1 : index
    %c0_93 = arith.constant 0 : index
    %93 = vector.load %arg7[%92, %c2_91, %c1_92, %c0_93] : memref<2x18x18x128xf32, #tpu.memory_space<vmem>>, vector<1x16x16x128xf32>
    %94 = vector.shape_cast %93 : vector<1x16x16x128xf32> to vector<16x16x128xf32>
    %95 = vector.shape_cast %94 : vector<16x16x128xf32> to vector<256x128xf32>
    %c2_94 = arith.constant 2 : index
    %c1_95 = arith.constant 1 : index
    %c0_96 = arith.constant 0 : index
    %c0_97 = arith.constant 0 : index
    %96 = vector.load %arg4[%c2_94, %c1_95, %c0_96, %c0_97] : memref<3x3x128x128xf32, #tpu.memory_space<vmem>>, vector<1x1x128x128xf32>
    %97 = vector.shape_cast %96 : vector<1x1x128x128xf32> to vector<128x128xf32>
    %cst_98 = arith.constant dense<0.000000e+00> : vector<256x128xf32>
    %98 = tpu.matmul %95, %97, %cst_98 {dimension_numbers = #tpu.dot_dimension_numbers<[1], [0], [0], [1], [0, 0, 1, 1], [], []>} : vector<256x128xf32>, vector<128x128xf32>, vector<256x128xf32> -> vector<256x128xf32>
    %c0_99 = arith.constant 0 : index
    %c0_100 = arith.constant 0 : index
    %99 = vector.load %arg9[%c0_99, %c0_100] : memref<256x128xf32, #tpu.memory_space<vmem>>, vector<256x128xf32>
    %100 = arith.addf %99, %98 : vector<256x128xf32>
    %c0_101 = arith.constant 0 : index
    %c0_102 = arith.constant 0 : index
    %101 = vector.load %arg9[%c0_101, %c0_102] : memref<256x128xf32, #tpu.memory_space<vmem>>, vector<256x128xf32>
    tpu.vector_store %arg9[%c0_101, %c0_102], %100 {strides = array<i32>} : memref<256x128xf32, #tpu.memory_space<vmem>>, vector<256x128xf32>,
    %102 = arith.index_cast %9 : i32 to index
    %c2_103 = arith.constant 2 : index
    %c2_104 = arith.constant 2 : index
    %c0_105 = arith.constant 0 : index
    %103 = vector.load %arg7[%102, %c2_103, %c2_104, %c0_105] : memref<2x18x18x128xf32, #tpu.memory_space<vmem>>, vector<1x16x16x128xf32>
    %104 = vector.shape_cast %103 : vector<1x16x16x128xf32> to vector<16x16x128xf32>
    %105 = vector.shape_cast %104 : vector<16x16x128xf32> to vector<256x128xf32>
    %c2_106 = arith.constant 2 : index
    %c2_107 = arith.constant 2 : index
    %c0_108 = arith.constant 0 : index
    %c0_109 = arith.constant 0 : index
    %106 = vector.load %arg4[%c2_106, %c2_107, %c0_108, %c0_109] : memref<3x3x128x128xf32, #tpu.memory_space<vmem>>, vector<1x1x128x128xf32>
    %107 = vector.shape_cast %106 : vector<1x1x128x128xf32> to vector<128x128xf32>
    %cst_110 = arith.constant dense<0.000000e+00> : vector<256x128xf32>
    %108 = tpu.matmul %105, %107, %cst_110 {dimension_numbers = #tpu.dot_dimension_numbers<[1], [0], [0], [1], [0, 0, 1, 1], [], []>} : vector<256x128xf32>, vector<128x128xf32>, vector<256x128xf32> -> vector<256x128xf32>
    %c0_111 = arith.constant 0 : index
    %c0_112 = arith.constant 0 : index
    %109 = vector.load %arg9[%c0_111, %c0_112] : memref<256x128xf32, #tpu.memory_space<vmem>>, vector<256x128xf32>
    %110 = arith.addf %109, %108 : vector<256x128xf32>
    %c0_113 = arith.constant 0 : index
    %c0_114 = arith.constant 0 : index
    %111 = vector.load %arg9[%c0_113, %c0_114] : memref<256x128xf32, #tpu.memory_space<vmem>>, vector<256x128xf32>
    tpu.vector_store %arg9[%c0_113, %c0_114], %110 {strides = array<i32>} : memref<256x128xf32, #tpu.memory_space<vmem>>, vector<256x128xf32>,
    %c0_115 = arith.constant 0 : index
    %c0_116 = arith.constant 0 : index
    %112 = vector.load %arg9[%c0_115, %c0_116] : memref<256x128xf32, #tpu.memory_space<vmem>>, vector<256x128xf32>
    %c0_117 = arith.constant 0 : index
    %c0_118 = arith.constant 0 : index
    %113 = vector.load %arg5[%c0_117, %c0_118] : memref<1x128xf32, #tpu.memory_space<vmem>>, vector<1x128xf32>
    %114 = vector.broadcast %113 : vector<1x128xf32> to vector<256x128xf32>
    %115 = arith.addf %112, %114 : vector<256x128xf32>
    %cst_119 = arith.constant 0.000000e+00 : f32
    %116 = vector.broadcast %cst_119 : f32 to vector<256x128xf32>
    %117 = arith.maximumf %115, %116 : vector<256x128xf32>
    %118 = vector.shape_cast %117 : vector<256x128xf32> to vector<1x16x16x128xf32>
    %c0_120 = arith.constant 0 : index
    %c0_121 = arith.constant 0 : index
    %c0_122 = arith.constant 0 : index
    %c0_123 = arith.constant 0 : index
    %119 = vector.load %arg6[%c0_120, %c0_121, %c0_122, %c0_123] : memref<1x16x16x128xf32, #tpu.memory_space<vmem>>, vector<1x16x16x128xf32>
    tpu.vector_store %arg6[%c0_120, %c0_121, %c0_122, %c0_123], %118 {strides = array<i32>} : memref<1x16x16x128xf32, #tpu.memory_space<vmem>>, vector<1x16x16x128xf32>,
    return
  }
  func.func @transform_1(%arg0: i32, %arg1: i32, %arg2: i32) -> (i32, i32, i32, i32) {
    %c0_i32 = arith.constant 0 : i32
    %c0_i32_0 = arith.constant 0 : i32
    %c0_i32_1 = arith.constant 0 : i32
    %c0_i32_2 = arith.constant 0 : i32
    return %c0_i32, %c0_i32_0, %c0_i32_1, %arg1 : i32, i32, i32, i32
  }
  func.func @transform_2(%arg0: i32, %arg1: i32, %arg2: i32) -> (i32, i32) {
    %c0_i32 = arith.constant 0 : i32
    %c0_i32_0 = arith.constant 0 : i32
    return %c0_i32, %arg1 : i32, i32
  }
  func.func @transform_3(%arg0: i32, %arg1: i32, %arg2: i32) -> (i32, i32, i32, i32) {
    %c0_i32 = arith.constant 0 : i32
    %c0_i32_0 = arith.constant 0 : i32
    return %arg0, %arg2, %c0_i32, %arg1 : i32, i32, i32, i32
  }
}

</mosaic_0001>

<llo_original>
// kernel: tpu_custom_call.1
$region0: #{tpu_custom_call.1}
  #allocation0 [shape = 'u32[]', space=smem, size = 0x4, offset = 0x4, fixed_abs, tag = 'smem constant byte address 0x4 - core index']
  #allocation1 [shape = 'u32[72,128]{1,0:T(1,128)}', space=vmem, size = 0x9000, scoped, tag = 'internal scratch']
  #allocation2 [shape = 'f32[2,18,18,128]{3,2,1,0:T(8,128)}', space=vmem, size = 0x6c000, scoped, tag = 'scratch operand']
  #allocation3 [shape = 's32[2]{0}', space=sflag, size = 0x8, scoped, tag = 'scratch operand']
  #allocation4 [shape = 'f32[256,128]{1,0:T(8,128)}', space=vmem, size = 0x20000, scoped, tag = 'scratch operand']
  #allocation7 [shape = 's32[]', space=sflag, size = 0x4, offset = 0, fixed_abs, tag = 'sflag constant byte address 0x0 - dummy sync flag']
  #allocation8 [shape = 's32[]', space=sflag, size = 0x4, offset = 0, fixed_abs, tag = 'sflag constant byte address 0x0 - dummy sync flag']
  %s0 = inlined_call_operand.vmem [shape: f32[2,18,18,128], index: 0, kind: input, shape index: {}]
  %s1 = inlined_call_operand.vmem [shape: f32[3,3,128,128], index: 1, kind: input, shape index: {}]
  %s2 = inlined_call_operand.vmem [shape: f32[1,128], index: 2, kind: input, shape index: {}]
  %s3 = inlined_call_operand.hbm [shape: f32[2,16,16,128], index: 3, kind: output, shape index: {}]
  %s4 = sld [smem:[#allocation0]]
  $region93: #{tpu_custom_call.1} parent=0
    _
  %s6 = ssub.s32 1, %s4
  %s7 = scalar_select 0, %s6, %s4
  $region1: #{tpu_custom_call.1} parent=0
    #allocation5 [shape = 'u8[262144]{0}', space=vmem, size = 0x40000, scoped, tag = 'output window, operand 0']
    #allocation6 [shape = 's32[2]{0}', space=sflag, size = 0x8, scoped, tag = 'scoped memory for tpu_custom_call.1']
    %8 = vsyncpa [#allocation6], 0
    %s9 = scalar_lea.sflag [#allocation6], 1
    %10 = vsyncpa %s9, 0
    loop: start=0, step=1, limit=4
    $region2: #{tpu_custom_call.1} parent=1 // loop_pre_header
      _
    $region3: #{tpu_custom_call.1} parent=1 // loop_header
      %s12 = sphi 0, %s16
      %p13 = scmp.ge.s32.totalorder %s12, 4
      %s19 = sphi 0, %s38
      %s20 = sphi 0, %s34
      %s21 = sphi 0, %s30
      %s22 = sphi 0, %s19
      %s23 = sphi 0, %s20
      %s24 = sphi 0, %s21
      %s25 = sphi 0, %s22
      %s26 = sphi 0, %s23
      %s27 = sphi 0, %s24
      %s41 = sphi 0, %s43
      %s44 = sphi 0, %s41
      %s45 = sphi 0, %s44
      %s61 = sphi 0, %s45
      %s67 = sphi 0, %s69
      %s70 = sphi 0, %s67
      %s71 = sphi 0, %s70
      %s87 = sphi 0, %s71
      %s97 = sphi 0, %s99
      %s100 = sphi 0, %s97
      %s101 = sphi 0, %s100
      %s117 = sphi 0, %s101
    $region4: #{tpu_custom_call.1} parent=1 // loop_header_branch
      %15 = sbr.rel (%p13) target = $region8
    $region5: #{tpu_custom_call.1} parent=1 // loop_body
      %s17 = ssub.s32 %s12, 1
      %s18 = ssub.s32 %s12, 2
      %s28 = sadd.s32 1, %s21
      %p29 = scmp.ge.s32.totalorder %s28, 1
      %s30 = scalar_select %p29, 0, %s28
      %s31 = sadd.s32 1, %s20
      %s32 = scalar_select %p29, %s31, %s20
      %p33 = scmp.ge.s32.totalorder %s32, 1
      %s34 = scalar_select %p33, 0, %s32
      %s35 = sadd.s32 1, %s19
      %s36 = scalar_select %p33, %s35, %s19
      %p37 = scmp.ge.s32.totalorder %s36, 2
      %s38 = scalar_select %p37, 0, %s36
      %s39 = ssub.s32 %s20, %s34
      %p40 = scmp.eq.s32.totalorder %s39, 0
      %s42 = sadd.s32 %s41, 1
      %s43 = scalar_select %p40, %s41, %s42
      %p46 = pneg %p40
      %p47 = scmp.eq.s32.totalorder %s12, 1
      %p48 = por %p46, %p47
      %p49 = scmp.ne.s32.totalorder %s41, %s44
      %p50 = scmp.eq.s32.totalorder %s12, 0
      %p51 = por %p49, %p50
      %p52 = scmp.ne.s32.totalorder %s41, %s44
      %p53 = scmp.eq.s32.totalorder %s17, 1
      %p54 = por %p52, %p53
      %p55 = scmp.ne.s32.totalorder %s44, %s45
      %p56 = scmp.eq.s32.totalorder %s17, 0
      %p57 = por %p55, %p56
      %p58 = scmp.ne.s32.totalorder %s44, %s45
      %p59 = scmp.eq.s32.totalorder %s18, 1
      %p60 = por %p58, %p59
      %p62 = scmp.ne.s32.totalorder %s45, %s61
      %p63 = scmp.eq.s32.totalorder %s18, 0
      %p64 = por %p62, %p63
      %s65 = ssub.s32 %s20, %s34
      %p66 = scmp.eq.s32.totalorder %s65, 0
      %s68 = sadd.s32 %s67, 1
      %s69 = scalar_select %p66, %s67, %s68
      %p72 = pneg %p66
      %p73 = scmp.eq.s32.totalorder %s12, 1
      %p74 = por %p72, %p73
      %p75 = scmp.ne.s32.totalorder %s67, %s70
      %p76 = scmp.eq.s32.totalorder %s12, 0
      %p77 = por %p75, %p76
      %p78 = scmp.ne.s32.totalorder %s67, %s70
      %p79 = scmp.eq.s32.totalorder %s17, 1
      %p80 = por %p78, %p79
      %p81 = scmp.ne.s32.totalorder %s70, %s71
      %p82 = scmp.eq.s32.totalorder %s17, 0
      %p83 = por %p81, %p82
      %p84 = scmp.ne.s32.totalorder %s70, %s71
      %p85 = scmp.eq.s32.totalorder %s18, 1
      %p86 = por %p84, %p85
      %p88 = scmp.ne.s32.totalorder %s71, %s87
      %p89 = scmp.eq.s32.totalorder %s18, 0
      %p90 = por %p88, %p89
      %s91 = ssub.s32 %s19, %s38
      %s92 = ssub.s32 %s21, %s30
      %s93 = sor.u32 %s91, %s92
      %s94 = ssub.s32 %s20, %s34
      %s95 = sor.u32 %s93, %s94
      %p96 = scmp.eq.s32.totalorder %s95, 0
      %s98 = sadd.s32 %s97, 1
      %s99 = scalar_select %p96, %s97, %s98
      %p102 = pneg %p96
      %p103 = scmp.eq.s32.totalorder %s12, 1
      %p104 = por %p102, %p103
      %p105 = scmp.ne.s32.totalorder %s97, %s100
      %p106 = scmp.eq.s32.totalorder %s12, 0
      %p107 = por %p105, %p106
      %p108 = scmp.ne.s32.totalorder %s97, %s100
      %p109 = scmp.eq.s32.totalorder %s17, 1
      %p110 = por %p108, %p109
      %p111 = scmp.ne.s32.totalorder %s100, %s101
      %p112 = scmp.eq.s32.totalorder %s17, 0
      %p113 = por %p111, %p112
      %p114 = scmp.ne.s32.totalorder %s100, %s101
      %p115 = scmp.eq.s32.totalorder %s18, 1
      %p116 = por %p114, %p115
      %p118 = scmp.ne.s32.totalorder %s101, %s117
      %p119 = scmp.eq.s32.totalorder %s18, 0
      %p120 = por %p118, %p119
      %p121 = scmp.le.s32.totalorder 1, %s12
      %p122 = scmp.lt.s32.totalorder %s12, 3
      %p123 = pnand %p121, %p122
      %p124 = pneg %p123
      // Predicated region
      $region9: #{tpu_custom_call.1} parent=5 // pred_check
        _
      $region10: #{tpu_custom_call.1} parent=5 // pred_check_branch
        %126 = sbr.rel (%p123) target = $region12
      $region11: #{tpu_custom_call.1} parent=5 // pred_region
        %s127 = ssub.s32 %s12, 1
        // Predicated region
        $region13: #{tpu_custom_call.1} parent=11 // pred_check
          %p128 = pneg %p57
        $region14: #{tpu_custom_call.1} parent=11 // pred_check_branch
          %130 = sbr.rel (%p128) target = $region16
        $region15: #{tpu_custom_call.1} parent=11 // pred_region
          %p131 = scmp.lt.s32.totalorder %s23, 0
          %s132 = scalar_select %p131, %s23, 0
          %s133 = smul.addr %s132, 8
          %s134 = scalar_lea.vmem %s1, %s133
        $region16: #{tpu_custom_call.1} parent=11 // pred_fallthru
          _
        // Predicated region
        $region17: #{tpu_custom_call.1} parent=11 // pred_check
          %p135 = pneg %p83
        $region18: #{tpu_custom_call.1} parent=11 // pred_check_branch
          %137 = sbr.rel (%p135) target = $region20
        $region19: #{tpu_custom_call.1} parent=11 // pred_region
          %p138 = scmp.lt.s32.totalorder %s23, 0
          %s139 = scalar_select %p138, %s23, 0
          %s140 = scalar_lea.vmem %s2, %s139
        $region20: #{tpu_custom_call.1} parent=11 // pred_fallthru
          _
      $region12: #{tpu_custom_call.1} parent=5 // pred_fallthru
        _
      %p141 = scmp.lt.s32.totalorder %s12, 2
      // Predicated region
      $region21: #{tpu_custom_call.1} parent=5 // pred_check
        %p142 = pneg %p141
      $region22: #{tpu_custom_call.1} parent=5 // pred_check_branch
        %144 = sbr.rel (%p142) target = $region24
      $region23: #{tpu_custom_call.1} parent=5 // pred_region
        _
      $region24: #{tpu_custom_call.1} parent=5 // pred_fallthru
        _
      %p145 = scmp.le.s32.totalorder 1, %s12
      %p146 = scmp.lt.s32.totalorder %s12, 3
      %p147 = pnand %p145, %p146
      %p148 = pneg %p147
      // Predicated region
      $region25: #{tpu_custom_call.1} parent=5 // pred_check
        _
      $region26: #{tpu_custom_call.1} parent=5 // pred_check_branch
        %150 = sbr.rel (%p147) target = $region28
      $region27: #{tpu_custom_call.1} parent=5 // pred_region
        %s151 = ssub.s32 %s12, 1
        %p152 = scmp.lt.s32.totalorder %s23, 0
        %s153 = scalar_select %p152, %s23, 0
        %s154 = smul.addr %s153, 8
        %s155 = scalar_lea.vmem %s1, %s154
        %p156 = pneg %p57
        %p157 = pneg %p54
        %p158 = scmp.lt.s32.totalorder %s23, 0
        %s159 = scalar_select %p158, %s23, 0
        %s160 = scalar_lea.vmem %s2, %s159
        %p161 = pneg %p83
        %p162 = pneg %p80
        %p163 = pneg %p113
        %p164 = pneg %p110
        %s165 = sand.u32 %s100, 1
        %s166 = scalar_lea.sflag [#allocation6], %s165
        %s167 = sand.u32 %s100, 1
        %s168 = smul.addr %s167, 256
        %s169 = scalar_lea.vmem [#allocation5], %s168
        %p170 = scmp.lt.s32.totalorder %s23, 0
        %s171 = scalar_select %p170, %s23, 0
        %s172 = smul.addr %s171, 8
        %s173 = scalar_lea.vmem %s1, %s172
        %p174 = scmp.lt.s32.totalorder %s23, 0
        %s175 = scalar_select %p174, %s23, 0
        %s176 = scalar_lea.vmem %s2, %s175
        %s177 = smul.u32 16, %s24
        %p178 = scmp.lt.s32.totalorder %s24, 0
        %s179 = ssub.s32 0, %s24
        %s180 = scalar_select %p178, %s179, %s24
        %s181 = sand.u32 %s180, 1
        %s182 = ssub.s32 0, %s181
        %s183 = scalar_select %p178, %s182, %s181
        %p184 = scmp.ne.s32.totalorder %s183, 0
        %p185 = scmp.lt.s32.totalorder %s183, 0
        %p186 = pnand %p185, %p184
        %p187 = pneg %p186
        %s188 = sadd.s32 %s183, 2
        %s189 = scalar_select %p187, %s188, %s183
        %p190 = scmp.eq.s32.totalorder %s24, 0
        // Predicated region
        $region29: #{tpu_custom_call.1} parent=27 // pred_check
          %p191 = pneg %p190
        $region30: #{tpu_custom_call.1} parent=27 // pred_check_branch
          %193 = sbr.rel (%p191) target = $region32
        $region31: #{tpu_custom_call.1} parent=27 // pred_region
          %s194 = smul.u32 %s24, 16
          %s195 = smul.u32 %s194, 24
          %s196 = smul.u32 %s22, 432
          %s197 = sadd.s32 %s195, %s196
          %s198 = scalar_lea.vmem %s0, %s197
          %s199 = smul.u32 %s189, 432
          %s200 = scalar_lea.vmem [#allocation2], %s199
          %s201 = scalar_lea.sflag [#allocation3], %s189
          // Predicated region
          $region33: #{tpu_custom_call.1} parent=31 // pred_check
            _
          $region34: #{tpu_custom_call.1} parent=31 // pred_check_branch
            %203 = sbr.rel (0) target = $region36
          $region35: #{tpu_custom_call.1} parent=31 // pred_region
            %s204 = scalar_lea.vmem %s198, 16
            %s205 = scalar_lea.vmem %s200, 16 [#allocation2]
            loop: start=0, step=1, limit=1
            $region37: #{tpu_custom_call.1} parent=35 // loop_pre_header
              _
            $region38: #{tpu_custom_call.1} parent=35 // loop_header
              %s207 = sphi 0, %s211
              %p208 = scmp.ge.s32.totalorder %s207, 1
              %s212 = sphi %s198, %s198
              %s213 = sphi %s200, %s200
            $region39: #{tpu_custom_call.1} parent=35 // loop_header_branch
              %210 = sbr.rel (%p208) target = $region43
            $region40: #{tpu_custom_call.1} parent=35 // loop_body
              %v214 = vld [vmem:[%s212] sm:$0xff]
              %215 = vst [vmem:[%s213] sm:$0xff] %v214
              %v216 = vld [vmem:[%s212 + $0x8] sm:$0xff]
              %217 = vst [vmem:[%s213 + $0x8] sm:$0xff] %v216
              %v218 = vld [vmem:[%s212 + $0x18] sm:$0xff]
              %219 = vst [vmem:[%s213 + $0x18] sm:$0xff] %v218
              %v220 = vld [vmem:[%s212 + $0x20] sm:$0xff]
              %221 = vst [vmem:[%s213 + $0x20] sm:$0xff] %v220
              %v222 = vld [vmem:[%s212 + $0x30] sm:$0xff]
              %223 = vst [vmem:[%s213 + $0x30] sm:$0xff] %v222
              %v224 = vld [vmem:[%s212 + $0x38] sm:$0xff]
              %225 = vst [vmem:[%s213 + $0x38] sm:$0xff] %v224
              %v226 = vld [vmem:[%s212 + $0x48] sm:$0xff]
              %227 = vst [vmem:[%s213 + $0x48] sm:$0xff] %v226
              %v228 = vld [vmem:[%s212 + $0x50] sm:$0xff]
              %229 = vst [vmem:[%s213 + $0x50] sm:$0xff] %v228
              %v230 = vld [vmem:[%s212 + $0x60] sm:$0xff]
              %231 = vst [vmem:[%s213 + $0x60] sm:$0xff] %v230
              %v232 = vld [vmem:[%s212 + $0x68] sm:$0xff]
              %233 = vst [vmem:[%s213 + $0x68] sm:$0xff] %v232
              %v234 = vld [vmem:[%s212 + $0x78] sm:$0xff]
              %235 = vst [vmem:[%s213 + $0x78] sm:$0xff] %v234
              %v236 = vld [vmem:[%s212 + $0x80] sm:$0xff]
              %237 = vst [vmem:[%s213 + $0x80] sm:$0xff] %v236
              %v238 = vld [vmem:[%s212 + $0x90] sm:$0xff]
              %239 = vst [vmem:[%s213 + $0x90] sm:$0xff] %v238
              %v240 = vld [vmem:[%s212 + $0x98] sm:$0xff]
              %241 = vst [vmem:[%s213 + $0x98] sm:$0xff] %v240
              %v242 = vld [vmem:[%s212 + $0xa8] sm:$0xff]
              %243 = vst [vmem:[%s213 + $0xa8] sm:$0xff] %v242
              %v244 = vld [vmem:[%s212 + $0xb0] sm:$0xff]
              %245 = vst [vmem:[%s213 + $0xb0] sm:$0xff] %v244
              %v246 = vld [vmem:[%s212 + $0xc0] sm:$0xff]
              %247 = vst [vmem:[%s213 + $0xc0] sm:$0xff] %v246
              %v248 = vld [vmem:[%s212 + $0xc8] sm:$0xff]
              %249 = vst [vmem:[%s213 + $0xc8] sm:$0xff] %v248
              %v250 = vld [vmem:[%s212 + $0xd8] sm:$0xff]
              %251 = vst [vmem:[%s213 + $0xd8] sm:$0xff] %v250
              %v252 = vld [vmem:[%s212 + $0xe0] sm:$0xff]
              %253 = vst [vmem:[%s213 + $0xe0] sm:$0xff] %v252
              %v254 = vld [vmem:[%s212 + $0xf0] sm:$0xff]
              %255 = vst [vmem:[%s213 + $0xf0] sm:$0xff] %v254
              %v256 = vld [vmem:[%s212 + $0xf8] sm:$0xff]
              %257 = vst [vmem:[%s213 + $0xf8] sm:$0xff] %v256
              %v258 = vld [vmem:[%s212 + $0x108] sm:$0xff]
              %259 = vst [vmem:[%s213 + $0x108] sm:$0xff] %v258
              %v260 = vld [vmem:[%s212 + $0x110] sm:$0xff]
              %261 = vst [vmem:[%s213 + $0x110] sm:$0xff] %v260
              %v262 = vld [vmem:[%s212 + $0x120] sm:$0xff]
              %263 = vst [vmem:[%s213 + $0x120] sm:$0xff] %v262
              %v264 = vld [vmem:[%s212 + $0x128] sm:$0xff]
              %265 = vst [vmem:[%s213 + $0x128] sm:$0xff] %v264
              %v266 = vld [vmem:[%s212 + $0x138] sm:$0xff]
              %267 = vst [vmem:[%s213 + $0x138] sm:$0xff] %v266
              %v268 = vld [vmem:[%s212 + $0x140] sm:$0xff]
              %269 = vst [vmem:[%s213 + $0x140] sm:$0xff] %v268
              %v270 = vld [vmem:[%s212 + $0x150] sm:$0xff]
              %271 = vst [vmem:[%s213 + $0x150] sm:$0xff] %v270
              %v272 = vld [vmem:[%s212 + $0x158] sm:$0xff]
              %273 = vst [vmem:[%s213 + $0x158] sm:$0xff] %v272
              %v274 = vld [vmem:[%s212 + $0x168] sm:$0xff]
              %275 = vst [vmem:[%s213 + $0x168] sm:$0xff] %v274
              %v276 = vld [vmem:[%s212 + $0x170] sm:$0xff]
              %277 = vst [vmem:[%s213 + $0x170] sm:$0xff] %v276
              %v278 = vld [vmem:[%s212 + $0x180] sm:$0xff]
              %279 = vst [vmem:[%s213 + $0x180] sm:$0xff] %v278
              %v280 = vld [vmem:[%s212 + $0x188] sm:$0xff]
              %281 = vst [vmem:[%s213 + $0x188] sm:$0xff] %v280
              %v282 = vld [vmem:[%s212 + $0x198] sm:$0xff]
              %283 = vst [vmem:[%s213 + $0x198] sm:$0xff] %v282
              %v284 = vld [vmem:[%s212 + $0x1a0] sm:$0xff]
              %285 = vst [vmem:[%s213 + $0x1a0] sm:$0xff] %v284
            $region41: #{tpu_custom_call.1} parent=35 // loop_footer
              %s211 = sadd.s32 1, %s207
            $region42: #{tpu_custom_call.1} parent=35 // loop_footer_branch
              %206 = sbr.rel target = $region38
            $region43: #{tpu_custom_call.1} parent=35 // loop_exit
              _
            %s287 = ssub.s32 4, 1
            loop: start=0, step=1, limit=1
            $region44: #{tpu_custom_call.1} parent=35 // loop_pre_header
              _
            $region45: #{tpu_custom_call.1} parent=35 // loop_header
              %s289 = sphi 0, %s293
              %p290 = scmp.ge.s32.totalorder %s289, 1
              %s294 = sphi %s204, %s204
              %s295 = sphi %s205, %s205
            $region46: #{tpu_custom_call.1} parent=35 // loop_header_branch
              %292 = sbr.rel (%p290) target = $region50
            $region47: #{tpu_custom_call.1} parent=35 // loop_body
              %v296 = vld [vmem:[%s294] sm:%s287]
              %297 = vst [vmem:[%s295] sm:%s287] %v296
              %v298 = vld [vmem:[%s294 + $0x18] sm:%s287]
              %299 = vst [vmem:[%s295 + $0x18] sm:%s287] %v298
              %v300 = vld [vmem:[%s294 + $0x30] sm:%s287]
              %301 = vst [vmem:[%s295 + $0x30] sm:%s287] %v300
              %v302 = vld [vmem:[%s294 + $0x48] sm:%s287]
              %303 = vst [vmem:[%s295 + $0x48] sm:%s287] %v302
              %v304 = vld [vmem:[%s294 + $0x60] sm:%s287]
              %305 = vst [vmem:[%s295 + $0x60] sm:%s287] %v304
              %v306 = vld [vmem:[%s294 + $0x78] sm:%s287]
              %307 = vst [vmem:[%s295 + $0x78] sm:%s287] %v306
              %v308 = vld [vmem:[%s294 + $0x90] sm:%s287]
              %309 = vst [vmem:[%s295 + $0x90] sm:%s287] %v308
              %v310 = vld [vmem:[%s294 + $0xa8] sm:%s287]
              %311 = vst [vmem:[%s295 + $0xa8] sm:%s287] %v310
              %v312 = vld [vmem:[%s294 + $0xc0] sm:%s287]
              %313 = vst [vmem:[%s295 + $0xc0] sm:%s287] %v312
              %v314 = vld [vmem:[%s294 + $0xd8] sm:%s287]
              %315 = vst [vmem:[%s295 + $0xd8] sm:%s287] %v314
              %v316 = vld [vmem:[%s294 + $0xf0] sm:%s287]
              %317 = vst [vmem:[%s295 + $0xf0] sm:%s287] %v316
              %v318 = vld [vmem:[%s294 + $0x108] sm:%s287]
              %319 = vst [vmem:[%s295 + $0x108] sm:%s287] %v318
              %v320 = vld [vmem:[%s294 + $0x120] sm:%s287]
              %321 = vst [vmem:[%s295 + $0x120] sm:%s287] %v320
              %v322 = vld [vmem:[%s294 + $0x138] sm:%s287]
              %323 = vst [vmem:[%s295 + $0x138] sm:%s287] %v322
              %v324 = vld [vmem:[%s294 + $0x150] sm:%s287]
              %325 = vst [vmem:[%s295 + $0x150] sm:%s287] %v324
              %v326 = vld [vmem:[%s294 + $0x168] sm:%s287]
              %327 = vst [vmem:[%s295 + $0x168] sm:%s287] %v326
              %v328 = vld [vmem:[%s294 + $0x180] sm:%s287]
              %329 = vst [vmem:[%s295 + $0x180] sm:%s287] %v328
              %v330 = vld [vmem:[%s294 + $0x198] sm:%s287]
              %331 = vst [vmem:[%s295 + $0x198] sm:%s287] %v330
            $region48: #{tpu_custom_call.1} parent=35 // loop_footer
              %s293 = sadd.s32 1, %s289
            $region49: #{tpu_custom_call.1} parent=35 // loop_footer_branch
              %288 = sbr.rel target = $region45
            $region50: #{tpu_custom_call.1} parent=35 // loop_exit
              _
          $region36: #{tpu_custom_call.1} parent=31 // pred_fallthru
            _
          // Predicated region
          $region51: #{tpu_custom_call.1} parent=31 // pred_check
            _
          $region52: #{tpu_custom_call.1} parent=31 // pred_check_branch
            %334 = sbr.rel (0) target = $region54
          $region53: #{tpu_custom_call.1} parent=31 // pred_region
            %335 = vsyncadd %s201, 5184
          $region54: #{tpu_custom_call.1} parent=31 // pred_fallthru
            _
        $region32: #{tpu_custom_call.1} parent=27 // pred_fallthru
          _
        %s336 = scalar_lea.sflag [#allocation3], %s189
        %s337 = smul.u32 18, 18
        %s338 = smul.u32 %s337, 1
        %s339 = sshll.u32 %s338, 4
        %340 = dma.done %s336, %s339
        %s341 = sadd.s32 %s24, 1
        %p342 = scmp.lt.s32.totalorder %s341, 1
        // Predicated region
        $region55: #{tpu_custom_call.1} parent=27 // pred_check
          %p343 = pneg %p342
        $region56: #{tpu_custom_call.1} parent=27 // pred_check_branch
          %345 = sbr.rel (%p343) target = $region58
        $region57: #{tpu_custom_call.1} parent=27 // pred_region
          %s346 = ssub.s32 1, %s189
          %s347 = smul.u32 %s341, 16
          %s348 = smul.u32 %s347, 24
          %s349 = smul.u32 %s22, 432
          %s350 = sadd.s32 %s348, %s349
          %s351 = scalar_lea.vmem %s0, %s350
          %s352 = smul.u32 %s346, 432
          %s353 = scalar_lea.vmem [#allocation2], %s352
          %s354 = scalar_lea.sflag [#allocation3], %s346
          // Predicated region
          $region59: #{tpu_custom_call.1} parent=57 // pred_check
            _
          $region60: #{tpu_custom_call.1} parent=57 // pred_check_branch
            %356 = sbr.rel (0) target = $region62
          $region61: #{tpu_custom_call.1} parent=57 // pred_region
            %s357 = scalar_lea.vmem %s351, 16
            %s358 = scalar_lea.vmem %s353, 16 [#allocation2]
            loop: start=0, step=1, limit=1
            $region63: #{tpu_custom_call.1} parent=61 // loop_pre_header
              _
            $region64: #{tpu_custom_call.1} parent=61 // loop_header
              %s360 = sphi 0, %s364
              %p361 = scmp.ge.s32.totalorder %s360, 1
              %s365 = sphi %s351, %s351
              %s366 = sphi %s353, %s353
            $region65: #{tpu_custom_call.1} parent=61 // loop_header_branch
              %363 = sbr.rel (%p361) target = $region69
            $region66: #{tpu_custom_call.1} parent=61 // loop_body
              %v367 = vld [vmem:[%s365] sm:$0xff]
              %368 = vst [vmem:[%s366] sm:$0xff] %v367
              %v369 = vld [vmem:[%s365 + $0x8] sm:$0xff]
              %370 = vst [vmem:[%s366 + $0x8] sm:$0xff] %v369
              %v371 = vld [vmem:[%s365 + $0x18] sm:$0xff]
              %372 = vst [vmem:[%s366 + $0x18] sm:$0xff] %v371
              %v373 = vld [vmem:[%s365 + $0x20] sm:$0xff]
              %374 = vst [vmem:[%s366 + $0x20] sm:$0xff] %v373
              %v375 = vld [vmem:[%s365 + $0x30] sm:$0xff]
              %376 = vst [vmem:[%s366 + $0x30] sm:$0xff] %v375
              %v377 = vld [vmem:[%s365 + $0x38] sm:$0xff]
              %378 = vst [vmem:[%s366 + $0x38] sm:$0xff] %v377
              %v379 = vld [vmem:[%s365 + $0x48] sm:$0xff]
              %380 = vst [vmem:[%s366 + $0x48] sm:$0xff] %v379
              %v381 = vld [vmem:[%s365 + $0x50] sm:$0xff]
              %382 = vst [vmem:[%s366 + $0x50] sm:$0xff] %v381
              %v383 = vld [vmem:[%s365 + $0x60] sm:$0xff]
              %384 = vst [vmem:[%s366 + $0x60] sm:$0xff] %v383
              %v385 = vld [vmem:[%s365 + $0x68] sm:$0xff]
              %386 = vst [vmem:[%s366 + $0x68] sm:$0xff] %v385
              %v387 = vld [vmem:[%s365 + $0x78] sm:$0xff]
              %388 = vst [vmem:[%s366 + $0x78] sm:$0xff] %v387
              %v389 = vld [vmem:[%s365 + $0x80] sm:$0xff]
              %390 = vst [vmem:[%s366 + $0x80] sm:$0xff] %v389
              %v391 = vld [vmem:[%s365 + $0x90] sm:$0xff]
              %392 = vst [vmem:[%s366 + $0x90] sm:$0xff] %v391
              %v393 = vld [vmem:[%s365 + $0x98] sm:$0xff]
              %394 = vst [vmem:[%s366 + $0x98] sm:$0xff] %v393
              %v395 = vld [vmem:[%s365 + $0xa8] sm:$0xff]
              %396 = vst [vmem:[%s366 + $0xa8] sm:$0xff] %v395
              %v397 = vld [vmem:[%s365 + $0xb0] sm:$0xff]
              %398 = vst [vmem:[%s366 + $0xb0] sm:$0xff] %v397
              %v399 = vld [vmem:[%s365 + $0xc0] sm:$0xff]
              %400 = vst [vmem:[%s366 + $0xc0] sm:$0xff] %v399
              %v401 = vld [vmem:[%s365 + $0xc8] sm:$0xff]
              %402 = vst [vmem:[%s366 + $0xc8] sm:$0xff] %v401
              %v403 = vld [vmem:[%s365 + $0xd8] sm:$0xff]
              %404 = vst [vmem:[%s366 + $0xd8] sm:$0xff] %v403
              %v405 = vld [vmem:[%s365 + $0xe0] sm:$0xff]
              %406 = vst [vmem:[%s366 + $0xe0] sm:$0xff] %v405
              %v407 = vld [vmem:[%s365 + $0xf0] sm:$0xff]
              %408 = vst [vmem:[%s366 + $0xf0] sm:$0xff] %v407
              %v409 = vld [vmem:[%s365 + $0xf8] sm:$0xff]
              %410 = vst [vmem:[%s366 + $0xf8] sm:$0xff] %v409
              %v411 = vld [vmem:[%s365 + $0x108] sm:$0xff]
              %412 = vst [vmem:[%s366 + $0x108] sm:$0xff] %v411
              %v413 = vld [vmem:[%s365 + $0x110] sm:$0xff]
              %414 = vst [vmem:[%s366 + $0x110] sm:$0xff] %v413
              %v415 = vld [vmem:[%s365 + $0x120] sm:$0xff]
              %416 = vst [vmem:[%s366 + $0x120] sm:$0xff] %v415
              %v417 = vld [vmem:[%s365 + $0x128] sm:$0xff]
              %418 = vst [vmem:[%s366 + $0x128] sm:$0xff] %v417
              %v419 = vld [vmem:[%s365 + $0x138] sm:$0xff]
              %420 = vst [vmem:[%s366 + $0x138] sm:$0xff] %v419
              %v421 = vld [vmem:[%s365 + $0x140] sm:$0xff]
              %422 = vst [vmem:[%s366 + $0x140] sm:$0xff] %v421
              %v423 = vld [vmem:[%s365 + $0x150] sm:$0xff]
              %424 = vst [vmem:[%s366 + $0x150] sm:$0xff] %v423
              %v425 = vld [vmem:[%s365 + $0x158] sm:$0xff]
              %426 = vst [vmem:[%s366 + $0x158] sm:$0xff] %v425
              %v427 = vld [vmem:[%s365 + $0x168] sm:$0xff]
              %428 = vst [vmem:[%s366 + $0x168] sm:$0xff] %v427
              %v429 = vld [vmem:[%s365 + $0x170] sm:$0xff]
              %430 = vst [vmem:[%s366 + $0x170] sm:$0xff] %v429
              %v431 = vld [vmem:[%s365 + $0x180] sm:$0xff]
              %432 = vst [vmem:[%s366 + $0x180] sm:$0xff] %v431
              %v433 = vld [vmem:[%s365 + $0x188] sm:$0xff]
              %434 = vst [vmem:[%s366 + $0x188] sm:$0xff] %v433
              %v435 = vld [vmem:[%s365 + $0x198] sm:$0xff]
              %436 = vst [vmem:[%s366 + $0x198] sm:$0xff] %v435
              %v437 = vld [vmem:[%s365 + $0x1a0] sm:$0xff]
              %438 = vst [vmem:[%s366 + $0x1a0] sm:$0xff] %v437
            $region67: #{tpu_custom_call.1} parent=61 // loop_footer
              %s364 = sadd.s32 1, %s360
            $region68: #{tpu_custom_call.1} parent=61 // loop_footer_branch
              %359 = sbr.rel target = $region64
            $region69: #{tpu_custom_call.1} parent=61 // loop_exit
              _
            %s440 = ssub.s32 4, 1
            loop: start=0, step=1, limit=1
            $region70: #{tpu_custom_call.1} parent=61 // loop_pre_header
              _
            $region71: #{tpu_custom_call.1} parent=61 // loop_header
              %s442 = sphi 0, %s446
              %p443 = scmp.ge.s32.totalorder %s442, 1
              %s447 = sphi %s357, %s357
              %s448 = sphi %s358, %s358
            $region72: #{tpu_custom_call.1} parent=61 // loop_header_branch
              %445 = sbr.rel (%p443) target = $region76
            $region73: #{tpu_custom_call.1} parent=61 // loop_body
              %v449 = vld [vmem:[%s447] sm:%s440]
              %450 = vst [vmem:[%s448] sm:%s440] %v449
              %v451 = vld [vmem:[%s447 + $0x18] sm:%s440]
              %452 = vst [vmem:[%s448 + $0x18] sm:%s440] %v451
              %v453 = vld [vmem:[%s447 + $0x30] sm:%s440]
              %454 = vst [vmem:[%s448 + $0x30] sm:%s440] %v453
              %v455 = vld [vmem:[%s447 + $0x48] sm:%s440]
              %456 = vst [vmem:[%s448 + $0x48] sm:%s440] %v455
              %v457 = vld [vmem:[%s447 + $0x60] sm:%s440]
              %458 = vst [vmem:[%s448 + $0x60] sm:%s440] %v457
              %v459 = vld [vmem:[%s447 + $0x78] sm:%s440]
              %460 = vst [vmem:[%s448 + $0x78] sm:%s440] %v459
              %v461 = vld [vmem:[%s447 + $0x90] sm:%s440]
              %462 = vst [vmem:[%s448 + $0x90] sm:%s440] %v461
              %v463 = vld [vmem:[%s447 + $0xa8] sm:%s440]
              %464 = vst [vmem:[%s448 + $0xa8] sm:%s440] %v463
              %v465 = vld [vmem:[%s447 + $0xc0] sm:%s440]
              %466 = vst [vmem:[%s448 + $0xc0] sm:%s440] %v465
              %v467 = vld [vmem:[%s447 + $0xd8] sm:%s440]
              %468 = vst [vmem:[%s448 + $0xd8] sm:%s440] %v467
              %v469 = vld [vmem:[%s447 + $0xf0] sm:%s440]
              %470 = vst [vmem:[%s448 + $0xf0] sm:%s440] %v469
              %v471 = vld [vmem:[%s447 + $0x108] sm:%s440]
              %472 = vst [vmem:[%s448 + $0x108] sm:%s440] %v471
              %v473 = vld [vmem:[%s447 + $0x120] sm:%s440]
              %474 = vst [vmem:[%s448 + $0x120] sm:%s440] %v473
              %v475 = vld [vmem:[%s447 + $0x138] sm:%s440]
              %476 = vst [vmem:[%s448 + $0x138] sm:%s440] %v475
              %v477 = vld [vmem:[%s447 + $0x150] sm:%s440]
              %478 = vst [vmem:[%s448 + $0x150] sm:%s440] %v477
              %v479 = vld [vmem:[%s447 + $0x168] sm:%s440]
              %480 = vst [vmem:[%s448 + $0x168] sm:%s440] %v479
              %v481 = vld [vmem:[%s447 + $0x180] sm:%s440]
              %482 = vst [vmem:[%s448 + $0x180] sm:%s440] %v481
              %v483 = vld [vmem:[%s447 + $0x198] sm:%s440]
              %484 = vst [vmem:[%s448 + $0x198] sm:%s440] %v483
            $region74: #{tpu_custom_call.1} parent=61 // loop_footer
              %s446 = sadd.s32 1, %s442
            $region75: #{tpu_custom_call.1} parent=61 // loop_footer_branch
              %441 = sbr.rel target = $region71
            $region76: #{tpu_custom_call.1} parent=61 // loop_exit
              _
          $region62: #{tpu_custom_call.1} parent=57 // pred_fallthru
            _
          // Predicated region
          $region77: #{tpu_custom_call.1} parent=57 // pred_check
            _
          $region78: #{tpu_custom_call.1} parent=57 // pred_check_branch
            %487 = sbr.rel (0) target = $region80
          $region79: #{tpu_custom_call.1} parent=57 // pred_region
            %488 = vsyncadd %s354, 5184
          $region80: #{tpu_custom_call.1} parent=57 // pred_fallthru
            _
        $region58: #{tpu_custom_call.1} parent=27 // pred_fallthru
          _
        %s489 = smul.u32 %s189, 432
        %s490 = scalar_lea.vmem [#allocation2], %s489
        %v491 = vld [vmem:[%s490] sm:$0xff]
        %v492 = vld [vmem:[%s490 + $0x8] sm:$0xff]
        %v493 = vld [vmem:[%s490 + $0x18] sm:$0xff]
        %v494 = vld [vmem:[%s490 + $0x20] sm:$0xff]
        %v495 = vld [vmem:[%s490 + $0x30] sm:$0xff]
        %v496 = vld [vmem:[%s490 + $0x38] sm:$0xff]
        %v497 = vld [vmem:[%s490 + $0x48] sm:$0xff]
        %v498 = vld [vmem:[%s490 + $0x50] sm:$0xff]
        %v499 = vld [vmem:[%s490 + $0x60] sm:$0xff]
        %v500 = vld [vmem:[%s490 + $0x68] sm:$0xff]
        %v501 = vld [vmem:[%s490 + $0x78] sm:$0xff]
        %v502 = vld [vmem:[%s490 + $0x80] sm:$0xff]
        %v503 = vld [vmem:[%s490 + $0x90] sm:$0xff]
        %v504 = vld [vmem:[%s490 + $0x98] sm:$0xff]
        %v505 = vld [vmem:[%s490 + $0xa8] sm:$0xff]
        %v506 = vld [vmem:[%s490 + $0xb0] sm:$0xff]
        %v507 = vld [vmem:[%s490 + $0xc0] sm:$0xff]
        %v508 = vld [vmem:[%s490 + $0xc8] sm:$0xff]
        %v509 = vld [vmem:[%s490 + $0xd8] sm:$0xff]
        %v510 = vld [vmem:[%s490 + $0xe0] sm:$0xff]
        %v511 = vld [vmem:[%s490 + $0xf0] sm:$0xff]
        %v512 = vld [vmem:[%s490 + $0xf8] sm:$0xff]
        %v513 = vld [vmem:[%s490 + $0x108] sm:$0xff]
        %v514 = vld [vmem:[%s490 + $0x110] sm:$0xff]
        %v515 = vld [vmem:[%s490 + $0x120] sm:$0xff]
        %v516 = vld [vmem:[%s490 + $0x128] sm:$0xff]
        %v517 = vld [vmem:[%s490 + $0x138] sm:$0xff]
        %v518 = vld [vmem:[%s490 + $0x140] sm:$0xff]
        %v519 = vld [vmem:[%s490 + $0x150] sm:$0xff]
        %v520 = vld [vmem:[%s490 + $0x158] sm:$0xff]
        %v521 = vld [vmem:[%s490 + $0x168] sm:$0xff]
        %v522 = vld [vmem:[%s490 + $0x170] sm:$0xff]
        %v523 = vld [vmem:[%s173] sm:$0xff]
        %v524 = vld [vmem:[%s173 + $0x8] sm:$0xff]
        %v525 = vld [vmem:[%s173 + $0x10] sm:$0xff]
        %v526 = vld [vmem:[%s173 + $0x18] sm:$0xff]
        %v527 = vld [vmem:[%s173 + $0x20] sm:$0xff]
        %v528 = vld [vmem:[%s173 + $0x28] sm:$0xff]
        %v529 = vld [vmem:[%s173 + $0x30] sm:$0xff]
        %v530 = vld [vmem:[%s173 + $0x38] sm:$0xff]
        %v531 = vld [vmem:[%s173 + $0x40] sm:$0xff]
        %v532 = vld [vmem:[%s173 + $0x48] sm:$0xff]
        %v533 = vld [vmem:[%s173 + $0x50] sm:$0xff]
        %v534 = vld [vmem:[%s173 + $0x58] sm:$0xff]
        %v535 = vld [vmem:[%s173 + $0x60] sm:$0xff]
        %v536 = vld [vmem:[%s173 + $0x68] sm:$0xff]
        %v537 = vld [vmem:[%s173 + $0x70] sm:$0xff]
        %v538 = vld [vmem:[%s173 + $0x78] sm:$0xff]
        %539 = vmatpush.msra.mxu0 %v538
        %540 = vmatpush.msra.mxu0 %v537
        %541 = vmatpush.msra.mxu0 %v536
        %542 = vmatpush.msra.mxu0 %v535
        %543 = vmatpush.msra.mxu0 %v534
        %544 = vmatpush.msra.mxu0 %v533
        %545 = vmatpush.msra.mxu0 %v532
        %546 = vmatpush.msra.mxu0 %v531
        %547 = vmatpush.msra.mxu0 %v530
        %548 = vmatpush.msra.mxu0 %v529
        %549 = vmatpush.msra.mxu0 %v528
        %550 = vmatpush.msra.mxu0 %v527
        %551 = vmatpush.msra.mxu0 %v526
        %552 = vmatpush.msra.mxu0 %v525
        %553 = vmatpush.msra.mxu0 %v524
        %554 = vmatpush.msra.mxu0 %v523
        %555 = vmatmul.f32.gmra.mxu0 %v491
        %v556 = vpop.f32.mrf.mxu0
        %v557 = vadd.f32 0.0, %v556
        %558 = vmatmul.f32.gmra.mxu0 %v492
        %v559 = vpop.f32.mrf.mxu0
        %v560 = vadd.f32 0.0, %v559
        %561 = vmatmul.f32.gmra.mxu0 %v493
        %v562 = vpop.f32.mrf.mxu0
        %v563 = vadd.f32 0.0, %v562
        %564 = vmatmul.f32.gmra.mxu0 %v494
        %v565 = vpop.f32.mrf.mxu0
        %v566 = vadd.f32 0.0, %v565
        %567 = vmatmul.f32.gmra.mxu0 %v495
        %v568 = vpop.f32.mrf.mxu0
        %v569 = vadd.f32 0.0, %v568
        %570 = vmatmul.f32.gmra.mxu0 %v496
        %v571 = vpop.f32.mrf.mxu0
        %v572 = vadd.f32 0.0, %v571
        %573 = vmatmul.f32.gmra.mxu0 %v497
        %v574 = vpop.f32.mrf.mxu0
        %v575 = vadd.f32 0.0, %v574
        %576 = vmatmul.f32.gmra.mxu0 %v498
        %v577 = vpop.f32.mrf.mxu0
        %v578 = vadd.f32 0.0, %v577
        %579 = vmatmul.f32.gmra.mxu0 %v499
        %v580 = vpop.f32.mrf.mxu0
        %v581 = vadd.f32 0.0, %v580
        %582 = vmatmul.f32.gmra.mxu0 %v500
        %v583 = vpop.f32.mrf.mxu0
        %v584 = vadd.f32 0.0, %v583
        %585 = vmatmul.f32.gmra.mxu0 %v501
        %v586 = vpop.f32.mrf.mxu0
        %v587 = vadd.f32 0.0, %v586
        %588 = vmatmul.f32.gmra.mxu0 %v502
        %v589 = vpop.f32.mrf.mxu0
        %v590 = vadd.f32 0.0, %v589
        %591 = vmatmul.f32.gmra.mxu0 %v503
        %v592 = vpop.f32.mrf.mxu0
        %v593 = vadd.f32 0.0, %v592
        %594 = vmatmul.f32.gmra.mxu0 %v504
        %v595 = vpop.f32.mrf.mxu0
        %v596 = vadd.f32 0.0, %v595
        %597 = vmatmul.f32.gmra.mxu0 %v505
        %v598 = vpop.f32.mrf.mxu0
        %v599 = vadd.f32 0.0, %v598
        %600 = vmatmul.f32.gmra.mxu0 %v506
        %v601 = vpop.f32.mrf.mxu0
        %v602 = vadd.f32 0.0, %v601
        %603 = vmatmul.f32.gmra.mxu0 %v507
        %v604 = vpop.f32.mrf.mxu0
        %v605 = vadd.f32 0.0, %v604
        %606 = vmatmul.f32.gmra.mxu0 %v508
        %v607 = vpop.f32.mrf.mxu0
        %v608 = vadd.f32 0.0, %v607
        %609 = vmatmul.f32.gmra.mxu0 %v509
        %v610 = vpop.f32.mrf.mxu0
        %v611 = vadd.f32 0.0, %v610
        %612 = vmatmul.f32.gmra.mxu0 %v510
        %v613 = vpop.f32.mrf.mxu0
        %v614 = vadd.f32 0.0, %v613
        %615 = vmatmul.f32.gmra.mxu0 %v511
        %v616 = vpop.f32.mrf.mxu0
        %v617 = vadd.f32 0.0, %v616
        %618 = vmatmul.f32.gmra.mxu0 %v512
        %v619 = vpop.f32.mrf.mxu0
        %v620 = vadd.f32 0.0, %v619
        %621 = vmatmul.f32.gmra.mxu0 %v513
        %v622 = vpop.f32.mrf.mxu0
        %v623 = vadd.f32 0.0, %v622
        %624 = vmatmul.f32.gmra.mxu0 %v514
        %v625 = vpop.f32.mrf.mxu0
        %v626 = vadd.f32 0.0, %v625
        %627 = vmatmul.f32.gmra.mxu0 %v515
        %v628 = vpop.f32.mrf.mxu0
        %v629 = vadd.f32 0.0, %v628
        %630 = vmatmul.f32.gmra.mxu0 %v516
        %v631 = vpop.f32.mrf.mxu0
        %v632 = vadd.f32 0.0, %v631
        %633 = vmatmul.f32.gmra.mxu0 %v517
        %v634 = vpop.f32.mrf.mxu0
        %v635 = vadd.f32 0.0, %v634
        %636 = vmatmul.f32.gmra.mxu0 %v518
        %v637 = vpop.f32.mrf.mxu0
        %v638 = vadd.f32 0.0, %v637
        %639 = vmatmul.f32.gmra.mxu0 %v519
        %v640 = vpop.f32.mrf.mxu0
        %v641 = vadd.f32 0.0, %v640
        %642 = vmatmul.f32.gmra.mxu0 %v520
        %v643 = vpop.f32.mrf.mxu0
        %v644 = vadd.f32 0.0, %v643
        %645 = vmatmul.f32.gmra.mxu0 %v521
        %v646 = vpop.f32.mrf.mxu0
        %v647 = vadd.f32 0.0, %v646
        %648 = vmatmul.f32.gmra.mxu0 %v522
        %v649 = vpop.f32.mrf.mxu0
        %v650 = vadd.f32 0.0, %v649
        %651 = vdwg.mxu0
        %652 = vst [vmem:[#allocation4] sm:$0xff] %v557
        %653 = vst [vmem:[#allocation4 + $0x8] sm:$0xff] %v560
        %654 = vst [vmem:[#allocation4 + $0x10] sm:$0xff] %v563
        %655 = vst [vmem:[#allocation4 + $0x18] sm:$0xff] %v566
        %656 = vst [vmem:[#allocation4 + $0x20] sm:$0xff] %v569
        %657 = vst [vmem:[#allocation4 + $0x28] sm:$0xff] %v572
        %658 = vst [vmem:[#allocation4 + $0x30] sm:$0xff] %v575
        %659 = vst [vmem:[#allocation4 + $0x38] sm:$0xff] %v578
        %660 = vst [vmem:[#allocation4 + $0x40] sm:$0xff] %v581
        %661 = vst [vmem:[#allocation4 + $0x48] sm:$0xff] %v584
        %662 = vst [vmem:[#allocation4 + $0x50] sm:$0xff] %v587
        %663 = vst [vmem:[#allocation4 + $0x58] sm:$0xff] %v590
        %664 = vst [vmem:[#allocation4 + $0x60] sm:$0xff] %v593
        %665 = vst [vmem:[#allocation4 + $0x68] sm:$0xff] %v596
        %666 = vst [vmem:[#allocation4 + $0x70] sm:$0xff] %v599
        %667 = vst [vmem:[#allocation4 + $0x78] sm:$0xff] %v602
        %668 = vst [vmem:[#allocation4 + $0x80] sm:$0xff] %v605
        %669 = vst [vmem:[#allocation4 + $0x88] sm:$0xff] %v608
        %670 = vst [vmem:[#allocation4 + $0x90] sm:$0xff] %v611
        %671 = vst [vmem:[#allocation4 + $0x98] sm:$0xff] %v614
        %672 = vst [vmem:[#allocation4 + $0xa0] sm:$0xff] %v617
        %673 = vst [vmem:[#allocation4 + $0xa8] sm:$0xff] %v620
        %674 = vst [vmem:[#allocation4 + $0xb0] sm:$0xff] %v623
        %675 = vst [vmem:[#allocation4 + $0xb8] sm:$0xff] %v626
        %676 = vst [vmem:[#allocation4 + $0xc0] sm:$0xff] %v629
        %677 = vst [vmem:[#allocation4 + $0xc8] sm:$0xff] %v632
        %678 = vst [vmem:[#allocation4 + $0xd0] sm:$0xff] %v635
        %679 = vst [vmem:[#allocation4 + $0xd8] sm:$0xff] %v638
        %680 = vst [vmem:[#allocation4 + $0xe0] sm:$0xff] %v641
        %681 = vst [vmem:[#allocation4 + $0xe8] sm:$0xff] %v644
        %682 = vst [vmem:[#allocation4 + $0xf0] sm:$0xff] %v647
        %683 = vst [vmem:[#allocation4 + $0xf8] sm:$0xff] %v650
        %v684 = vld [vmem:[%s490 + $0x1] sm:$0xff]
        %v685 = vld [vmem:[%s490 + $0x9] sm:$0xff]
        %v686 = vld [vmem:[%s490 + $0x19] sm:$0xff]
        %v687 = vld [vmem:[%s490 + $0x21] sm:$0xff]
        %v688 = vld [vmem:[%s490 + $0x31] sm:$0xff]
        %v689 = vld [vmem:[%s490 + $0x39] sm:$0xff]
        %v690 = vld [vmem:[%s490 + $0x49] sm:$0xff]
        %v691 = vld [vmem:[%s490 + $0x51] sm:$0xff]
        %v692 = vld [vmem:[%s490 + $0x61] sm:$0xff]
        %v693 = vld [vmem:[%s490 + $0x69] sm:$0xff]
        %v694 = vld [vmem:[%s490 + $0x79] sm:$0xff]
        %v695 = vld [vmem:[%s490 + $0x81] sm:$0xff]
        %v696 = vld [vmem:[%s490 + $0x91] sm:$0xff]
        %v697 = vld [vmem:[%s490 + $0x99] sm:$0xff]
        %v698 = vld [vmem:[%s490 + $0xa9] sm:$0xff]
        %v699 = vld [vmem:[%s490 + $0xb1] sm:$0xff]
        %v700 = vld [vmem:[%s490 + $0xc1] sm:$0xff]
        %v701 = vld [vmem:[%s490 + $0xc9] sm:$0xff]
        %v702 = vld [vmem:[%s490 + $0xd9] sm:$0xff]
        %v703 = vld [vmem:[%s490 + $0xe1] sm:$0xff]
        %v704 = vld [vmem:[%s490 + $0xf1] sm:$0xff]
        %v705 = vld [vmem:[%s490 + $0xf9] sm:$0xff]
        %v706 = vld [vmem:[%s490 + $0x109] sm:$0xff]
        %v707 = vld [vmem:[%s490 + $0x111] sm:$0xff]
        %v708 = vld [vmem:[%s490 + $0x121] sm:$0xff]
        %v709 = vld [vmem:[%s490 + $0x129] sm:$0xff]
        %v710 = vld [vmem:[%s490 + $0x139] sm:$0xff]
        %v711 = vld [vmem:[%s490 + $0x141] sm:$0xff]
        %v712 = vld [vmem:[%s490 + $0x151] sm:$0xff]
        %v713 = vld [vmem:[%s490 + $0x159] sm:$0xff]
        %v714 = vld [vmem:[%s490 + $0x169] sm:$0xff]
        %v715 = vld [vmem:[%s490 + $0x171] sm:$0xff]
        %s716 = scalar_lea.vmem %s173, 128
        %v717 = vld [vmem:[%s716] sm:$0xff]
        %v718 = vld [vmem:[%s716 + $0x8] sm:$0xff]
        %v719 = vld [vmem:[%s716 + $0x10] sm:$0xff]
        %v720 = vld [vmem:[%s716 + $0x18] sm:$0xff]
        %v721 = vld [vmem:[%s716 + $0x20] sm:$0xff]
        %v722 = vld [vmem:[%s716 + $0x28] sm:$0xff]
        %v723 = vld [vmem:[%s716 + $0x30] sm:$0xff]
        %v724 = vld [vmem:[%s716 + $0x38] sm:$0xff]
        %v725 = vld [vmem:[%s716 + $0x40] sm:$0xff]
        %v726 = vld [vmem:[%s716 + $0x48] sm:$0xff]
        %v727 = vld [vmem:[%s716 + $0x50] sm:$0xff]
        %v728 = vld [vmem:[%s716 + $0x58] sm:$0xff]
        %v729 = vld [vmem:[%s716 + $0x60] sm:$0xff]
        %v730 = vld [vmem:[%s716 + $0x68] sm:$0xff]
        %v731 = vld [vmem:[%s716 + $0x70] sm:$0xff]
        %v732 = vld [vmem:[%s716 + $0x78] sm:$0xff]
        %733 = vmatpush.msra.mxu0 %v732
        %734 = vmatpush.msra.mxu0 %v731
        %735 = vmatpush.msra.mxu0 %v730
        %736 = vmatpush.msra.mxu0 %v729
        %737 = vmatpush.msra.mxu0 %v728
        %738 = vmatpush.msra.mxu0 %v727
        %739 = vmatpush.msra.mxu0 %v726
        %740 = vmatpush.msra.mxu0 %v725
        %741 = vmatpush.msra.mxu0 %v724
        %742 = vmatpush.msra.mxu0 %v723
        %743 = vmatpush.msra.mxu0 %v722
        %744 = vmatpush.msra.mxu0 %v721
        %745 = vmatpush.msra.mxu0 %v720
        %746 = vmatpush.msra.mxu0 %v719
        %747 = vmatpush.msra.mxu0 %v718
        %748 = vmatpush.msra.mxu0 %v717
        %749 = vmatmul.f32.gmra.mxu0 %v684
        %v750 = vpop.f32.mrf.mxu0
        %v751 = vadd.f32 0.0, %v750
        %752 = vmatmul.f32.gmra.mxu0 %v685
        %v753 = vpop.f32.mrf.mxu0
        %v754 = vadd.f32 0.0, %v753
        %755 = vmatmul.f32.gmra.mxu0 %v686
        %v756 = vpop.f32.mrf.mxu0
        %v757 = vadd.f32 0.0, %v756
        %758 = vmatmul.f32.gmra.mxu0 %v687
        %v759 = vpop.f32.mrf.mxu0
        %v760 = vadd.f32 0.0, %v759
        %761 = vmatmul.f32.gmra.mxu0 %v688
        %v762 = vpop.f32.mrf.mxu0
        %v763 = vadd.f32 0.0, %v762
        %764 = vmatmul.f32.gmra.mxu0 %v689
        %v765 = vpop.f32.mrf.mxu0
        %v766 = vadd.f32 0.0, %v765
        %767 = vmatmul.f32.gmra.mxu0 %v690
        %v768 = vpop.f32.mrf.mxu0
        %v769 = vadd.f32 0.0, %v768
        %770 = vmatmul.f32.gmra.mxu0 %v691
        %v771 = vpop.f32.mrf.mxu0
        %v772 = vadd.f32 0.0, %v771
        %773 = vmatmul.f32.gmra.mxu0 %v692
        %v774 = vpop.f32.mrf.mxu0
        %v775 = vadd.f32 0.0, %v774
        %776 = vmatmul.f32.gmra.mxu0 %v693
        %v777 = vpop.f32.mrf.mxu0
        %v778 = vadd.f32 0.0, %v777
        %779 = vmatmul.f32.gmra.mxu0 %v694
        %v780 = vpop.f32.mrf.mxu0
        %v781 = vadd.f32 0.0, %v780
        %782 = vmatmul.f32.gmra.mxu0 %v695
        %v783 = vpop.f32.mrf.mxu0
        %v784 = vadd.f32 0.0, %v783
        %785 = vmatmul.f32.gmra.mxu0 %v696
        %v786 = vpop.f32.mrf.mxu0
        %v787 = vadd.f32 0.0, %v786
        %788 = vmatmul.f32.gmra.mxu0 %v697
        %v789 = vpop.f32.mrf.mxu0
        %v790 = vadd.f32 0.0, %v789
        %791 = vmatmul.f32.gmra.mxu0 %v698
        %v792 = vpop.f32.mrf.mxu0
        %v793 = vadd.f32 0.0, %v792
        %794 = vmatmul.f32.gmra.mxu0 %v699
        %v795 = vpop.f32.mrf.mxu0
        %v796 = vadd.f32 0.0, %v795
        %797 = vmatmul.f32.gmra.mxu0 %v700
        %v798 = vpop.f32.mrf.mxu0
        %v799 = vadd.f32 0.0, %v798
        %800 = vmatmul.f32.gmra.mxu0 %v701
        %v801 = vpop.f32.mrf.mxu0
        %v802 = vadd.f32 0.0, %v801
        %803 = vmatmul.f32.gmra.mxu0 %v702
        %v804 = vpop.f32.mrf.mxu0
        %v805 = vadd.f32 0.0, %v804
        %806 = vmatmul.f32.gmra.mxu0 %v703
        %v807 = vpop.f32.mrf.mxu0
        %v808 = vadd.f32 0.0, %v807
        %809 = vmatmul.f32.gmra.mxu0 %v704
        %v810 = vpop.f32.mrf.mxu0
        %v811 = vadd.f32 0.0, %v810
        %812 = vmatmul.f32.gmra.mxu0 %v705
        %v813 = vpop.f32.mrf.mxu0
        %v814 = vadd.f32 0.0, %v813
        %815 = vmatmul.f32.gmra.mxu0 %v706
        %v816 = vpop.f32.mrf.mxu0
        %v817 = vadd.f32 0.0, %v816
        %818 = vmatmul.f32.gmra.mxu0 %v707
        %v819 = vpop.f32.mrf.mxu0
        %v820 = vadd.f32 0.0, %v819
        %821 = vmatmul.f32.gmra.mxu0 %v708
        %v822 = vpop.f32.mrf.mxu0
        %v823 = vadd.f32 0.0, %v822
        %824 = vmatmul.f32.gmra.mxu0 %v709
        %v825 = vpop.f32.mrf.mxu0
        %v826 = vadd.f32 0.0, %v825
        %827 = vmatmul.f32.gmra.mxu0 %v710
        %v828 = vpop.f32.mrf.mxu0
        %v829 = vadd.f32 0.0, %v828
        %830 = vmatmul.f32.gmra.mxu0 %v711
        %v831 = vpop.f32.mrf.mxu0
        %v832 = vadd.f32 0.0, %v831
        %833 = vmatmul.f32.gmra.mxu0 %v712
        %v834 = vpop.f32.mrf.mxu0
        %v835 = vadd.f32 0.0, %v834
        %836 = vmatmul.f32.gmra.mxu0 %v713
        %v837 = vpop.f32.mrf.mxu0
        %v838 = vadd.f32 0.0, %v837
        %839 = vmatmul.f32.gmra.mxu0 %v714
        %v840 = vpop.f32.mrf.mxu0
        %v841 = vadd.f32 0.0, %v840
        %842 = vmatmul.f32.gmra.mxu0 %v715
        %v843 = vpop.f32.mrf.mxu0
        %v844 = vadd.f32 0.0, %v843
        %845 = vdwg.mxu0
        %v846 = vld [vmem:[#allocation4] sm:$0xff]
        %v847 = vld [vmem:[#allocation4 + $0x8] sm:$0xff]
        %v848 = vld [vmem:[#allocation4 + $0x10] sm:$0xff]
        %v849 = vld [vmem:[#allocation4 + $0x18] sm:$0xff]
        %v850 = vld [vmem:[#allocation4 + $0x20] sm:$0xff]
        %v851 = vld [vmem:[#allocation4 + $0x28] sm:$0xff]
        %v852 = vld [vmem:[#allocation4 + $0x30] sm:$0xff]
        %v853 = vld [vmem:[#allocation4 + $0x38] sm:$0xff]
        %v854 = vld [vmem:[#allocation4 + $0x40] sm:$0xff]
        %v855 = vld [vmem:[#allocation4 + $0x48] sm:$0xff]
        %v856 = vld [vmem:[#allocation4 + $0x50] sm:$0xff]
        %v857 = vld [vmem:[#allocation4 + $0x58] sm:$0xff]
        %v858 = vld [vmem:[#allocation4 + $0x60] sm:$0xff]
        %v859 = vld [vmem:[#allocation4 + $0x68] sm:$0xff]
        %v860 = vld [vmem:[#allocation4 + $0x70] sm:$0xff]
        %v861 = vld [vmem:[#allocation4 + $0x78] sm:$0xff]
        %v862 = vld [vmem:[#allocation4 + $0x80] sm:$0xff]
        %v863 = vld [vmem:[#allocation4 + $0x88] sm:$0xff]
        %v864 = vld [vmem:[#allocation4 + $0x90] sm:$0xff]
        %v865 = vld [vmem:[#allocation4 + $0x98] sm:$0xff]
        %v866 = vld [vmem:[#allocation4 + $0xa0] sm:$0xff]
        %v867 = vld [vmem:[#allocation4 + $0xa8] sm:$0xff]
        %v868 = vld [vmem:[#allocation4 + $0xb0] sm:$0xff]
        %v869 = vld [vmem:[#allocation4 + $0xb8] sm:$0xff]
        %v870 = vld [vmem:[#allocation4 + $0xc0] sm:$0xff]
        %v871 = vld [vmem:[#allocation4 + $0xc8] sm:$0xff]
        %v872 = vld [vmem:[#allocation4 + $0xd0] sm:$0xff]
        %v873 = vld [vmem:[#allocation4 + $0xd8] sm:$0xff]
        %v874 = vld [vmem:[#allocation4 + $0xe0] sm:$0xff]
        %v875 = vld [vmem:[#allocation4 + $0xe8] sm:$0xff]
        %v876 = vld [vmem:[#allocation4 + $0xf0] sm:$0xff]
        %v877 = vld [vmem:[#allocation4 + $0xf8] sm:$0xff]
        %v878 = vadd.f32 %v846, %v751
        %v879 = vadd.f32 %v847, %v754
        %v880 = vadd.f32 %v848, %v757
        %v881 = vadd.f32 %v849, %v760
        %v882 = vadd.f32 %v850, %v763
        %v883 = vadd.f32 %v851, %v766
        %v884 = vadd.f32 %v852, %v769
        %v885 = vadd.f32 %v853, %v772
        %v886 = vadd.f32 %v854, %v775
        %v887 = vadd.f32 %v855, %v778
        %v888 = vadd.f32 %v856, %v781
        %v889 = vadd.f32 %v857, %v784
        %v890 = vadd.f32 %v858, %v787
        %v891 = vadd.f32 %v859, %v790
        %v892 = vadd.f32 %v860, %v793
        %v893 = vadd.f32 %v861, %v796
        %v894 = vadd.f32 %v862, %v799
        %v895 = vadd.f32 %v863, %v802
        %v896 = vadd.f32 %v864, %v805
        %v897 = vadd.f32 %v865, %v808
        %v898 = vadd.f32 %v866, %v811
        %v899 = vadd.f32 %v867, %v814
        %v900 = vadd.f32 %v868, %v817
        %v901 = vadd.f32 %v869, %v820
        %v902 = vadd.f32 %v870, %v823
        %v903 = vadd.f32 %v871, %v826
        %v904 = vadd.f32 %v872, %v829
        %v905 = vadd.f32 %v873, %v832
        %v906 = vadd.f32 %v874, %v835
        %v907 = vadd.f32 %v875, %v838
        %v908 = vadd.f32 %v876, %v841
        %v909 = vadd.f32 %v877, %v844
        %910 = vst [vmem:[#allocation4] sm:$0xff] %v878
        %911 = vst [vmem:[#allocation4 + $0x8] sm:$0xff] %v879
        %912 = vst [vmem:[#allocation4 + $0x10] sm:$0xff] %v880
        %913 = vst [vmem:[#allocation4 + $0x18] sm:$0xff] %v881
        %914 = vst [vmem:[#allocation4 + $0x20] sm:$0xff] %v882
        %915 = vst [vmem:[#allocation4 + $0x28] sm:$0xff] %v883
        %916 = vst [vmem:[#allocation4 + $0x30] sm:$0xff] %v884
        %917 = vst [vmem:[#allocation4 + $0x38] sm:$0xff] %v885
        %918 = vst [vmem:[#allocation4 + $0x40] sm:$0xff] %v886
        %919 = vst [vmem:[#allocation4 + $0x48] sm:$0xff] %v887
        %920 = vst [vmem:[#allocation4 + $0x50] sm:$0xff] %v888
        %921 = vst [vmem:[#allocation4 + $0x58] sm:$0xff] %v889
        %922 = vst [vmem:[#allocation4 + $0x60] sm:$0xff] %v890
        %923 = vst [vmem:[#allocation4 + $0x68] sm:$0xff] %v891
        %924 = vst [vmem:[#allocation4 + $0x70] sm:$0xff] %v892
        %925 = vst [vmem:[#allocation4 + $0x78] sm:$0xff] %v893
        %926 = vst [vmem:[#allocation4 + $0x80] sm:$0xff] %v894
        %927 = vst [vmem:[#allocation4 + $0x88] sm:$0xff] %v895
        %928 = vst [vmem:[#allocation4 + $0x90] sm:$0xff] %v896
        %929 = vst [vmem:[#allocation4 + $0x98] sm:$0xff] %v897
        %930 = vst [vmem:[#allocation4 + $0xa0] sm:$0xff] %v898
        %931 = vst [vmem:[#allocation4 + $0xa8] sm:$0xff] %v899
        %932 = vst [vmem:[#allocation4 + $0xb0] sm:$0xff] %v900
        %933 = vst [vmem:[#allocation4 + $0xb8] sm:$0xff] %v901
        %934 = vst [vmem:[#allocation4 + $0xc0] sm:$0xff] %v902
        %935 = vst [vmem:[#allocation4 + $0xc8] sm:$0xff] %v903
        %936 = vst [vmem:[#allocation4 + $0xd0] sm:$0xff] %v904
        %937 = vst [vmem:[#allocation4 + $0xd8] sm:$0xff] %v905
        %938 = vst [vmem:[#allocation4 + $0xe0] sm:$0xff] %v906
        %939 = vst [vmem:[#allocation4 + $0xe8] sm:$0xff] %v907
        %940 = vst [vmem:[#allocation4 + $0xf0] sm:$0xff] %v908
        %941 = vst [vmem:[#allocation4 + $0xf8] sm:$0xff] %v909
        %v942 = vld [vmem:[%s490 + $0x2] sm:$0xff]
        %v943 = vld [vmem:[%s490 + $0xa] sm:$0xff]
        %v944 = vld [vmem:[%s490 + $0x1a] sm:$0xff]
        %v945 = vld [vmem:[%s490 + $0x22] sm:$0xff]
        %v946 = vld [vmem:[%s490 + $0x32] sm:$0xff]
        %v947 = vld [vmem:[%s490 + $0x3a] sm:$0xff]
        %v948 = vld [vmem:[%s490 + $0x4a] sm:$0xff]
        %v949 = vld [vmem:[%s490 + $0x52] sm:$0xff]
        %v950 = vld [vmem:[%s490 + $0x62] sm:$0xff]
        %v951 = vld [vmem:[%s490 + $0x6a] sm:$0xff]
        %v952 = vld [vmem:[%s490 + $0x7a] sm:$0xff]
        %v953 = vld [vmem:[%s490 + $0x82] sm:$0xff]
        %v954 = vld [vmem:[%s490 + $0x92] sm:$0xff]
        %v955 = vld [vmem:[%s490 + $0x9a] sm:$0xff]
        %v956 = vld [vmem:[%s490 + $0xaa] sm:$0xff]
        %v957 = vld [vmem:[%s490 + $0xb2] sm:$0xff]
        %v958 = vld [vmem:[%s490 + $0xc2] sm:$0xff]
        %v959 = vld [vmem:[%s490 + $0xca] sm:$0xff]
        %v960 = vld [vmem:[%s490 + $0xda] sm:$0xff]
        %v961 = vld [vmem:[%s490 + $0xe2] sm:$0xff]
        %v962 = vld [vmem:[%s490 + $0xf2] sm:$0xff]
        %v963 = vld [vmem:[%s490 + $0xfa] sm:$0xff]
        %v964 = vld [vmem:[%s490 + $0x10a] sm:$0xff]
        %v965 = vld [vmem:[%s490 + $0x112] sm:$0xff]
        %v966 = vld [vmem:[%s490 + $0x122] sm:$0xff]
        %v967 = vld [vmem:[%s490 + $0x12a] sm:$0xff]
        %v968 = vld [vmem:[%s490 + $0x13a] sm:$0xff]
        %v969 = vld [vmem:[%s490 + $0x142] sm:$0xff]
        %v970 = vld [vmem:[%s490 + $0x152] sm:$0xff]
        %v971 = vld [vmem:[%s490 + $0x15a] sm:$0xff]
        %v972 = vld [vmem:[%s490 + $0x16a] sm:$0xff]
        %v973 = vld [vmem:[%s490 + $0x172] sm:$0xff]
        %s974 = scalar_lea.vmem %s173, 256
        %v975 = vld [vmem:[%s974] sm:$0xff]
        %v976 = vld [vmem:[%s974 + $0x8] sm:$0xff]
        %v977 = vld [vmem:[%s974 + $0x10] sm:$0xff]
        %v978 = vld [vmem:[%s974 + $0x18] sm:$0xff]
        %v979 = vld [vmem:[%s974 + $0x20] sm:$0xff]
        %v980 = vld [vmem:[%s974 + $0x28] sm:$0xff]
        %v981 = vld [vmem:[%s974 + $0x30] sm:$0xff]
        %v982 = vld [vmem:[%s974 + $0x38] sm:$0xff]
        %v983 = vld [vmem:[%s974 + $0x40] sm:$0xff]
        %v984 = vld [vmem:[%s974 + $0x48] sm:$0xff]
        %v985 = vld [vmem:[%s974 + $0x50] sm:$0xff]
        %v986 = vld [vmem:[%s974 + $0x58] sm:$0xff]
        %v987 = vld [vmem:[%s974 + $0x60] sm:$0xff]
        %v988 = vld [vmem:[%s974 + $0x68] sm:$0xff]
        %v989 = vld [vmem:[%s974 + $0x70] sm:$0xff]
        %v990 = vld [vmem:[%s974 + $0x78] sm:$0xff]
        %991 = vmatpush.msra.mxu0 %v990
        %992 = vmatpush.msra.mxu0 %v989
        %993 = vmatpush.msra.mxu0 %v988
        %994 = vmatpush.msra.mxu0 %v987
        %995 = vmatpush.msra.mxu0 %v986
        %996 = vmatpush.msra.mxu0 %v985
        %997 = vmatpush.msra.mxu0 %v984
        %998 = vmatpush.msra.mxu0 %v983
        %999 = vmatpush.msra.mxu0 %v982
        %1000 = vmatpush.msra.mxu0 %v981
        %1001 = vmatpush.msra.mxu0 %v980
        %1002 = vmatpush.msra.mxu0 %v979
        %1003 = vmatpush.msra.mxu0 %v978
        %1004 = vmatpush.msra.mxu0 %v977
        %1005 = vmatpush.msra.mxu0 %v976
        %1006 = vmatpush.msra.mxu0 %v975
        %1007 = vmatmul.f32.gmra.mxu0 %v942
        %v1008 = vpop.f32.mrf.mxu0
        %v1009 = vadd.f32 0.0, %v1008
        %1010 = vmatmul.f32.gmra.mxu0 %v943
        %v1011 = vpop.f32.mrf.mxu0
        %v1012 = vadd.f32 0.0, %v1011
        %1013 = vmatmul.f32.gmra.mxu0 %v944
        %v1014 = vpop.f32.mrf.mxu0
        %v1015 = vadd.f32 0.0, %v1014
        %1016 = vmatmul.f32.gmra.mxu0 %v945
        %v1017 = vpop.f32.mrf.mxu0
        %v1018 = vadd.f32 0.0, %v1017
        %1019 = vmatmul.f32.gmra.mxu0 %v946
        %v1020 = vpop.f32.mrf.mxu0
        %v1021 = vadd.f32 0.0, %v1020
        %1022 = vmatmul.f32.gmra.mxu0 %v947
        %v1023 = vpop.f32.mrf.mxu0
        %v1024 = vadd.f32 0.0, %v1023
        %1025 = vmatmul.f32.gmra.mxu0 %v948
        %v1026 = vpop.f32.mrf.mxu0
        %v1027 = vadd.f32 0.0, %v1026
        %1028 = vmatmul.f32.gmra.mxu0 %v949
        %v1029 = vpop.f32.mrf.mxu0
        %v1030 = vadd.f32 0.0, %v1029
        %1031 = vmatmul.f32.gmra.mxu0 %v950
        %v1032 = vpop.f32.mrf.mxu0
        %v1033 = vadd.f32 0.0, %v1032
        %1034 = vmatmul.f32.gmra.mxu0 %v951
        %v1035 = vpop.f32.mrf.mxu0
        %v1036 = vadd.f32 0.0, %v1035
        %1037 = vmatmul.f32.gmra.mxu0 %v952
        %v1038 = vpop.f32.mrf.mxu0
        %v1039 = vadd.f32 0.0, %v1038
        %1040 = vmatmul.f32.gmra.mxu0 %v953
        %v1041 = vpop.f32.mrf.mxu0
        %v1042 = vadd.f32 0.0, %v1041
        %1043 = vmatmul.f32.gmra.mxu0 %v954
        %v1044 = vpop.f32.mrf.mxu0
        %v1045 = vadd.f32 0.0, %v1044
        %1046 = vmatmul.f32.gmra.mxu0 %v955
        %v1047 = vpop.f32.mrf.mxu0
        %v1048 = vadd.f32 0.0, %v1047
        %1049 = vmatmul.f32.gmra.mxu0 %v956
        %v1050 = vpop.f32.mrf.mxu0
        %v1051 = vadd.f32 0.0, %v1050
        %1052 = vmatmul.f32.gmra.mxu0 %v957
        %v1053 = vpop.f32.mrf.mxu0
        %v1054 = vadd.f32 0.0, %v1053
        %1055 = vmatmul.f32.gmra.mxu0 %v958
        %v1056 = vpop.f32.mrf.mxu0
        %v1057 = vadd.f32 0.0, %v1056
        %1058 = vmatmul.f32.gmra.mxu0 %v959
        %v1059 = vpop.f32.mrf.mxu0
        %v1060 = vadd.f32 0.0, %v1059
        %1061 = vmatmul.f32.gmra.mxu0 %v960
        %v1062 = vpop.f32.mrf.mxu0
        %v1063 = vadd.f32 0.0, %v1062
        %1064 = vmatmul.f32.gmra.mxu0 %v961
        %v1065 = vpop.f32.mrf.mxu0
        %v1066 = vadd.f32 0.0, %v1065
        %1067 = vmatmul.f32.gmra.mxu0 %v962
        %v1068 = vpop.f32.mrf.mxu0
        %v1069 = vadd.f32 0.0, %v1068
        %1070 = vmatmul.f32.gmra.mxu0 %v963
        %v1071 = vpop.f32.mrf.mxu0
        %v1072 = vadd.f32 0.0, %v1071
        %1073 = vmatmul.f32.gmra.mxu0 %v964
        %v1074 = vpop.f32.mrf.mxu0
        %v1075 = vadd.f32 0.0, %v1074
        %1076 = vmatmul.f32.gmra.mxu0 %v965
        %v1077 = vpop.f32.mrf.mxu0
        %v1078 = vadd.f32 0.0, %v1077
        %1079 = vmatmul.f32.gmra.mxu0 %v966
        %v1080 = vpop.f32.mrf.mxu0
        %v1081 = vadd.f32 0.0, %v1080
        %1082 = vmatmul.f32.gmra.mxu0 %v967
        %v1083 = vpop.f32.mrf.mxu0
        %v1084 = vadd.f32 0.0, %v1083
        %1085 = vmatmul.f32.gmra.mxu0 %v968
        %v1086 = vpop.f32.mrf.mxu0
        %v1087 = vadd.f32 0.0, %v1086
        %1088 = vmatmul.f32.gmra.mxu0 %v969
        %v1089 = vpop.f32.mrf.mxu0
        %v1090 = vadd.f32 0.0, %v1089
        %1091 = vmatmul.f32.gmra.mxu0 %v970
        %v1092 = vpop.f32.mrf.mxu0
        %v1093 = vadd.f32 0.0, %v1092
        %1094 = vmatmul.f32.gmra.mxu0 %v971
        %v1095 = vpop.f32.mrf.mxu0
        %v1096 = vadd.f32 0.0, %v1095
        %1097 = vmatmul.f32.gmra.mxu0 %v972
        %v1098 = vpop.f32.mrf.mxu0
        %v1099 = vadd.f32 0.0, %v1098
        %1100 = vmatmul.f32.gmra.mxu0 %v973
        %v1101 = vpop.f32.mrf.mxu0
        %v1102 = vadd.f32 0.0, %v1101
        %1103 = vdwg.mxu0
        %v1104 = vld [vmem:[#allocation4] sm:$0xff]
        %v1105 = vld [vmem:[#allocation4 + $0x8] sm:$0xff]
        %v1106 = vld [vmem:[#allocation4 + $0x10] sm:$0xff]
        %v1107 = vld [vmem:[#allocation4 + $0x18] sm:$0xff]
        %v1108 = vld [vmem:[#allocation4 + $0x20] sm:$0xff]
        %v1109 = vld [vmem:[#allocation4 + $0x28] sm:$0xff]
        %v1110 = vld [vmem:[#allocation4 + $0x30] sm:$0xff]
        %v1111 = vld [vmem:[#allocation4 + $0x38] sm:$0xff]
        %v1112 = vld [vmem:[#allocation4 + $0x40] sm:$0xff]
        %v1113 = vld [vmem:[#allocation4 + $0x48] sm:$0xff]
        %v1114 = vld [vmem:[#allocation4 + $0x50] sm:$0xff]
        %v1115 = vld [vmem:[#allocation4 + $0x58] sm:$0xff]
        %v1116 = vld [vmem:[#allocation4 + $0x60] sm:$0xff]
        %v1117 = vld [vmem:[#allocation4 + $0x68] sm:$0xff]
        %v1118 = vld [vmem:[#allocation4 + $0x70] sm:$0xff]
        %v1119 = vld [vmem:[#allocation4 + $0x78] sm:$0xff]
        %v1120 = vld [vmem:[#allocation4 + $0x80] sm:$0xff]
        %v1121 = vld [vmem:[#allocation4 + $0x88] sm:$0xff]
        %v1122 = vld [vmem:[#allocation4 + $0x90] sm:$0xff]
        %v1123 = vld [vmem:[#allocation4 + $0x98] sm:$0xff]
        %v1124 = vld [vmem:[#allocation4 + $0xa0] sm:$0xff]
        %v1125 = vld [vmem:[#allocation4 + $0xa8] sm:$0xff]
        %v1126 = vld [vmem:[#allocation4 + $0xb0] sm:$0xff]
        %v1127 = vld [vmem:[#allocation4 + $0xb8] sm:$0xff]
        %v1128 = vld [vmem:[#allocation4 + $0xc0] sm:$0xff]
        %v1129 = vld [vmem:[#allocation4 + $0xc8] sm:$0xff]
        %v1130 = vld [vmem:[#allocation4 + $0xd0] sm:$0xff]
        %v1131 = vld [vmem:[#allocation4 + $0xd8] sm:$0xff]
        %v1132 = vld [vmem:[#allocation4 + $0xe0] sm:$0xff]
        %v1133 = vld [vmem:[#allocation4 + $0xe8] sm:$0xff]
        %v1134 = vld [vmem:[#allocation4 + $0xf0] sm:$0xff]
        %v1135 = vld [vmem:[#allocation4 + $0xf8] sm:$0xff]
        %v1136 = vadd.f32 %v1104, %v1009
        %v1137 = vadd.f32 %v1105, %v1012
        %v1138 = vadd.f32 %v1106, %v1015
        %v1139 = vadd.f32 %v1107, %v1018
        %v1140 = vadd.f32 %v1108, %v1021
        %v1141 = vadd.f32 %v1109, %v1024
        %v1142 = vadd.f32 %v1110, %v1027
        %v1143 = vadd.f32 %v1111, %v1030
        %v1144 = vadd.f32 %v1112, %v1033
        %v1145 = vadd.f32 %v1113, %v1036
        %v1146 = vadd.f32 %v1114, %v1039
        %v1147 = vadd.f32 %v1115, %v1042
        %v1148 = vadd.f32 %v1116, %v1045
        %v1149 = vadd.f32 %v1117, %v1048
        %v1150 = vadd.f32 %v1118, %v1051
        %v1151 = vadd.f32 %v1119, %v1054
        %v1152 = vadd.f32 %v1120, %v1057
        %v1153 = vadd.f32 %v1121, %v1060
        %v1154 = vadd.f32 %v1122, %v1063
        %v1155 = vadd.f32 %v1123, %v1066
        %v1156 = vadd.f32 %v1124, %v1069
        %v1157 = vadd.f32 %v1125, %v1072
        %v1158 = vadd.f32 %v1126, %v1075
        %v1159 = vadd.f32 %v1127, %v1078
        %v1160 = vadd.f32 %v1128, %v1081
        %v1161 = vadd.f32 %v1129, %v1084
        %v1162 = vadd.f32 %v1130, %v1087
        %v1163 = vadd.f32 %v1131, %v1090
        %v1164 = vadd.f32 %v1132, %v1093
        %v1165 = vadd.f32 %v1133, %v1096
        %v1166 = vadd.f32 %v1134, %v1099
        %v1167 = vadd.f32 %v1135, %v1102
        %1168 = vst [vmem:[#allocation4] sm:$0xff] %v1136
        %1169 = vst [vmem:[#allocation4 + $0x8] sm:$0xff] %v1137
        %1170 = vst [vmem:[#allocation4 + $0x10] sm:$0xff] %v1138
        %1171 = vst [vmem:[#allocation4 + $0x18] sm:$0xff] %v1139
        %1172 = vst [vmem:[#allocation4 + $0x20] sm:$0xff] %v1140
        %1173 = vst [vmem:[#allocation4 + $0x28] sm:$0xff] %v1141
        %1174 = vst [vmem:[#allocation4 + $0x30] sm:$0xff] %v1142
        %1175 = vst [vmem:[#allocation4 + $0x38] sm:$0xff] %v1143
        %1176 = vst [vmem:[#allocation4 + $0x40] sm:$0xff] %v1144
        %1177 = vst [vmem:[#allocation4 + $0x48] sm:$0xff] %v1145
        %1178 = vst [vmem:[#allocation4 + $0x50] sm:$0xff] %v1146
        %1179 = vst [vmem:[#allocation4 + $0x58] sm:$0xff] %v1147
        %1180 = vst [vmem:[#allocation4 + $0x60] sm:$0xff] %v1148
        %1181 = vst [vmem:[#allocation4 + $0x68] sm:$0xff] %v1149
        %1182 = vst [vmem:[#allocation4 + $0x70] sm:$0xff] %v1150
        %1183 = vst [vmem:[#allocation4 + $0x78] sm:$0xff] %v1151
        %1184 = vst [vmem:[#allocation4 + $0x80] sm:$0xff] %v1152
        %1185 = vst [vmem:[#allocation4 + $0x88] sm:$0xff] %v1153
        %1186 = vst [vmem:[#allocation4 + $0x90] sm:$0xff] %v1154
        %1187 = vst [vmem:[#allocation4 + $0x98] sm:$0xff] %v1155
        %1188 = vst [vmem:[#allocation4 + $0xa0] sm:$0xff] %v1156
        %1189 = vst [vmem:[#allocation4 + $0xa8] sm:$0xff] %v1157
        %1190 = vst [vmem:[#allocation4 + $0xb0] sm:$0xff] %v1158
        %1191 = vst [vmem:[#allocation4 + $0xb8] sm:$0xff] %v1159
        %1192 = vst [vmem:[#allocation4 + $0xc0] sm:$0xff] %v1160
        %1193 = vst [vmem:[#allocation4 + $0xc8] sm:$0xff] %v1161
        %1194 = vst [vmem:[#allocation4 + $0xd0] sm:$0xff] %v1162
        %1195 = vst [vmem:[#allocation4 + $0xd8] sm:$0xff] %v1163
        %1196 = vst [vmem:[#allocation4 + $0xe0] sm:$0xff] %v1164
        %1197 = vst [vmem:[#allocation4 + $0xe8] sm:$0xff] %v1165
        %1198 = vst [vmem:[#allocation4 + $0xf0] sm:$0xff] %v1166
        %1199 = vst [vmem:[#allocation4 + $0xf8] sm:$0xff] %v1167
        %s1200 = sadd.s32 24, %s489
        %s1201 = scalar_lea.vmem [#allocation2], %s1200
        %v1202 = vld [vmem:[%s1201] sm:$0xff]
        %v1203 = vld [vmem:[%s1201 + $0x8] sm:$0xff]
        %v1204 = vld [vmem:[%s1201 + $0x18] sm:$0xff]
        %v1205 = vld [vmem:[%s1201 + $0x20] sm:$0xff]
        %v1206 = vld [vmem:[%s1201 + $0x30] sm:$0xff]
        %v1207 = vld [vmem:[%s1201 + $0x38] sm:$0xff]
        %v1208 = vld [vmem:[%s1201 + $0x48] sm:$0xff]
        %v1209 = vld [vmem:[%s1201 + $0x50] sm:$0xff]
        %v1210 = vld [vmem:[%s1201 + $0x60] sm:$0xff]
        %v1211 = vld [vmem:[%s1201 + $0x68] sm:$0xff]
        %v1212 = vld [vmem:[%s1201 + $0x78] sm:$0xff]
        %v1213 = vld [vmem:[%s1201 + $0x80] sm:$0xff]
        %v1214 = vld [vmem:[%s1201 + $0x90] sm:$0xff]
        %v1215 = vld [vmem:[%s1201 + $0x98] sm:$0xff]
        %v1216 = vld [vmem:[%s1201 + $0xa8] sm:$0xff]
        %v1217 = vld [vmem:[%s1201 + $0xb0] sm:$0xff]
        %v1218 = vld [vmem:[%s1201 + $0xc0] sm:$0xff]
        %v1219 = vld [vmem:[%s1201 + $0xc8] sm:$0xff]
        %v1220 = vld [vmem:[%s1201 + $0xd8] sm:$0xff]
        %v1221 = vld [vmem:[%s1201 + $0xe0] sm:$0xff]
        %v1222 = vld [vmem:[%s1201 + $0xf0] sm:$0xff]
        %v1223 = vld [vmem:[%s1201 + $0xf8] sm:$0xff]
        %v1224 = vld [vmem:[%s1201 + $0x108] sm:$0xff]
        %v1225 = vld [vmem:[%s1201 + $0x110] sm:$0xff]
        %v1226 = vld [vmem:[%s1201 + $0x120] sm:$0xff]
        %v1227 = vld [vmem:[%s1201 + $0x128] sm:$0xff]
        %v1228 = vld [vmem:[%s1201 + $0x138] sm:$0xff]
        %v1229 = vld [vmem:[%s1201 + $0x140] sm:$0xff]
        %v1230 = vld [vmem:[%s1201 + $0x150] sm:$0xff]
        %v1231 = vld [vmem:[%s1201 + $0x158] sm:$0xff]
        %v1232 = vld [vmem:[%s1201 + $0x168] sm:$0xff]
        %v1233 = vld [vmem:[%s1201 + $0x170] sm:$0xff]
        %s1234 = scalar_lea.vmem %s173, 384
        %v1235 = vld [vmem:[%s1234] sm:$0xff]
        %v1236 = vld [vmem:[%s1234 + $0x8] sm:$0xff]
        %v1237 = vld [vmem:[%s1234 + $0x10] sm:$0xff]
        %v1238 = vld [vmem:[%s1234 + $0x18] sm:$0xff]
        %v1239 = vld [vmem:[%s1234 + $0x20] sm:$0xff]
        %v1240 = vld [vmem:[%s1234 + $0x28] sm:$0xff]
        %v1241 = vld [vmem:[%s1234 + $0x30] sm:$0xff]
        %v1242 = vld [vmem:[%s1234 + $0x38] sm:$0xff]
        %v1243 = vld [vmem:[%s1234 + $0x40] sm:$0xff]
        %v1244 = vld [vmem:[%s1234 + $0x48] sm:$0xff]
        %v1245 = vld [vmem:[%s1234 + $0x50] sm:$0xff]
        %v1246 = vld [vmem:[%s1234 + $0x58] sm:$0xff]
        %v1247 = vld [vmem:[%s1234 + $0x60] sm:$0xff]
        %v1248 = vld [vmem:[%s1234 + $0x68] sm:$0xff]
        %v1249 = vld [vmem:[%s1234 + $0x70] sm:$0xff]
        %v1250 = vld [vmem:[%s1234 + $0x78] sm:$0xff]
        %1251 = vmatpush.msra.mxu0 %v1250
        %1252 = vmatpush.msra.mxu0 %v1249
        %1253 = vmatpush.msra.mxu0 %v1248
        %1254 = vmatpush.msra.mxu0 %v1247
        %1255 = vmatpush.msra.mxu0 %v1246
        %1256 = vmatpush.msra.mxu0 %v1245
        %1257 = vmatpush.msra.mxu0 %v1244
        %1258 = vmatpush.msra.mxu0 %v1243
        %1259 = vmatpush.msra.mxu0 %v1242
        %1260 = vmatpush.msra.mxu0 %v1241
        %1261 = vmatpush.msra.mxu0 %v1240
        %1262 = vmatpush.msra.mxu0 %v1239
        %1263 = vmatpush.msra.mxu0 %v1238
        %1264 = vmatpush.msra.mxu0 %v1237
        %1265 = vmatpush.msra.mxu0 %v1236
        %1266 = vmatpush.msra.mxu0 %v1235
        %1267 = vmatmul.f32.gmra.mxu0 %v1202
        %v1268 = vpop.f32.mrf.mxu0
        %v1269 = vadd.f32 0.0, %v1268
        %1270 = vmatmul.f32.gmra.mxu0 %v1203
        %v1271 = vpop.f32.mrf.mxu0
        %v1272 = vadd.f32 0.0, %v1271
        %1273 = vmatmul.f32.gmra.mxu0 %v1204
        %v1274 = vpop.f32.mrf.mxu0
        %v1275 = vadd.f32 0.0, %v1274
        %1276 = vmatmul.f32.gmra.mxu0 %v1205
        %v1277 = vpop.f32.mrf.mxu0
        %v1278 = vadd.f32 0.0, %v1277
        %1279 = vmatmul.f32.gmra.mxu0 %v1206
        %v1280 = vpop.f32.mrf.mxu0
        %v1281 = vadd.f32 0.0, %v1280
        %1282 = vmatmul.f32.gmra.mxu0 %v1207
        %v1283 = vpop.f32.mrf.mxu0
        %v1284 = vadd.f32 0.0, %v1283
        %1285 = vmatmul.f32.gmra.mxu0 %v1208
        %v1286 = vpop.f32.mrf.mxu0
        %v1287 = vadd.f32 0.0, %v1286
        %1288 = vmatmul.f32.gmra.mxu0 %v1209
        %v1289 = vpop.f32.mrf.mxu0
        %v1290 = vadd.f32 0.0, %v1289
        %1291 = vmatmul.f32.gmra.mxu0 %v1210
        %v1292 = vpop.f32.mrf.mxu0
        %v1293 = vadd.f32 0.0, %v1292
        %1294 = vmatmul.f32.gmra.mxu0 %v1211
        %v1295 = vpop.f32.mrf.mxu0
        %v1296 = vadd.f32 0.0, %v1295
        %1297 = vmatmul.f32.gmra.mxu0 %v1212
        %v1298 = vpop.f32.mrf.mxu0
        %v1299 = vadd.f32 0.0, %v1298
        %1300 = vmatmul.f32.gmra.mxu0 %v1213
        %v1301 = vpop.f32.mrf.mxu0
        %v1302 = vadd.f32 0.0, %v1301
        %1303 = vmatmul.f32.gmra.mxu0 %v1214
        %v1304 = vpop.f32.mrf.mxu0
        %v1305 = vadd.f32 0.0, %v1304
        %1306 = vmatmul.f32.gmra.mxu0 %v1215
        %v1307 = vpop.f32.mrf.mxu0
        %v1308 = vadd.f32 0.0, %v1307
        %1309 = vmatmul.f32.gmra.mxu0 %v1216
        %v1310 = vpop.f32.mrf.mxu0
        %v1311 = vadd.f32 0.0, %v1310
        %1312 = vmatmul.f32.gmra.mxu0 %v1217
        %v1313 = vpop.f32.mrf.mxu0
        %v1314 = vadd.f32 0.0, %v1313
        %1315 = vmatmul.f32.gmra.mxu0 %v1218
        %v1316 = vpop.f32.mrf.mxu0
        %v1317 = vadd.f32 0.0, %v1316
        %1318 = vmatmul.f32.gmra.mxu0 %v1219
        %v1319 = vpop.f32.mrf.mxu0
        %v1320 = vadd.f32 0.0, %v1319
        %1321 = vmatmul.f32.gmra.mxu0 %v1220
        %v1322 = vpop.f32.mrf.mxu0
        %v1323 = vadd.f32 0.0, %v1322
        %1324 = vmatmul.f32.gmra.mxu0 %v1221
        %v1325 = vpop.f32.mrf.mxu0
        %v1326 = vadd.f32 0.0, %v1325
        %1327 = vmatmul.f32.gmra.mxu0 %v1222
        %v1328 = vpop.f32.mrf.mxu0
        %v1329 = vadd.f32 0.0, %v1328
        %1330 = vmatmul.f32.gmra.mxu0 %v1223
        %v1331 = vpop.f32.mrf.mxu0
        %v1332 = vadd.f32 0.0, %v1331
        %1333 = vmatmul.f32.gmra.mxu0 %v1224
        %v1334 = vpop.f32.mrf.mxu0
        %v1335 = vadd.f32 0.0, %v1334
        %1336 = vmatmul.f32.gmra.mxu0 %v1225
        %v1337 = vpop.f32.mrf.mxu0
        %v1338 = vadd.f32 0.0, %v1337
        %1339 = vmatmul.f32.gmra.mxu0 %v1226
        %v1340 = vpop.f32.mrf.mxu0
        %v1341 = vadd.f32 0.0, %v1340
        %1342 = vmatmul.f32.gmra.mxu0 %v1227
        %v1343 = vpop.f32.mrf.mxu0
        %v1344 = vadd.f32 0.0, %v1343
        %1345 = vmatmul.f32.gmra.mxu0 %v1228
        %v1346 = vpop.f32.mrf.mxu0
        %v1347 = vadd.f32 0.0, %v1346
        %1348 = vmatmul.f32.gmra.mxu0 %v1229
        %v1349 = vpop.f32.mrf.mxu0
        %v1350 = vadd.f32 0.0, %v1349
        %1351 = vmatmul.f32.gmra.mxu0 %v1230
        %v1352 = vpop.f32.mrf.mxu0
        %v1353 = vadd.f32 0.0, %v1352
        %1354 = vmatmul.f32.gmra.mxu0 %v1231
        %v1355 = vpop.f32.mrf.mxu0
        %v1356 = vadd.f32 0.0, %v1355
        %1357 = vmatmul.f32.gmra.mxu0 %v1232
        %v1358 = vpop.f32.mrf.mxu0
        %v1359 = vadd.f32 0.0, %v1358
        %1360 = vmatmul.f32.gmra.mxu0 %v1233
        %v1361 = vpop.f32.mrf.mxu0
        %v1362 = vadd.f32 0.0, %v1361
        %1363 = vdwg.mxu0
        %v1364 = vld [vmem:[#allocation4] sm:$0xff]
        %v1365 = vld [vmem:[#allocation4 + $0x8] sm:$0xff]
        %v1366 = vld [vmem:[#allocation4 + $0x10] sm:$0xff]
        %v1367 = vld [vmem:[#allocation4 + $0x18] sm:$0xff]
        %v1368 = vld [vmem:[#allocation4 + $0x20] sm:$0xff]
        %v1369 = vld [vmem:[#allocation4 + $0x28] sm:$0xff]
        %v1370 = vld [vmem:[#allocation4 + $0x30] sm:$0xff]
        %v1371 = vld [vmem:[#allocation4 + $0x38] sm:$0xff]
        %v1372 = vld [vmem:[#allocation4 + $0x40] sm:$0xff]
        %v1373 = vld [vmem:[#allocation4 + $0x48] sm:$0xff]
        %v1374 = vld [vmem:[#allocation4 + $0x50] sm:$0xff]
        %v1375 = vld [vmem:[#allocation4 + $0x58] sm:$0xff]
        %v1376 = vld [vmem:[#allocation4 + $0x60] sm:$0xff]
        %v1377 = vld [vmem:[#allocation4 + $0x68] sm:$0xff]
        %v1378 = vld [vmem:[#allocation4 + $0x70] sm:$0xff]
        %v1379 = vld [vmem:[#allocation4 + $0x78] sm:$0xff]
        %v1380 = vld [vmem:[#allocation4 + $0x80] sm:$0xff]
        %v1381 = vld [vmem:[#allocation4 + $0x88] sm:$0xff]
        %v1382 = vld [vmem:[#allocation4 + $0x90] sm:$0xff]
        %v1383 = vld [vmem:[#allocation4 + $0x98] sm:$0xff]
        %v1384 = vld [vmem:[#allocation4 + $0xa0] sm:$0xff]
        %v1385 = vld [vmem:[#allocation4 + $0xa8] sm:$0xff]
        %v1386 = vld [vmem:[#allocation4 + $0xb0] sm:$0xff]
        %v1387 = vld [vmem:[#allocation4 + $0xb8] sm:$0xff]
        %v1388 = vld [vmem:[#allocation4 + $0xc0] sm:$0xff]
        %v1389 = vld [vmem:[#allocation4 + $0xc8] sm:$0xff]
        %v1390 = vld [vmem:[#allocation4 + $0xd0] sm:$0xff]
        %v1391 = vld [vmem:[#allocation4 + $0xd8] sm:$0xff]
        %v1392 = vld [vmem:[#allocation4 + $0xe0] sm:$0xff]
        %v1393 = vld [vmem:[#allocation4 + $0xe8] sm:$0xff]
        %v1394 = vld [vmem:[#allocation4 + $0xf0] sm:$0xff]
        %v1395 = vld [vmem:[#allocation4 + $0xf8] sm:$0xff]
        %v1396 = vadd.f32 %v1364, %v1269
        %v1397 = vadd.f32 %v1365, %v1272
        %v1398 = vadd.f32 %v1366, %v1275
        %v1399 = vadd.f32 %v1367, %v1278
        %v1400 = vadd.f32 %v1368, %v1281
        %v1401 = vadd.f32 %v1369, %v1284
        %v1402 = vadd.f32 %v1370, %v1287
        %v1403 = vadd.f32 %v1371, %v1290
        %v1404 = vadd.f32 %v1372, %v1293
        %v1405 = vadd.f32 %v1373, %v1296
        %v1406 = vadd.f32 %v1374, %v1299
        %v1407 = vadd.f32 %v1375, %v1302
        %v1408 = vadd.f32 %v1376, %v1305
        %v1409 = vadd.f32 %v1377, %v1308
        %v1410 = vadd.f32 %v1378, %v1311
        %v1411 = vadd.f32 %v1379, %v1314
        %v1412 = vadd.f32 %v1380, %v1317
        %v1413 = vadd.f32 %v1381, %v1320
        %v1414 = vadd.f32 %v1382, %v1323
        %v1415 = vadd.f32 %v1383, %v1326
        %v1416 = vadd.f32 %v1384, %v1329
        %v1417 = vadd.f32 %v1385, %v1332
        %v1418 = vadd.f32 %v1386, %v1335
        %v1419 = vadd.f32 %v1387, %v1338
        %v1420 = vadd.f32 %v1388, %v1341
        %v1421 = vadd.f32 %v1389, %v1344
        %v1422 = vadd.f32 %v1390, %v1347
        %v1423 = vadd.f32 %v1391, %v1350
        %v1424 = vadd.f32 %v1392, %v1353
        %v1425 = vadd.f32 %v1393, %v1356
        %v1426 = vadd.f32 %v1394, %v1359
        %v1427 = vadd.f32 %v1395, %v1362
        %1428 = vst [vmem:[#allocation4] sm:$0xff] %v1396
        %1429 = vst [vmem:[#allocation4 + $0x8] sm:$0xff] %v1397
        %1430 = vst [vmem:[#allocation4 + $0x10] sm:$0xff] %v1398
        %1431 = vst [vmem:[#allocation4 + $0x18] sm:$0xff] %v1399
        %1432 = vst [vmem:[#allocation4 + $0x20] sm:$0xff] %v1400
        %1433 = vst [vmem:[#allocation4 + $0x28] sm:$0xff] %v1401
        %1434 = vst [vmem:[#allocation4 + $0x30] sm:$0xff] %v1402
        %1435 = vst [vmem:[#allocation4 + $0x38] sm:$0xff] %v1403
        %1436 = vst [vmem:[#allocation4 + $0x40] sm:$0xff] %v1404
        %1437 = vst [vmem:[#allocation4 + $0x48] sm:$0xff] %v1405
        %1438 = vst [vmem:[#allocation4 + $0x50] sm:$0xff] %v1406
        %1439 = vst [vmem:[#allocation4 + $0x58] sm:$0xff] %v1407
        %1440 = vst [vmem:[#allocation4 + $0x60] sm:$0xff] %v1408
        %1441 = vst [vmem:[#allocation4 + $0x68] sm:$0xff] %v1409
        %1442 = vst [vmem:[#allocation4 + $0x70] sm:$0xff] %v1410
        %1443 = vst [vmem:[#allocation4 + $0x78] sm:$0xff] %v1411
        %1444 = vst [vmem:[#allocation4 + $0x80] sm:$0xff] %v1412
        %1445 = vst [vmem:[#allocation4 + $0x88] sm:$0xff] %v1413
        %1446 = vst [vmem:[#allocation4 + $0x90] sm:$0xff] %v1414
        %1447 = vst [vmem:[#allocation4 + $0x98] sm:$0xff] %v1415
        %1448 = vst [vmem:[#allocation4 + $0xa0] sm:$0xff] %v1416
        %1449 = vst [vmem:[#allocation4 + $0xa8] sm:$0xff] %v1417
        %1450 = vst [vmem:[#allocation4 + $0xb0] sm:$0xff] %v1418
        %1451 = vst [vmem:[#allocation4 + $0xb8] sm:$0xff] %v1419
        %1452 = vst [vmem:[#allocation4 + $0xc0] sm:$0xff] %v1420
        %1453 = vst [vmem:[#allocation4 + $0xc8] sm:$0xff] %v1421
        %1454 = vst [vmem:[#allocation4 + $0xd0] sm:$0xff] %v1422
        %1455 = vst [vmem:[#allocation4 + $0xd8] sm:$0xff] %v1423
        %1456 = vst [vmem:[#allocation4 + $0xe0] sm:$0xff] %v1424
        %1457 = vst [vmem:[#allocation4 + $0xe8] sm:$0xff] %v1425
        %1458 = vst [vmem:[#allocation4 + $0xf0] sm:$0xff] %v1426
        %1459 = vst [vmem:[#allocation4 + $0xf8] sm:$0xff] %v1427
        %v1460 = vld [vmem:[%s1201 + $0x1] sm:$0xff]
        %v1461 = vld [vmem:[%s1201 + $0x9] sm:$0xff]
        %v1462 = vld [vmem:[%s1201 + $0x19] sm:$0xff]
        %v1463 = vld [vmem:[%s1201 + $0x21] sm:$0xff]
        %v1464 = vld [vmem:[%s1201 + $0x31] sm:$0xff]
        %v1465 = vld [vmem:[%s1201 + $0x39] sm:$0xff]
        %v1466 = vld [vmem:[%s1201 + $0x49] sm:$0xff]
        %v1467 = vld [vmem:[%s1201 + $0x51] sm:$0xff]
        %v1468 = vld [vmem:[%s1201 + $0x61] sm:$0xff]
        %v1469 = vld [vmem:[%s1201 + $0x69] sm:$0xff]
        %v1470 = vld [vmem:[%s1201 + $0x79] sm:$0xff]
        %v1471 = vld [vmem:[%s1201 + $0x81] sm:$0xff]
        %v1472 = vld [vmem:[%s1201 + $0x91] sm:$0xff]
        %v1473 = vld [vmem:[%s1201 + $0x99] sm:$0xff]
        %v1474 = vld [vmem:[%s1201 + $0xa9] sm:$0xff]
        %v1475 = vld [vmem:[%s1201 + $0xb1] sm:$0xff]
        %v1476 = vld [vmem:[%s1201 + $0xc1] sm:$0xff]
        %v1477 = vld [vmem:[%s1201 + $0xc9] sm:$0xff]
        %v1478 = vld [vmem:[%s1201 + $0xd9] sm:$0xff]
        %v1479 = vld [vmem:[%s1201 + $0xe1] sm:$0xff]
        %v1480 = vld [vmem:[%s1201 + $0xf1] sm:$0xff]
        %v1481 = vld [vmem:[%s1201 + $0xf9] sm:$0xff]
        %v1482 = vld [vmem:[%s1201 + $0x109] sm:$0xff]
        %v1483 = vld [vmem:[%s1201 + $0x111] sm:$0xff]
        %v1484 = vld [vmem:[%s1201 + $0x121] sm:$0xff]
        %v1485 = vld [vmem:[%s1201 + $0x129] sm:$0xff]
        %v1486 = vld [vmem:[%s1201 + $0x139] sm:$0xff]
        %v1487 = vld [vmem:[%s1201 + $0x141] sm:$0xff]
        %v1488 = vld [vmem:[%s1201 + $0x151] sm:$0xff]
        %v1489 = vld [vmem:[%s1201 + $0x159] sm:$0xff]
        %v1490 = vld [vmem:[%s1201 + $0x169] sm:$0xff]
        %v1491 = vld [vmem:[%s1201 + $0x171] sm:$0xff]
        %s1492 = scalar_lea.vmem %s173, 512
        %v1493 = vld [vmem:[%s1492] sm:$0xff]
        %v1494 = vld [vmem:[%s1492 + $0x8] sm:$0xff]
        %v1495 = vld [vmem:[%s1492 + $0x10] sm:$0xff]
        %v1496 = vld [vmem:[%s1492 + $0x18] sm:$0xff]
        %v1497 = vld [vmem:[%s1492 + $0x20] sm:$0xff]
        %v1498 = vld [vmem:[%s1492 + $0x28] sm:$0xff]
        %v1499 = vld [vmem:[%s1492 + $0x30] sm:$0xff]
        %v1500 = vld [vmem:[%s1492 + $0x38] sm:$0xff]
        %v1501 = vld [vmem:[%s1492 + $0x40] sm:$0xff]
        %v1502 = vld [vmem:[%s1492 + $0x48] sm:$0xff]
        %v1503 = vld [vmem:[%s1492 + $0x50] sm:$0xff]
        %v1504 = vld [vmem:[%s1492 + $0x58] sm:$0xff]
        %v1505 = vld [vmem:[%s1492 + $0x60] sm:$0xff]
        %v1506 = vld [vmem:[%s1492 + $0x68] sm:$0xff]
        %v1507 = vld [vmem:[%s1492 + $0x70] sm:$0xff]
        %v1508 = vld [vmem:[%s1492 + $0x78] sm:$0xff]
        %1509 = vmatpush.msra.mxu0 %v1508
        %1510 = vmatpush.msra.mxu0 %v1507
        %1511 = vmatpush.msra.mxu0 %v1506
        %1512 = vmatpush.msra.mxu0 %v1505
        %1513 = vmatpush.msra.mxu0 %v1504
        %1514 = vmatpush.msra.mxu0 %v1503
        %1515 = vmatpush.msra.mxu0 %v1502
        %1516 = vmatpush.msra.mxu0 %v1501
        %1517 = vmatpush.msra.mxu0 %v1500
        %1518 = vmatpush.msra.mxu0 %v1499
        %1519 = vmatpush.msra.mxu0 %v1498
        %1520 = vmatpush.msra.mxu0 %v1497
        %1521 = vmatpush.msra.mxu0 %v1496
        %1522 = vmatpush.msra.mxu0 %v1495
        %1523 = vmatpush.msra.mxu0 %v1494
        %1524 = vmatpush.msra.mxu0 %v1493
        %1525 = vmatmul.f32.gmra.mxu0 %v1460
        %v1526 = vpop.f32.mrf.mxu0
        %v1527 = vadd.f32 0.0, %v1526
        %1528 = vmatmul.f32.gmra.mxu0 %v1461
        %v1529 = vpop.f32.mrf.mxu0
        %v1530 = vadd.f32 0.0, %v1529
        %1531 = vmatmul.f32.gmra.mxu0 %v1462
        %v1532 = vpop.f32.mrf.mxu0
        %v1533 = vadd.f32 0.0, %v1532
        %1534 = vmatmul.f32.gmra.mxu0 %v1463
        %v1535 = vpop.f32.mrf.mxu0
        %v1536 = vadd.f32 0.0, %v1535
        %1537 = vmatmul.f32.gmra.mxu0 %v1464
        %v1538 = vpop.f32.mrf.mxu0
        %v1539 = vadd.f32 0.0, %v1538
        %1540 = vmatmul.f32.gmra.mxu0 %v1465
        %v1541 = vpop.f32.mrf.mxu0
        %v1542 = vadd.f32 0.0, %v1541
        %1543 = vmatmul.f32.gmra.mxu0 %v1466
        %v1544 = vpop.f32.mrf.mxu0
        %v1545 = vadd.f32 0.0, %v1544
        %1546 = vmatmul.f32.gmra.mxu0 %v1467
        %v1547 = vpop.f32.mrf.mxu0
        %v1548 = vadd.f32 0.0, %v1547
        %1549 = vmatmul.f32.gmra.mxu0 %v1468
        %v1550 = vpop.f32.mrf.mxu0
        %v1551 = vadd.f32 0.0, %v1550
        %1552 = vmatmul.f32.gmra.mxu0 %v1469
        %v1553 = vpop.f32.mrf.mxu0
        %v1554 = vadd.f32 0.0, %v1553
        %1555 = vmatmul.f32.gmra.mxu0 %v1470
        %v1556 = vpop.f32.mrf.mxu0
        %v1557 = vadd.f32 0.0, %v1556
        %1558 = vmatmul.f32.gmra.mxu0 %v1471
        %v1559 = vpop.f32.mrf.mxu0
        %v1560 = vadd.f32 0.0, %v1559
        %1561 = vmatmul.f32.gmra.mxu0 %v1472
        %v1562 = vpop.f32.mrf.mxu0
        %v1563 = vadd.f32 0.0, %v1562
        %1564 = vmatmul.f32.gmra.mxu0 %v1473
        %v1565 = vpop.f32.mrf.mxu0
        %v1566 = vadd.f32 0.0, %v1565
        %1567 = vmatmul.f32.gmra.mxu0 %v1474
        %v1568 = vpop.f32.mrf.mxu0
        %v1569 = vadd.f32 0.0, %v1568
        %1570 = vmatmul.f32.gmra.mxu0 %v1475
        %v1571 = vpop.f32.mrf.mxu0
        %v1572 = vadd.f32 0.0, %v1571
        %1573 = vmatmul.f32.gmra.mxu0 %v1476
        %v1574 = vpop.f32.mrf.mxu0
        %v1575 = vadd.f32 0.0, %v1574
        %1576 = vmatmul.f32.gmra.mxu0 %v1477
        %v1577 = vpop.f32.mrf.mxu0
        %v1578 = vadd.f32 0.0, %v1577
        %1579 = vmatmul.f32.gmra.mxu0 %v1478
        %v1580 = vpop.f32.mrf.mxu0
        %v1581 = vadd.f32 0.0, %v1580
        %1582 = vmatmul.f32.gmra.mxu0 %v1479
        %v1583 = vpop.f32.mrf.mxu0
        %v1584 = vadd.f32 0.0, %v1583
        %1585 = vmatmul.f32.gmra.mxu0 %v1480
        %v1586 = vpop.f32.mrf.mxu0
        %v1587 = vadd.f32 0.0, %v1586
        %1588 = vmatmul.f32.gmra.mxu0 %v1481
        %v1589 = vpop.f32.mrf.mxu0
        %v1590 = vadd.f32 0.0, %v1589
        %1591 = vmatmul.f32.gmra.mxu0 %v1482
        %v1592 = vpop.f32.mrf.mxu0
        %v1593 = vadd.f32 0.0, %v1592
        %1594 = vmatmul.f32.gmra.mxu0 %v1483
        %v1595 = vpop.f32.mrf.mxu0
        %v1596 = vadd.f32 0.0, %v1595
        %1597 = vmatmul.f32.gmra.mxu0 %v1484
        %v1598 = vpop.f32.mrf.mxu0
        %v1599 = vadd.f32 0.0, %v1598
        %1600 = vmatmul.f32.gmra.mxu0 %v1485
        %v1601 = vpop.f32.mrf.mxu0
        %v1602 = vadd.f32 0.0, %v1601
        %1603 = vmatmul.f32.gmra.mxu0 %v1486
        %v1604 = vpop.f32.mrf.mxu0
        %v1605 = vadd.f32 0.0, %v1604
        %1606 = vmatmul.f32.gmra.mxu0 %v1487
        %v1607 = vpop.f32.mrf.mxu0
        %v1608 = vadd.f32 0.0, %v1607
        %1609 = vmatmul.f32.gmra.mxu0 %v1488
        %v1610 = vpop.f32.mrf.mxu0
        %v1611 = vadd.f32 0.0, %v1610
        %1612 = vmatmul.f32.gmra.mxu0 %v1489
        %v1613 = vpop.f32.mrf.mxu0
        %v1614 = vadd.f32 0.0, %v1613
        %1615 = vmatmul.f32.gmra.mxu0 %v1490
        %v1616 = vpop.f32.mrf.mxu0
        %v1617 = vadd.f32 0.0, %v1616
        %1618 = vmatmul.f32.gmra.mxu0 %v1491
        %v1619 = vpop.f32.mrf.mxu0
        %v1620 = vadd.f32 0.0, %v1619
        %1621 = vdwg.mxu0
        %v1622 = vld [vmem:[#allocation4] sm:$0xff]
        %v1623 = vld [vmem:[#allocation4 + $0x8] sm:$0xff]
        %v1624 = vld [vmem:[#allocation4 + $0x10] sm:$0xff]
        %v1625 = vld [vmem:[#allocation4 + $0x18] sm:$0xff]
        %v1626 = vld [vmem:[#allocation4 + $0x20] sm:$0xff]
        %v1627 = vld [vmem:[#allocation4 + $0x28] sm:$0xff]
        %v1628 = vld [vmem:[#allocation4 + $0x30] sm:$0xff]
        %v1629 = vld [vmem:[#allocation4 + $0x38] sm:$0xff]
        %v1630 = vld [vmem:[#allocation4 + $0x40] sm:$0xff]
        %v1631 = vld [vmem:[#allocation4 + $0x48] sm:$0xff]
        %v1632 = vld [vmem:[#allocation4 + $0x50] sm:$0xff]
        %v1633 = vld [vmem:[#allocation4 + $0x58] sm:$0xff]
        %v1634 = vld [vmem:[#allocation4 + $0x60] sm:$0xff]
        %v1635 = vld [vmem:[#allocation4 + $0x68] sm:$0xff]
        %v1636 = vld [vmem:[#allocation4 + $0x70] sm:$0xff]
        %v1637 = vld [vmem:[#allocation4 + $0x78] sm:$0xff]
        %v1638 = vld [vmem:[#allocation4 + $0x80] sm:$0xff]
        %v1639 = vld [vmem:[#allocation4 + $0x88] sm:$0xff]
        %v1640 = vld [vmem:[#allocation4 + $0x90] sm:$0xff]
        %v1641 = vld [vmem:[#allocation4 + $0x98] sm:$0xff]
        %v1642 = vld [vmem:[#allocation4 + $0xa0] sm:$0xff]
        %v1643 = vld [vmem:[#allocation4 + $0xa8] sm:$0xff]
        %v1644 = vld [vmem:[#allocation4 + $0xb0] sm:$0xff]
        %v1645 = vld [vmem:[#allocation4 + $0xb8] sm:$0xff]
        %v1646 = vld [vmem:[#allocation4 + $0xc0] sm:$0xff]
        %v1647 = vld [vmem:[#allocation4 + $0xc8] sm:$0xff]
        %v1648 = vld [vmem:[#allocation4 + $0xd0] sm:$0xff]
        %v1649 = vld [vmem:[#allocation4 + $0xd8] sm:$0xff]
        %v1650 = vld [vmem:[#allocation4 + $0xe0] sm:$0xff]
        %v1651 = vld [vmem:[#allocation4 + $0xe8] sm:$0xff]
        %v1652 = vld [vmem:[#allocation4 + $0xf0] sm:$0xff]
        %v1653 = vld [vmem:[#allocation4 + $0xf8] sm:$0xff]
        %v1654 = vadd.f32 %v1622, %v1527
        %v1655 = vadd.f32 %v1623, %v1530
        %v1656 = vadd.f32 %v1624, %v1533
        %v1657 = vadd.f32 %v1625, %v1536
        %v1658 = vadd.f32 %v1626, %v1539
        %v1659 = vadd.f32 %v1627, %v1542
        %v1660 = vadd.f32 %v1628, %v1545
        %v1661 = vadd.f32 %v1629, %v1548
        %v1662 = vadd.f32 %v1630, %v1551
        %v1663 = vadd.f32 %v1631, %v1554
        %v1664 = vadd.f32 %v1632, %v1557
        %v1665 = vadd.f32 %v1633, %v1560
        %v1666 = vadd.f32 %v1634, %v1563
        %v1667 = vadd.f32 %v1635, %v1566
        %v1668 = vadd.f32 %v1636, %v1569
        %v1669 = vadd.f32 %v1637, %v1572
        %v1670 = vadd.f32 %v1638, %v1575
        %v1671 = vadd.f32 %v1639, %v1578
        %v1672 = vadd.f32 %v1640, %v1581
        %v1673 = vadd.f32 %v1641, %v1584
        %v1674 = vadd.f32 %v1642, %v1587
        %v1675 = vadd.f32 %v1643, %v1590
        %v1676 = vadd.f32 %v1644, %v1593
        %v1677 = vadd.f32 %v1645, %v1596
        %v1678 = vadd.f32 %v1646, %v1599
        %v1679 = vadd.f32 %v1647, %v1602
        %v1680 = vadd.f32 %v1648, %v1605
        %v1681 = vadd.f32 %v1649, %v1608
        %v1682 = vadd.f32 %v1650, %v1611
        %v1683 = vadd.f32 %v1651, %v1614
        %v1684 = vadd.f32 %v1652, %v1617
        %v1685 = vadd.f32 %v1653, %v1620
        %1686 = vst [vmem:[#allocation4] sm:$0xff] %v1654
        %1687 = vst [vmem:[#allocation4 + $0x8] sm:$0xff] %v1655
        %1688 = vst [vmem:[#allocation4 + $0x10] sm:$0xff] %v1656
        %1689 = vst [vmem:[#allocation4 + $0x18] sm:$0xff] %v1657
        %1690 = vst [vmem:[#allocation4 + $0x20] sm:$0xff] %v1658
        %1691 = vst [vmem:[#allocation4 + $0x28] sm:$0xff] %v1659
        %1692 = vst [vmem:[#allocation4 + $0x30] sm:$0xff] %v1660
        %1693 = vst [vmem:[#allocation4 + $0x38] sm:$0xff] %v1661
        %1694 = vst [vmem:[#allocation4 + $0x40] sm:$0xff] %v1662
        %1695 = vst [vmem:[#allocation4 + $0x48] sm:$0xff] %v1663
        %1696 = vst [vmem:[#allocation4 + $0x50] sm:$0xff] %v1664
        %1697 = vst [vmem:[#allocation4 + $0x58] sm:$0xff] %v1665
        %1698 = vst [vmem:[#allocation4 + $0x60] sm:$0xff] %v1666
        %1699 = vst [vmem:[#allocation4 + $0x68] sm:$0xff] %v1667
        %1700 = vst [vmem:[#allocation4 + $0x70] sm:$0xff] %v1668
        %1701 = vst [vmem:[#allocation4 + $0x78] sm:$0xff] %v1669
        %1702 = vst [vmem:[#allocation4 + $0x80] sm:$0xff] %v1670
        %1703 = vst [vmem:[#allocation4 + $0x88] sm:$0xff] %v1671
        %1704 = vst [vmem:[#allocation4 + $0x90] sm:$0xff] %v1672
        %1705 = vst [vmem:[#allocation4 + $0x98] sm:$0xff] %v1673
        %1706 = vst [vmem:[#allocation4 + $0xa0] sm:$0xff] %v1674
        %1707 = vst [vmem:[#allocation4 + $0xa8] sm:$0xff] %v1675
        %1708 = vst [vmem:[#allocation4 + $0xb0] sm:$0xff] %v1676
        %1709 = vst [vmem:[#allocation4 + $0xb8] sm:$0xff] %v1677
        %1710 = vst [vmem:[#allocation4 + $0xc0] sm:$0xff] %v1678
        %1711 = vst [vmem:[#allocation4 + $0xc8] sm:$0xff] %v1679
        %1712 = vst [vmem:[#allocation4 + $0xd0] sm:$0xff] %v1680
        %1713 = vst [vmem:[#allocation4 + $0xd8] sm:$0xff] %v1681
        %1714 = vst [vmem:[#allocation4 + $0xe0] sm:$0xff] %v1682
        %1715 = vst [vmem:[#allocation4 + $0xe8] sm:$0xff] %v1683
        %1716 = vst [vmem:[#allocation4 + $0xf0] sm:$0xff] %v1684
        %1717 = vst [vmem:[#allocation4 + $0xf8] sm:$0xff] %v1685
        %v1718 = vld [vmem:[%s1201 + $0x2] sm:$0xff]
        %v1719 = vld [vmem:[%s1201 + $0xa] sm:$0xff]
        %v1720 = vld [vmem:[%s1201 + $0x1a] sm:$0xff]
        %v1721 = vld [vmem:[%s1201 + $0x22] sm:$0xff]
        %v1722 = vld [vmem:[%s1201 + $0x32] sm:$0xff]
        %v1723 = vld [vmem:[%s1201 + $0x3a] sm:$0xff]
        %v1724 = vld [vmem:[%s1201 + $0x4a] sm:$0xff]
        %v1725 = vld [vmem:[%s1201 + $0x52] sm:$0xff]
        %v1726 = vld [vmem:[%s1201 + $0x62] sm:$0xff]
        %v1727 = vld [vmem:[%s1201 + $0x6a] sm:$0xff]
        %v1728 = vld [vmem:[%s1201 + $0x7a] sm:$0xff]
        %v1729 = vld [vmem:[%s1201 + $0x82] sm:$0xff]
        %v1730 = vld [vmem:[%s1201 + $0x92] sm:$0xff]
        %v1731 = vld [vmem:[%s1201 + $0x9a] sm:$0xff]
        %v1732 = vld [vmem:[%s1201 + $0xaa] sm:$0xff]
        %v1733 = vld [vmem:[%s1201 + $0xb2] sm:$0xff]
        %v1734 = vld [vmem:[%s1201 + $0xc2] sm:$0xff]
        %v1735 = vld [vmem:[%s1201 + $0xca] sm:$0xff]
        %v1736 = vld [vmem:[%s1201 + $0xda] sm:$0xff]
        %v1737 = vld [vmem:[%s1201 + $0xe2] sm:$0xff]
        %v1738 = vld [vmem:[%s1201 + $0xf2] sm:$0xff]
        %v1739 = vld [vmem:[%s1201 + $0xfa] sm:$0xff]
        %v1740 = vld [vmem:[%s1201 + $0x10a] sm:$0xff]
        %v1741 = vld [vmem:[%s1201 + $0x112] sm:$0xff]
        %v1742 = vld [vmem:[%s1201 + $0x122] sm:$0xff]
        %v1743 = vld [vmem:[%s1201 + $0x12a] sm:$0xff]
        %v1744 = vld [vmem:[%s1201 + $0x13a] sm:$0xff]
        %v1745 = vld [vmem:[%s1201 + $0x142] sm:$0xff]
        %v1746 = vld [vmem:[%s1201 + $0x152] sm:$0xff]
        %v1747 = vld [vmem:[%s1201 + $0x15a] sm:$0xff]
        %v1748 = vld [vmem:[%s1201 + $0x16a] sm:$0xff]
        %v1749 = vld [vmem:[%s1201 + $0x172] sm:$0xff]
        %s1750 = scalar_lea.vmem %s173, 640
        %v1751 = vld [vmem:[%s1750] sm:$0xff]
        %v1752 = vld [vmem:[%s1750 + $0x8] sm:$0xff]
        %v1753 = vld [vmem:[%s1750 + $0x10] sm:$0xff]
        %v1754 = vld [vmem:[%s1750 + $0x18] sm:$0xff]
        %v1755 = vld [vmem:[%s1750 + $0x20] sm:$0xff]
        %v1756 = vld [vmem:[%s1750 + $0x28] sm:$0xff]
        %v1757 = vld [vmem:[%s1750 + $0x30] sm:$0xff]
        %v1758 = vld [vmem:[%s1750 + $0x38] sm:$0xff]
        %v1759 = vld [vmem:[%s1750 + $0x40] sm:$0xff]
        %v1760 = vld [vmem:[%s1750 + $0x48] sm:$0xff]
        %v1761 = vld [vmem:[%s1750 + $0x50] sm:$0xff]
        %v1762 = vld [vmem:[%s1750 + $0x58] sm:$0xff]
        %v1763 = vld [vmem:[%s1750 + $0x60] sm:$0xff]
        %v1764 = vld [vmem:[%s1750 + $0x68] sm:$0xff]
        %v1765 = vld [vmem:[%s1750 + $0x70] sm:$0xff]
        %v1766 = vld [vmem:[%s1750 + $0x78] sm:$0xff]
        %1767 = vmatpush.msra.mxu0 %v1766
        %1768 = vmatpush.msra.mxu0 %v1765
        %1769 = vmatpush.msra.mxu0 %v1764
        %1770 = vmatpush.msra.mxu0 %v1763
        %1771 = vmatpush.msra.mxu0 %v1762
        %1772 = vmatpush.msra.mxu0 %v1761
        %1773 = vmatpush.msra.mxu0 %v1760
        %1774 = vmatpush.msra.mxu0 %v1759
        %1775 = vmatpush.msra.mxu0 %v1758
        %1776 = vmatpush.msra.mxu0 %v1757
        %1777 = vmatpush.msra.mxu0 %v1756
        %1778 = vmatpush.msra.mxu0 %v1755
        %1779 = vmatpush.msra.mxu0 %v1754
        %1780 = vmatpush.msra.mxu0 %v1753
        %1781 = vmatpush.msra.mxu0 %v1752
        %1782 = vmatpush.msra.mxu0 %v1751
        %1783 = vmatmul.f32.gmra.mxu0 %v1718
        %v1784 = vpop.f32.mrf.mxu0
        %v1785 = vadd.f32 0.0, %v1784
        %1786 = vmatmul.f32.gmra.mxu0 %v1719
        %v1787 = vpop.f32.mrf.mxu0
        %v1788 = vadd.f32 0.0, %v1787
        %1789 = vmatmul.f32.gmra.mxu0 %v1720
        %v1790 = vpop.f32.mrf.mxu0
        %v1791 = vadd.f32 0.0, %v1790
        %1792 = vmatmul.f32.gmra.mxu0 %v1721
        %v1793 = vpop.f32.mrf.mxu0
        %v1794 = vadd.f32 0.0, %v1793
        %1795 = vmatmul.f32.gmra.mxu0 %v1722
        %v1796 = vpop.f32.mrf.mxu0
        %v1797 = vadd.f32 0.0, %v1796
        %1798 = vmatmul.f32.gmra.mxu0 %v1723
        %v1799 = vpop.f32.mrf.mxu0
        %v1800 = vadd.f32 0.0, %v1799
        %1801 = vmatmul.f32.gmra.mxu0 %v1724
        %v1802 = vpop.f32.mrf.mxu0
        %v1803 = vadd.f32 0.0, %v1802
        %1804 = vmatmul.f32.gmra.mxu0 %v1725
        %v1805 = vpop.f32.mrf.mxu0
        %v1806 = vadd.f32 0.0, %v1805
        %1807 = vmatmul.f32.gmra.mxu0 %v1726
        %v1808 = vpop.f32.mrf.mxu0
        %v1809 = vadd.f32 0.0, %v1808
        %1810 = vmatmul.f32.gmra.mxu0 %v1727
        %v1811 = vpop.f32.mrf.mxu0
        %v1812 = vadd.f32 0.0, %v1811
        %1813 = vmatmul.f32.gmra.mxu0 %v1728
        %v1814 = vpop.f32.mrf.mxu0
        %v1815 = vadd.f32 0.0, %v1814
        %1816 = vmatmul.f32.gmra.mxu0 %v1729
        %v1817 = vpop.f32.mrf.mxu0
        %v1818 = vadd.f32 0.0, %v1817
        %1819 = vmatmul.f32.gmra.mxu0 %v1730
        %v1820 = vpop.f32.mrf.mxu0
        %v1821 = vadd.f32 0.0, %v1820
        %1822 = vmatmul.f32.gmra.mxu0 %v1731
        %v1823 = vpop.f32.mrf.mxu0
        %v1824 = vadd.f32 0.0, %v1823
        %1825 = vmatmul.f32.gmra.mxu0 %v1732
        %v1826 = vpop.f32.mrf.mxu0
        %v1827 = vadd.f32 0.0, %v1826
        %1828 = vmatmul.f32.gmra.mxu0 %v1733
        %v1829 = vpop.f32.mrf.mxu0
        %v1830 = vadd.f32 0.0, %v1829
        %1831 = vmatmul.f32.gmra.mxu0 %v1734
        %v1832 = vpop.f32.mrf.mxu0
        %v1833 = vadd.f32 0.0, %v1832
        %1834 = vmatmul.f32.gmra.mxu0 %v1735
        %v1835 = vpop.f32.mrf.mxu0
        %v1836 = vadd.f32 0.0, %v1835
        %1837 = vmatmul.f32.gmra.mxu0 %v1736
        %v1838 = vpop.f32.mrf.mxu0
        %v1839 = vadd.f32 0.0, %v1838
        %1840 = vmatmul.f32.gmra.mxu0 %v1737
        %v1841 = vpop.f32.mrf.mxu0
        %v1842 = vadd.f32 0.0, %v1841
        %1843 = vmatmul.f32.gmra.mxu0 %v1738
        %v1844 = vpop.f32.mrf.mxu0
        %v1845 = vadd.f32 0.0, %v1844
        %1846 = vmatmul.f32.gmra.mxu0 %v1739
        %v1847 = vpop.f32.mrf.mxu0
        %v1848 = vadd.f32 0.0, %v1847
        %1849 = vmatmul.f32.gmra.mxu0 %v1740
        %v1850 = vpop.f32.mrf.mxu0
        %v1851 = vadd.f32 0.0, %v1850
        %1852 = vmatmul.f32.gmra.mxu0 %v1741
        %v1853 = vpop.f32.mrf.mxu0
        %v1854 = vadd.f32 0.0, %v1853
        %1855 = vmatmul.f32.gmra.mxu0 %v1742
        %v1856 = vpop.f32.mrf.mxu0
        %v1857 = vadd.f32 0.0, %v1856
        %1858 = vmatmul.f32.gmra.mxu0 %v1743
        %v1859 = vpop.f32.mrf.mxu0
        %v1860 = vadd.f32 0.0, %v1859
        %1861 = vmatmul.f32.gmra.mxu0 %v1744
        %v1862 = vpop.f32.mrf.mxu0
        %v1863 = vadd.f32 0.0, %v1862
        %1864 = vmatmul.f32.gmra.mxu0 %v1745
        %v1865 = vpop.f32.mrf.mxu0
        %v1866 = vadd.f32 0.0, %v1865
        %1867 = vmatmul.f32.gmra.mxu0 %v1746
        %v1868 = vpop.f32.mrf.mxu0
        %v1869 = vadd.f32 0.0, %v1868
        %1870 = vmatmul.f32.gmra.mxu0 %v1747
        %v1871 = vpop.f32.mrf.mxu0
        %v1872 = vadd.f32 0.0, %v1871
        %1873 = vmatmul.f32.gmra.mxu0 %v1748
        %v1874 = vpop.f32.mrf.mxu0
        %v1875 = vadd.f32 0.0, %v1874
        %1876 = vmatmul.f32.gmra.mxu0 %v1749
        %v1877 = vpop.f32.mrf.mxu0
        %v1878 = vadd.f32 0.0, %v1877
        %1879 = vdwg.mxu0
        %v1880 = vld [vmem:[#allocation4] sm:$0xff]
        %v1881 = vld [vmem:[#allocation4 + $0x8] sm:$0xff]
        %v1882 = vld [vmem:[#allocation4 + $0x10] sm:$0xff]
        %v1883 = vld [vmem:[#allocation4 + $0x18] sm:$0xff]
        %v1884 = vld [vmem:[#allocation4 + $0x20] sm:$0xff]
        %v1885 = vld [vmem:[#allocation4 + $0x28] sm:$0xff]
        %v1886 = vld [vmem:[#allocation4 + $0x30] sm:$0xff]
        %v1887 = vld [vmem:[#allocation4 + $0x38] sm:$0xff]
        %v1888 = vld [vmem:[#allocation4 + $0x40] sm:$0xff]
        %v1889 = vld [vmem:[#allocation4 + $0x48] sm:$0xff]
        %v1890 = vld [vmem:[#allocation4 + $0x50] sm:$0xff]
        %v1891 = vld [vmem:[#allocation4 + $0x58] sm:$0xff]
        %v1892 = vld [vmem:[#allocation4 + $0x60] sm:$0xff]
        %v1893 = vld [vmem:[#allocation4 + $0x68] sm:$0xff]
        %v1894 = vld [vmem:[#allocation4 + $0x70] sm:$0xff]
        %v1895 = vld [vmem:[#allocation4 + $0x78] sm:$0xff]
        %v1896 = vld [vmem:[#allocation4 + $0x80] sm:$0xff]
        %v1897 = vld [vmem:[#allocation4 + $0x88] sm:$0xff]
        %v1898 = vld [vmem:[#allocation4 + $0x90] sm:$0xff]
        %v1899 = vld [vmem:[#allocation4 + $0x98] sm:$0xff]
        %v1900 = vld [vmem:[#allocation4 + $0xa0] sm:$0xff]
        %v1901 = vld [vmem:[#allocation4 + $0xa8] sm:$0xff]
        %v1902 = vld [vmem:[#allocation4 + $0xb0] sm:$0xff]
        %v1903 = vld [vmem:[#allocation4 + $0xb8] sm:$0xff]
        %v1904 = vld [vmem:[#allocation4 + $0xc0] sm:$0xff]
        %v1905 = vld [vmem:[#allocation4 + $0xc8] sm:$0xff]
        %v1906 = vld [vmem:[#allocation4 + $0xd0] sm:$0xff]
        %v1907 = vld [vmem:[#allocation4 + $0xd8] sm:$0xff]
        %v1908 = vld [vmem:[#allocation4 + $0xe0] sm:$0xff]
        %v1909 = vld [vmem:[#allocation4 + $0xe8] sm:$0xff]
        %v1910 = vld [vmem:[#allocation4 + $0xf0] sm:$0xff]
        %v1911 = vld [vmem:[#allocation4 + $0xf8] sm:$0xff]
        %v1912 = vadd.f32 %v1880, %v1785
        %v1913 = vadd.f32 %v1881, %v1788
        %v1914 = vadd.f32 %v1882, %v1791
        %v1915 = vadd.f32 %v1883, %v1794
        %v1916 = vadd.f32 %v1884, %v1797
        %v1917 = vadd.f32 %v1885, %v1800
        %v1918 = vadd.f32 %v1886, %v1803
        %v1919 = vadd.f32 %v1887, %v1806
        %v1920 = vadd.f32 %v1888, %v1809
        %v1921 = vadd.f32 %v1889, %v1812
        %v1922 = vadd.f32 %v1890, %v1815
        %v1923 = vadd.f32 %v1891, %v1818
        %v1924 = vadd.f32 %v1892, %v1821
        %v1925 = vadd.f32 %v1893, %v1824
        %v1926 = vadd.f32 %v1894, %v1827
        %v1927 = vadd.f32 %v1895, %v1830
        %v1928 = vadd.f32 %v1896, %v1833
        %v1929 = vadd.f32 %v1897, %v1836
        %v1930 = vadd.f32 %v1898, %v1839
        %v1931 = vadd.f32 %v1899, %v1842
        %v1932 = vadd.f32 %v1900, %v1845
        %v1933 = vadd.f32 %v1901, %v1848
        %v1934 = vadd.f32 %v1902, %v1851
        %v1935 = vadd.f32 %v1903, %v1854
        %v1936 = vadd.f32 %v1904, %v1857
        %v1937 = vadd.f32 %v1905, %v1860
        %v1938 = vadd.f32 %v1906, %v1863
        %v1939 = vadd.f32 %v1907, %v1866
        %v1940 = vadd.f32 %v1908, %v1869
        %v1941 = vadd.f32 %v1909, %v1872
        %v1942 = vadd.f32 %v1910, %v1875
        %v1943 = vadd.f32 %v1911, %v1878
        %1944 = vst [vmem:[#allocation4] sm:$0xff] %v1912
        %1945 = vst [vmem:[#allocation4 + $0x8] sm:$0xff] %v1913
        %1946 = vst [vmem:[#allocation4 + $0x10] sm:$0xff] %v1914
        %1947 = vst [vmem:[#allocation4 + $0x18] sm:$0xff] %v1915
        %1948 = vst [vmem:[#allocation4 + $0x20] sm:$0xff] %v1916
        %1949 = vst [vmem:[#allocation4 + $0x28] sm:$0xff] %v1917
        %1950 = vst [vmem:[#allocation4 + $0x30] sm:$0xff] %v1918
        %1951 = vst [vmem:[#allocation4 + $0x38] sm:$0xff] %v1919
        %1952 = vst [vmem:[#allocation4 + $0x40] sm:$0xff] %v1920
        %1953 = vst [vmem:[#allocation4 + $0x48] sm:$0xff] %v1921
        %1954 = vst [vmem:[#allocation4 + $0x50] sm:$0xff] %v1922
        %1955 = vst [vmem:[#allocation4 + $0x58] sm:$0xff] %v1923
        %1956 = vst [vmem:[#allocation4 + $0x60] sm:$0xff] %v1924
        %1957 = vst [vmem:[#allocation4 + $0x68] sm:$0xff] %v1925
        %1958 = vst [vmem:[#allocation4 + $0x70] sm:$0xff] %v1926
        %1959 = vst [vmem:[#allocation4 + $0x78] sm:$0xff] %v1927
        %1960 = vst [vmem:[#allocation4 + $0x80] sm:$0xff] %v1928
        %1961 = vst [vmem:[#allocation4 + $0x88] sm:$0xff] %v1929
        %1962 = vst [vmem:[#allocation4 + $0x90] sm:$0xff] %v1930
        %1963 = vst [vmem:[#allocation4 + $0x98] sm:$0xff] %v1931
        %1964 = vst [vmem:[#allocation4 + $0xa0] sm:$0xff] %v1932
        %1965 = vst [vmem:[#allocation4 + $0xa8] sm:$0xff] %v1933
        %1966 = vst [vmem:[#allocation4 + $0xb0] sm:$0xff] %v1934
        %1967 = vst [vmem:[#allocation4 + $0xb8] sm:$0xff] %v1935
        %1968 = vst [vmem:[#allocation4 + $0xc0] sm:$0xff] %v1936
        %1969 = vst [vmem:[#allocation4 + $0xc8] sm:$0xff] %v1937
        %1970 = vst [vmem:[#allocation4 + $0xd0] sm:$0xff] %v1938
        %1971 = vst [vmem:[#allocation4 + $0xd8] sm:$0xff] %v1939
        %1972 = vst [vmem:[#allocation4 + $0xe0] sm:$0xff] %v1940
        %1973 = vst [vmem:[#allocation4 + $0xe8] sm:$0xff] %v1941
        %1974 = vst [vmem:[#allocation4 + $0xf0] sm:$0xff] %v1942
        %1975 = vst [vmem:[#allocation4 + $0xf8] sm:$0xff] %v1943
        %s1976 = sadd.s32 48, %s489
        %s1977 = scalar_lea.vmem [#allocation2], %s1976
        %v1978 = vld [vmem:[%s1977] sm:$0xff]
        %v1979 = vld [vmem:[%s1977 + $0x8] sm:$0xff]
        %v1980 = vld [vmem:[%s1977 + $0x18] sm:$0xff]
        %v1981 = vld [vmem:[%s1977 + $0x20] sm:$0xff]
        %v1982 = vld [vmem:[%s1977 + $0x30] sm:$0xff]
        %v1983 = vld [vmem:[%s1977 + $0x38] sm:$0xff]
        %v1984 = vld [vmem:[%s1977 + $0x48] sm:$0xff]
        %v1985 = vld [vmem:[%s1977 + $0x50] sm:$0xff]
        %v1986 = vld [vmem:[%s1977 + $0x60] sm:$0xff]
        %v1987 = vld [vmem:[%s1977 + $0x68] sm:$0xff]
        %v1988 = vld [vmem:[%s1977 + $0x78] sm:$0xff]
        %v1989 = vld [vmem:[%s1977 + $0x80] sm:$0xff]
        %v1990 = vld [vmem:[%s1977 + $0x90] sm:$0xff]
        %v1991 = vld [vmem:[%s1977 + $0x98] sm:$0xff]
        %v1992 = vld [vmem:[%s1977 + $0xa8] sm:$0xff]
        %v1993 = vld [vmem:[%s1977 + $0xb0] sm:$0xff]
        %v1994 = vld [vmem:[%s1977 + $0xc0] sm:$0xff]
        %v1995 = vld [vmem:[%s1977 + $0xc8] sm:$0xff]
        %v1996 = vld [vmem:[%s1977 + $0xd8] sm:$0xff]
        %v1997 = vld [vmem:[%s1977 + $0xe0] sm:$0xff]
        %v1998 = vld [vmem:[%s1977 + $0xf0] sm:$0xff]
        %v1999 = vld [vmem:[%s1977 + $0xf8] sm:$0xff]
        %v2000 = vld [vmem:[%s1977 + $0x108] sm:$0xff]
        %v2001 = vld [vmem:[%s1977 + $0x110] sm:$0xff]
        %v2002 = vld [vmem:[%s1977 + $0x120] sm:$0xff]
        %v2003 = vld [vmem:[%s1977 + $0x128] sm:$0xff]
        %v2004 = vld [vmem:[%s1977 + $0x138] sm:$0xff]
        %v2005 = vld [vmem:[%s1977 + $0x140] sm:$0xff]
        %v2006 = vld [vmem:[%s1977 + $0x150] sm:$0xff]
        %v2007 = vld [vmem:[%s1977 + $0x158] sm:$0xff]
        %v2008 = vld [vmem:[%s1977 + $0x168] sm:$0xff]
        %v2009 = vld [vmem:[%s1977 + $0x170] sm:$0xff]
        %s2010 = scalar_lea.vmem %s173, 768
        %v2011 = vld [vmem:[%s2010] sm:$0xff]
        %v2012 = vld [vmem:[%s2010 + $0x8] sm:$0xff]
        %v2013 = vld [vmem:[%s2010 + $0x10] sm:$0xff]
        %v2014 = vld [vmem:[%s2010 + $0x18] sm:$0xff]
        %v2015 = vld [vmem:[%s2010 + $0x20] sm:$0xff]
        %v2016 = vld [vmem:[%s2010 + $0x28] sm:$0xff]
        %v2017 = vld [vmem:[%s2010 + $0x30] sm:$0xff]
        %v2018 = vld [vmem:[%s2010 + $0x38] sm:$0xff]
        %v2019 = vld [vmem:[%s2010 + $0x40] sm:$0xff]
        %v2020 = vld [vmem:[%s2010 + $0x48] sm:$0xff]
        %v2021 = vld [vmem:[%s2010 + $0x50] sm:$0xff]
        %v2022 = vld [vmem:[%s2010 + $0x58] sm:$0xff]
        %v2023 = vld [vmem:[%s2010 + $0x60] sm:$0xff]
        %v2024 = vld [vmem:[%s2010 + $0x68] sm:$0xff]
        %v2025 = vld [vmem:[%s2010 + $0x70] sm:$0xff]
        %v2026 = vld [vmem:[%s2010 + $0x78] sm:$0xff]
        %2027 = vmatpush.msra.mxu0 %v2026
        %2028 = vmatpush.msra.mxu0 %v2025
        %2029 = vmatpush.msra.mxu0 %v2024
        %2030 = vmatpush.msra.mxu0 %v2023
        %2031 = vmatpush.msra.mxu0 %v2022
        %2032 = vmatpush.msra.mxu0 %v2021
        %2033 = vmatpush.msra.mxu0 %v2020
        %2034 = vmatpush.msra.mxu0 %v2019
        %2035 = vmatpush.msra.mxu0 %v2018
        %2036 = vmatpush.msra.mxu0 %v2017
        %2037 = vmatpush.msra.mxu0 %v2016
        %2038 = vmatpush.msra.mxu0 %v2015
        %2039 = vmatpush.msra.mxu0 %v2014
        %2040 = vmatpush.msra.mxu0 %v2013
        %2041 = vmatpush.msra.mxu0 %v2012
        %2042 = vmatpush.msra.mxu0 %v2011
        %2043 = vmatmul.f32.gmra.mxu0 %v1978
        %v2044 = vpop.f32.mrf.mxu0
        %v2045 = vadd.f32 0.0, %v2044
        %2046 = vmatmul.f32.gmra.mxu0 %v1979
        %v2047 = vpop.f32.mrf.mxu0
        %v2048 = vadd.f32 0.0, %v2047
        %2049 = vmatmul.f32.gmra.mxu0 %v1980
        %v2050 = vpop.f32.mrf.mxu0
        %v2051 = vadd.f32 0.0, %v2050
        %2052 = vmatmul.f32.gmra.mxu0 %v1981
        %v2053 = vpop.f32.mrf.mxu0
        %v2054 = vadd.f32 0.0, %v2053
        %2055 = vmatmul.f32.gmra.mxu0 %v1982
        %v2056 = vpop.f32.mrf.mxu0
        %v2057 = vadd.f32 0.0, %v2056
        %2058 = vmatmul.f32.gmra.mxu0 %v1983
        %v2059 = vpop.f32.mrf.mxu0
        %v2060 = vadd.f32 0.0, %v2059
        %2061 = vmatmul.f32.gmra.mxu0 %v1984
        %v2062 = vpop.f32.mrf.mxu0
        %v2063 = vadd.f32 0.0, %v2062
        %2064 = vmatmul.f32.gmra.mxu0 %v1985
        %v2065 = vpop.f32.mrf.mxu0
        %v2066 = vadd.f32 0.0, %v2065
        %2067 = vmatmul.f32.gmra.mxu0 %v1986
        %v2068 = vpop.f32.mrf.mxu0
        %v2069 = vadd.f32 0.0, %v2068
        %2070 = vmatmul.f32.gmra.mxu0 %v1987
        %v2071 = vpop.f32.mrf.mxu0
        %v2072 = vadd.f32 0.0, %v2071
        %2073 = vmatmul.f32.gmra.mxu0 %v1988
        %v2074 = vpop.f32.mrf.mxu0
        %v2075 = vadd.f32 0.0, %v2074
        %2076 = vmatmul.f32.gmra.mxu0 %v1989
        %v2077 = vpop.f32.mrf.mxu0
        %v2078 = vadd.f32 0.0, %v2077
        %2079 = vmatmul.f32.gmra.mxu0 %v1990
        %v2080 = vpop.f32.mrf.mxu0
        %v2081 = vadd.f32 0.0, %v2080
        %2082 = vmatmul.f32.gmra.mxu0 %v1991
        %v2083 = vpop.f32.mrf.mxu0
        %v2084 = vadd.f32 0.0, %v2083
        %2085 = vmatmul.f32.gmra.mxu0 %v1992
        %v2086 = vpop.f32.mrf.mxu0
        %v2087 = vadd.f32 0.0, %v2086
        %2088 = vmatmul.f32.gmra.mxu0 %v1993
        %v2089 = vpop.f32.mrf.mxu0
        %v2090 = vadd.f32 0.0, %v2089
        %2091 = vmatmul.f32.gmra.mxu0 %v1994
        %v2092 = vpop.f32.mrf.mxu0
        %v2093 = vadd.f32 0.0, %v2092
        %2094 = vmatmul.f32.gmra.mxu0 %v1995
        %v2095 = vpop.f32.mrf.mxu0
        %v2096 = vadd.f32 0.0, %v2095
        %2097 = vmatmul.f32.gmra.mxu0 %v1996
        %v2098 = vpop.f32.mrf.mxu0
        %v2099 = vadd.f32 0.0, %v2098
        %2100 = vmatmul.f32.gmra.mxu0 %v1997
        %v2101 = vpop.f32.mrf.mxu0
        %v2102 = vadd.f32 0.0, %v2101
        %2103 = vmatmul.f32.gmra.mxu0 %v1998
        %v2104 = vpop.f32.mrf.mxu0
        %v2105 = vadd.f32 0.0, %v2104
        %2106 = vmatmul.f32.gmra.mxu0 %v1999
        %v2107 = vpop.f32.mrf.mxu0
        %v2108 = vadd.f32 0.0, %v2107
        %2109 = vmatmul.f32.gmra.mxu0 %v2000
        %v2110 = vpop.f32.mrf.mxu0
        %v2111 = vadd.f32 0.0, %v2110
        %2112 = vmatmul.f32.gmra.mxu0 %v2001
        %v2113 = vpop.f32.mrf.mxu0
        %v2114 = vadd.f32 0.0, %v2113
        %2115 = vmatmul.f32.gmra.mxu0 %v2002
        %v2116 = vpop.f32.mrf.mxu0
        %v2117 = vadd.f32 0.0, %v2116
        %2118 = vmatmul.f32.gmra.mxu0 %v2003
        %v2119 = vpop.f32.mrf.mxu0
        %v2120 = vadd.f32 0.0, %v2119
        %2121 = vmatmul.f32.gmra.mxu0 %v2004
        %v2122 = vpop.f32.mrf.mxu0
        %v2123 = vadd.f32 0.0, %v2122
        %2124 = vmatmul.f32.gmra.mxu0 %v2005
        %v2125 = vpop.f32.mrf.mxu0
        %v2126 = vadd.f32 0.0, %v2125
        %2127 = vmatmul.f32.gmra.mxu0 %v2006
        %v2128 = vpop.f32.mrf.mxu0
        %v2129 = vadd.f32 0.0, %v2128
        %2130 = vmatmul.f32.gmra.mxu0 %v2007
        %v2131 = vpop.f32.mrf.mxu0
        %v2132 = vadd.f32 0.0, %v2131
        %2133 = vmatmul.f32.gmra.mxu0 %v2008
        %v2134 = vpop.f32.mrf.mxu0
        %v2135 = vadd.f32 0.0, %v2134
        %2136 = vmatmul.f32.gmra.mxu0 %v2009
        %v2137 = vpop.f32.mrf.mxu0
        %v2138 = vadd.f32 0.0, %v2137
        %2139 = vdwg.mxu0
        %v2140 = vld [vmem:[#allocation4] sm:$0xff]
        %v2141 = vld [vmem:[#allocation4 + $0x8] sm:$0xff]
        %v2142 = vld [vmem:[#allocation4 + $0x10] sm:$0xff]
        %v2143 = vld [vmem:[#allocation4 + $0x18] sm:$0xff]
        %v2144 = vld [vmem:[#allocation4 + $0x20] sm:$0xff]
        %v2145 = vld [vmem:[#allocation4 + $0x28] sm:$0xff]
        %v2146 = vld [vmem:[#allocation4 + $0x30] sm:$0xff]
        %v2147 = vld [vmem:[#allocation4 + $0x38] sm:$0xff]
        %v2148 = vld [vmem:[#allocation4 + $0x40] sm:$0xff]
        %v2149 = vld [vmem:[#allocation4 + $0x48] sm:$0xff]
        %v2150 = vld [vmem:[#allocation4 + $0x50] sm:$0xff]
        %v2151 = vld [vmem:[#allocation4 + $0x58] sm:$0xff]
        %v2152 = vld [vmem:[#allocation4 + $0x60] sm:$0xff]
        %v2153 = vld [vmem:[#allocation4 + $0x68] sm:$0xff]
        %v2154 = vld [vmem:[#allocation4 + $0x70] sm:$0xff]
        %v2155 = vld [vmem:[#allocation4 + $0x78] sm:$0xff]
        %v2156 = vld [vmem:[#allocation4 + $0x80] sm:$0xff]
        %v2157 = vld [vmem:[#allocation4 + $0x88] sm:$0xff]
        %v2158 = vld [vmem:[#allocation4 + $0x90] sm:$0xff]
        %v2159 = vld [vmem:[#allocation4 + $0x98] sm:$0xff]
        %v2160 = vld [vmem:[#allocation4 + $0xa0] sm:$0xff]
        %v2161 = vld [vmem:[#allocation4 + $0xa8] sm:$0xff]
        %v2162 = vld [vmem:[#allocation4 + $0xb0] sm:$0xff]
        %v2163 = vld [vmem:[#allocation4 + $0xb8] sm:$0xff]
        %v2164 = vld [vmem:[#allocation4 + $0xc0] sm:$0xff]
        %v2165 = vld [vmem:[#allocation4 + $0xc8] sm:$0xff]
        %v2166 = vld [vmem:[#allocation4 + $0xd0] sm:$0xff]
        %v2167 = vld [vmem:[#allocation4 + $0xd8] sm:$0xff]
        %v2168 = vld [vmem:[#allocation4 + $0xe0] sm:$0xff]
        %v2169 = vld [vmem:[#allocation4 + $0xe8] sm:$0xff]
        %v2170 = vld [vmem:[#allocation4 + $0xf0] sm:$0xff]
        %v2171 = vld [vmem:[#allocation4 + $0xf8] sm:$0xff]
        %v2172 = vadd.f32 %v2140, %v2045
        %v2173 = vadd.f32 %v2141, %v2048
        %v2174 = vadd.f32 %v2142, %v2051
        %v2175 = vadd.f32 %v2143, %v2054
        %v2176 = vadd.f32 %v2144, %v2057
        %v2177 = vadd.f32 %v2145, %v2060
        %v2178 = vadd.f32 %v2146, %v2063
        %v2179 = vadd.f32 %v2147, %v2066
        %v2180 = vadd.f32 %v2148, %v2069
        %v2181 = vadd.f32 %v2149, %v2072
        %v2182 = vadd.f32 %v2150, %v2075
        %v2183 = vadd.f32 %v2151, %v2078
        %v2184 = vadd.f32 %v2152, %v2081
        %v2185 = vadd.f32 %v2153, %v2084
        %v2186 = vadd.f32 %v2154, %v2087
        %v2187 = vadd.f32 %v2155, %v2090
        %v2188 = vadd.f32 %v2156, %v2093
        %v2189 = vadd.f32 %v2157, %v2096
        %v2190 = vadd.f32 %v2158, %v2099
        %v2191 = vadd.f32 %v2159, %v2102
        %v2192 = vadd.f32 %v2160, %v2105
        %v2193 = vadd.f32 %v2161, %v2108
        %v2194 = vadd.f32 %v2162, %v2111
        %v2195 = vadd.f32 %v2163, %v2114
        %v2196 = vadd.f32 %v2164, %v2117
        %v2197 = vadd.f32 %v2165, %v2120
        %v2198 = vadd.f32 %v2166, %v2123
        %v2199 = vadd.f32 %v2167, %v2126
        %v2200 = vadd.f32 %v2168, %v2129
        %v2201 = vadd.f32 %v2169, %v2132
        %v2202 = vadd.f32 %v2170, %v2135
        %v2203 = vadd.f32 %v2171, %v2138
        %2204 = vst [vmem:[#allocation4] sm:$0xff] %v2172
        %2205 = vst [vmem:[#allocation4 + $0x8] sm:$0xff] %v2173
        %2206 = vst [vmem:[#allocation4 + $0x10] sm:$0xff] %v2174
        %2207 = vst [vmem:[#allocation4 + $0x18] sm:$0xff] %v2175
        %2208 = vst [vmem:[#allocation4 + $0x20] sm:$0xff] %v2176
        %2209 = vst [vmem:[#allocation4 + $0x28] sm:$0xff] %v2177
        %2210 = vst [vmem:[#allocation4 + $0x30] sm:$0xff] %v2178
        %2211 = vst [vmem:[#allocation4 + $0x38] sm:$0xff] %v2179
        %2212 = vst [vmem:[#allocation4 + $0x40] sm:$0xff] %v2180
        %2213 = vst [vmem:[#allocation4 + $0x48] sm:$0xff] %v2181
        %2214 = vst [vmem:[#allocation4 + $0x50] sm:$0xff] %v2182
        %2215 = vst [vmem:[#allocation4 + $0x58] sm:$0xff] %v2183
        %2216 = vst [vmem:[#allocation4 + $0x60] sm:$0xff] %v2184
        %2217 = vst [vmem:[#allocation4 + $0x68] sm:$0xff] %v2185
        %2218 = vst [vmem:[#allocation4 + $0x70] sm:$0xff] %v2186
        %2219 = vst [vmem:[#allocation4 + $0x78] sm:$0xff] %v2187
        %2220 = vst [vmem:[#allocation4 + $0x80] sm:$0xff] %v2188
        %2221 = vst [vmem:[#allocation4 + $0x88] sm:$0xff] %v2189
        %2222 = vst [vmem:[#allocation4 + $0x90] sm:$0xff] %v2190
        %2223 = vst [vmem:[#allocation4 + $0x98] sm:$0xff] %v2191
        %2224 = vst [vmem:[#allocation4 + $0xa0] sm:$0xff] %v2192
        %2225 = vst [vmem:[#allocation4 + $0xa8] sm:$0xff] %v2193
        %2226 = vst [vmem:[#allocation4 + $0xb0] sm:$0xff] %v2194
        %2227 = vst [vmem:[#allocation4 + $0xb8] sm:$0xff] %v2195
        %2228 = vst [vmem:[#allocation4 + $0xc0] sm:$0xff] %v2196
        %2229 = vst [vmem:[#allocation4 + $0xc8] sm:$0xff] %v2197
        %2230 = vst [vmem:[#allocation4 + $0xd0] sm:$0xff] %v2198
        %2231 = vst [vmem:[#allocation4 + $0xd8] sm:$0xff] %v2199
        %2232 = vst [vmem:[#allocation4 + $0xe0] sm:$0xff] %v2200
        %2233 = vst [vmem:[#allocation4 + $0xe8] sm:$0xff] %v2201
        %2234 = vst [vmem:[#allocation4 + $0xf0] sm:$0xff] %v2202
        %2235 = vst [vmem:[#allocation4 + $0xf8] sm:$0xff] %v2203
        %v2236 = vld [vmem:[%s1977 + $0x1] sm:$0xff]
        %v2237 = vld [vmem:[%s1977 + $0x9] sm:$0xff]
        %v2238 = vld [vmem:[%s1977 + $0x19] sm:$0xff]
        %v2239 = vld [vmem:[%s1977 + $0x21] sm:$0xff]
        %v2240 = vld [vmem:[%s1977 + $0x31] sm:$0xff]
        %v2241 = vld [vmem:[%s1977 + $0x39] sm:$0xff]
        %v2242 = vld [vmem:[%s1977 + $0x49] sm:$0xff]
        %v2243 = vld [vmem:[%s1977 + $0x51] sm:$0xff]
        %v2244 = vld [vmem:[%s1977 + $0x61] sm:$0xff]
        %v2245 = vld [vmem:[%s1977 + $0x69] sm:$0xff]
        %v2246 = vld [vmem:[%s1977 + $0x79] sm:$0xff]
        %v2247 = vld [vmem:[%s1977 + $0x81] sm:$0xff]
        %v2248 = vld [vmem:[%s1977 + $0x91] sm:$0xff]
        %v2249 = vld [vmem:[%s1977 + $0x99] sm:$0xff]
        %v2250 = vld [vmem:[%s1977 + $0xa9] sm:$0xff]
        %v2251 = vld [vmem:[%s1977 + $0xb1] sm:$0xff]
        %v2252 = vld [vmem:[%s1977 + $0xc1] sm:$0xff]
        %v2253 = vld [vmem:[%s1977 + $0xc9] sm:$0xff]
        %v2254 = vld [vmem:[%s1977 + $0xd9] sm:$0xff]
        %v2255 = vld [vmem:[%s1977 + $0xe1] sm:$0xff]
        %v2256 = vld [vmem:[%s1977 + $0xf1] sm:$0xff]
        %v2257 = vld [vmem:[%s1977 + $0xf9] sm:$0xff]
        %v2258 = vld [vmem:[%s1977 + $0x109] sm:$0xff]
        %v2259 = vld [vmem:[%s1977 + $0x111] sm:$0xff]
        %v2260 = vld [vmem:[%s1977 + $0x121] sm:$0xff]
        %v2261 = vld [vmem:[%s1977 + $0x129] sm:$0xff]
        %v2262 = vld [vmem:[%s1977 + $0x139] sm:$0xff]
        %v2263 = vld [vmem:[%s1977 + $0x141] sm:$0xff]
        %v2264 = vld [vmem:[%s1977 + $0x151] sm:$0xff]
        %v2265 = vld [vmem:[%s1977 + $0x159] sm:$0xff]
        %v2266 = vld [vmem:[%s1977 + $0x169] sm:$0xff]
        %v2267 = vld [vmem:[%s1977 + $0x171] sm:$0xff]
        %s2268 = scalar_lea.vmem %s173, 896
        %v2269 = vld [vmem:[%s2268] sm:$0xff]
        %v2270 = vld [vmem:[%s2268 + $0x8] sm:$0xff]
        %v2271 = vld [vmem:[%s2268 + $0x10] sm:$0xff]
        %v2272 = vld [vmem:[%s2268 + $0x18] sm:$0xff]
        %v2273 = vld [vmem:[%s2268 + $0x20] sm:$0xff]
        %v2274 = vld [vmem:[%s2268 + $0x28] sm:$0xff]
        %v2275 = vld [vmem:[%s2268 + $0x30] sm:$0xff]
        %v2276 = vld [vmem:[%s2268 + $0x38] sm:$0xff]
        %v2277 = vld [vmem:[%s2268 + $0x40] sm:$0xff]
        %v2278 = vld [vmem:[%s2268 + $0x48] sm:$0xff]
        %v2279 = vld [vmem:[%s2268 + $0x50] sm:$0xff]
        %v2280 = vld [vmem:[%s2268 + $0x58] sm:$0xff]
        %v2281 = vld [vmem:[%s2268 + $0x60] sm:$0xff]
        %v2282 = vld [vmem:[%s2268 + $0x68] sm:$0xff]
        %v2283 = vld [vmem:[%s2268 + $0x70] sm:$0xff]
        %v2284 = vld [vmem:[%s2268 + $0x78] sm:$0xff]
        %2285 = vmatpush.msra.mxu0 %v2284
        %2286 = vmatpush.msra.mxu0 %v2283
        %2287 = vmatpush.msra.mxu0 %v2282
        %2288 = vmatpush.msra.mxu0 %v2281
        %2289 = vmatpush.msra.mxu0 %v2280
        %2290 = vmatpush.msra.mxu0 %v2279
        %2291 = vmatpush.msra.mxu0 %v2278
        %2292 = vmatpush.msra.mxu0 %v2277
        %2293 = vmatpush.msra.mxu0 %v2276
        %2294 = vmatpush.msra.mxu0 %v2275
        %2295 = vmatpush.msra.mxu0 %v2274
        %2296 = vmatpush.msra.mxu0 %v2273
        %2297 = vmatpush.msra.mxu0 %v2272
        %2298 = vmatpush.msra.mxu0 %v2271
        %2299 = vmatpush.msra.mxu0 %v2270
        %2300 = vmatpush.msra.mxu0 %v2269
        %2301 = vmatmul.f32.gmra.mxu0 %v2236
        %v2302 = vpop.f32.mrf.mxu0
        %v2303 = vadd.f32 0.0, %v2302
        %2304 = vmatmul.f32.gmra.mxu0 %v2237
        %v2305 = vpop.f32.mrf.mxu0
        %v2306 = vadd.f32 0.0, %v2305
        %2307 = vmatmul.f32.gmra.mxu0 %v2238
        %v2308 = vpop.f32.mrf.mxu0
        %v2309 = vadd.f32 0.0, %v2308
        %2310 = vmatmul.f32.gmra.mxu0 %v2239
        %v2311 = vpop.f32.mrf.mxu0
        %v2312 = vadd.f32 0.0, %v2311
        %2313 = vmatmul.f32.gmra.mxu0 %v2240
        %v2314 = vpop.f32.mrf.mxu0
        %v2315 = vadd.f32 0.0, %v2314
        %2316 = vmatmul.f32.gmra.mxu0 %v2241
        %v2317 = vpop.f32.mrf.mxu0
        %v2318 = vadd.f32 0.0, %v2317
        %2319 = vmatmul.f32.gmra.mxu0 %v2242
        %v2320 = vpop.f32.mrf.mxu0
        %v2321 = vadd.f32 0.0, %v2320
        %2322 = vmatmul.f32.gmra.mxu0 %v2243
        %v2323 = vpop.f32.mrf.mxu0
        %v2324 = vadd.f32 0.0, %v2323
        %2325 = vmatmul.f32.gmra.mxu0 %v2244
        %v2326 = vpop.f32.mrf.mxu0
        %v2327 = vadd.f32 0.0, %v2326
        %2328 = vmatmul.f32.gmra.mxu0 %v2245
        %v2329 = vpop.f32.mrf.mxu0
        %v2330 = vadd.f32 0.0, %v2329
        %2331 = vmatmul.f32.gmra.mxu0 %v2246
        %v2332 = vpop.f32.mrf.mxu0
        %v2333 = vadd.f32 0.0, %v2332
        %2334 = vmatmul.f32.gmra.mxu0 %v2247
        %v2335 = vpop.f32.mrf.mxu0
        %v2336 = vadd.f32 0.0, %v2335
        %2337 = vmatmul.f32.gmra.mxu0 %v2248
        %v2338 = vpop.f32.mrf.mxu0
        %v2339 = vadd.f32 0.0, %v2338
        %2340 = vmatmul.f32.gmra.mxu0 %v2249
        %v2341 = vpop.f32.mrf.mxu0
        %v2342 = vadd.f32 0.0, %v2341
        %2343 = vmatmul.f32.gmra.mxu0 %v2250
        %v2344 = vpop.f32.mrf.mxu0
        %v2345 = vadd.f32 0.0, %v2344
        %2346 = vmatmul.f32.gmra.mxu0 %v2251
        %v2347 = vpop.f32.mrf.mxu0
        %v2348 = vadd.f32 0.0, %v2347
        %2349 = vmatmul.f32.gmra.mxu0 %v2252
        %v2350 = vpop.f32.mrf.mxu0
        %v2351 = vadd.f32 0.0, %v2350
        %2352 = vmatmul.f32.gmra.mxu0 %v2253
        %v2353 = vpop.f32.mrf.mxu0
        %v2354 = vadd.f32 0.0, %v2353
        %2355 = vmatmul.f32.gmra.mxu0 %v2254
        %v2356 = vpop.f32.mrf.mxu0
        %v2357 = vadd.f32 0.0, %v2356
        %2358 = vmatmul.f32.gmra.mxu0 %v2255
        %v2359 = vpop.f32.mrf.mxu0
        %v2360 = vadd.f32 0.0, %v2359
        %2361 = vmatmul.f32.gmra.mxu0 %v2256
        %v2362 = vpop.f32.mrf.mxu0
        %v2363 = vadd.f32 0.0, %v2362
        %2364 = vmatmul.f32.gmra.mxu0 %v2257
        %v2365 = vpop.f32.mrf.mxu0
        %v2366 = vadd.f32 0.0, %v2365
        %2367 = vmatmul.f32.gmra.mxu0 %v2258
        %v2368 = vpop.f32.mrf.mxu0
        %v2369 = vadd.f32 0.0, %v2368
        %2370 = vmatmul.f32.gmra.mxu0 %v2259
        %v2371 = vpop.f32.mrf.mxu0
        %v2372 = vadd.f32 0.0, %v2371
        %2373 = vmatmul.f32.gmra.mxu0 %v2260
        %v2374 = vpop.f32.mrf.mxu0
        %v2375 = vadd.f32 0.0, %v2374
        %2376 = vmatmul.f32.gmra.mxu0 %v2261
        %v2377 = vpop.f32.mrf.mxu0
        %v2378 = vadd.f32 0.0, %v2377
        %2379 = vmatmul.f32.gmra.mxu0 %v2262
        %v2380 = vpop.f32.mrf.mxu0
        %v2381 = vadd.f32 0.0, %v2380
        %2382 = vmatmul.f32.gmra.mxu0 %v2263
        %v2383 = vpop.f32.mrf.mxu0
        %v2384 = vadd.f32 0.0, %v2383
        %2385 = vmatmul.f32.gmra.mxu0 %v2264
        %v2386 = vpop.f32.mrf.mxu0
        %v2387 = vadd.f32 0.0, %v2386
        %2388 = vmatmul.f32.gmra.mxu0 %v2265
        %v2389 = vpop.f32.mrf.mxu0
        %v2390 = vadd.f32 0.0, %v2389
        %2391 = vmatmul.f32.gmra.mxu0 %v2266
        %v2392 = vpop.f32.mrf.mxu0
        %v2393 = vadd.f32 0.0, %v2392
        %2394 = vmatmul.f32.gmra.mxu0 %v2267
        %v2395 = vpop.f32.mrf.mxu0
        %v2396 = vadd.f32 0.0, %v2395
        %2397 = vdwg.mxu0
        %v2398 = vld [vmem:[#allocation4] sm:$0xff]
        %v2399 = vld [vmem:[#allocation4 + $0x8] sm:$0xff]
        %v2400 = vld [vmem:[#allocation4 + $0x10] sm:$0xff]
        %v2401 = vld [vmem:[#allocation4 + $0x18] sm:$0xff]
        %v2402 = vld [vmem:[#allocation4 + $0x20] sm:$0xff]
        %v2403 = vld [vmem:[#allocation4 + $0x28] sm:$0xff]
        %v2404 = vld [vmem:[#allocation4 + $0x30] sm:$0xff]
        %v2405 = vld [vmem:[#allocation4 + $0x38] sm:$0xff]
        %v2406 = vld [vmem:[#allocation4 + $0x40] sm:$0xff]
        %v2407 = vld [vmem:[#allocation4 + $0x48] sm:$0xff]
        %v2408 = vld [vmem:[#allocation4 + $0x50] sm:$0xff]
        %v2409 = vld [vmem:[#allocation4 + $0x58] sm:$0xff]
        %v2410 = vld [vmem:[#allocation4 + $0x60] sm:$0xff]
        %v2411 = vld [vmem:[#allocation4 + $0x68] sm:$0xff]
        %v2412 = vld [vmem:[#allocation4 + $0x70] sm:$0xff]
        %v2413 = vld [vmem:[#allocation4 + $0x78] sm:$0xff]
        %v2414 = vld [vmem:[#allocation4 + $0x80] sm:$0xff]
        %v2415 = vld [vmem:[#allocation4 + $0x88] sm:$0xff]
        %v2416 = vld [vmem:[#allocation4 + $0x90] sm:$0xff]
        %v2417 = vld [vmem:[#allocation4 + $0x98] sm:$0xff]
        %v2418 = vld [vmem:[#allocation4 + $0xa0] sm:$0xff]
        %v2419 = vld [vmem:[#allocation4 + $0xa8] sm:$0xff]
        %v2420 = vld [vmem:[#allocation4 + $0xb0] sm:$0xff]
        %v2421 = vld [vmem:[#allocation4 + $0xb8] sm:$0xff]
        %v2422 = vld [vmem:[#allocation4 + $0xc0] sm:$0xff]
        %v2423 = vld [vmem:[#allocation4 + $0xc8] sm:$0xff]
        %v2424 = vld [vmem:[#allocation4 + $0xd0] sm:$0xff]
        %v2425 = vld [vmem:[#allocation4 + $0xd8] sm:$0xff]
        %v2426 = vld [vmem:[#allocation4 + $0xe0] sm:$0xff]
        %v2427 = vld [vmem:[#allocation4 + $0xe8] sm:$0xff]
        %v2428 = vld [vmem:[#allocation4 + $0xf0] sm:$0xff]
        %v2429 = vld [vmem:[#allocation4 + $0xf8] sm:$0xff]
        %v2430 = vadd.f32 %v2398, %v2303
        %v2431 = vadd.f32 %v2399, %v2306
        %v2432 = vadd.f32 %v2400, %v2309
        %v2433 = vadd.f32 %v2401, %v2312
        %v2434 = vadd.f32 %v2402, %v2315
        %v2435 = vadd.f32 %v2403, %v2318
        %v2436 = vadd.f32 %v2404, %v2321
        %v2437 = vadd.f32 %v2405, %v2324
        %v2438 = vadd.f32 %v2406, %v2327
        %v2439 = vadd.f32 %v2407, %v2330
        %v2440 = vadd.f32 %v2408, %v2333
        %v2441 = vadd.f32 %v2409, %v2336
        %v2442 = vadd.f32 %v2410, %v2339
        %v2443 = vadd.f32 %v2411, %v2342
        %v2444 = vadd.f32 %v2412, %v2345
        %v2445 = vadd.f32 %v2413, %v2348
        %v2446 = vadd.f32 %v2414, %v2351
        %v2447 = vadd.f32 %v2415, %v2354
        %v2448 = vadd.f32 %v2416, %v2357
        %v2449 = vadd.f32 %v2417, %v2360
        %v2450 = vadd.f32 %v2418, %v2363
        %v2451 = vadd.f32 %v2419, %v2366
        %v2452 = vadd.f32 %v2420, %v2369
        %v2453 = vadd.f32 %v2421, %v2372
        %v2454 = vadd.f32 %v2422, %v2375
        %v2455 = vadd.f32 %v2423, %v2378
        %v2456 = vadd.f32 %v2424, %v2381
        %v2457 = vadd.f32 %v2425, %v2384
        %v2458 = vadd.f32 %v2426, %v2387
        %v2459 = vadd.f32 %v2427, %v2390
        %v2460 = vadd.f32 %v2428, %v2393
        %v2461 = vadd.f32 %v2429, %v2396
        %2462 = vst [vmem:[#allocation4] sm:$0xff] %v2430
        %2463 = vst [vmem:[#allocation4 + $0x8] sm:$0xff] %v2431
        %2464 = vst [vmem:[#allocation4 + $0x10] sm:$0xff] %v2432
        %2465 = vst [vmem:[#allocation4 + $0x18] sm:$0xff] %v2433
        %2466 = vst [vmem:[#allocation4 + $0x20] sm:$0xff] %v2434
        %2467 = vst [vmem:[#allocation4 + $0x28] sm:$0xff] %v2435
        %2468 = vst [vmem:[#allocation4 + $0x30] sm:$0xff] %v2436
        %2469 = vst [vmem:[#allocation4 + $0x38] sm:$0xff] %v2437
        %2470 = vst [vmem:[#allocation4 + $0x40] sm:$0xff] %v2438
        %2471 = vst [vmem:[#allocation4 + $0x48] sm:$0xff] %v2439
        %2472 = vst [vmem:[#allocation4 + $0x50] sm:$0xff] %v2440
        %2473 = vst [vmem:[#allocation4 + $0x58] sm:$0xff] %v2441
        %2474 = vst [vmem:[#allocation4 + $0x60] sm:$0xff] %v2442
        %2475 = vst [vmem:[#allocation4 + $0x68] sm:$0xff] %v2443
        %2476 = vst [vmem:[#allocation4 + $0x70] sm:$0xff] %v2444
        %2477 = vst [vmem:[#allocation4 + $0x78] sm:$0xff] %v2445
        %2478 = vst [vmem:[#allocation4 + $0x80] sm:$0xff] %v2446
        %2479 = vst [vmem:[#allocation4 + $0x88] sm:$0xff] %v2447
        %2480 = vst [vmem:[#allocation4 + $0x90] sm:$0xff] %v2448
        %2481 = vst [vmem:[#allocation4 + $0x98] sm:$0xff] %v2449
        %2482 = vst [vmem:[#allocation4 + $0xa0] sm:$0xff] %v2450
        %2483 = vst [vmem:[#allocation4 + $0xa8] sm:$0xff] %v2451
        %2484 = vst [vmem:[#allocation4 + $0xb0] sm:$0xff] %v2452
        %2485 = vst [vmem:[#allocation4 + $0xb8] sm:$0xff] %v2453
        %2486 = vst [vmem:[#allocation4 + $0xc0] sm:$0xff] %v2454
        %2487 = vst [vmem:[#allocation4 + $0xc8] sm:$0xff] %v2455
        %2488 = vst [vmem:[#allocation4 + $0xd0] sm:$0xff] %v2456
        %2489 = vst [vmem:[#allocation4 + $0xd8] sm:$0xff] %v2457
        %2490 = vst [vmem:[#allocation4 + $0xe0] sm:$0xff] %v2458
        %2491 = vst [vmem:[#allocation4 + $0xe8] sm:$0xff] %v2459
        %2492 = vst [vmem:[#allocation4 + $0xf0] sm:$0xff] %v2460
        %2493 = vst [vmem:[#allocation4 + $0xf8] sm:$0xff] %v2461
        %v2494 = vld [vmem:[%s1977 + $0x2] sm:$0xff]
        %v2495 = vld [vmem:[%s1977 + $0xa] sm:$0xff]
        %v2496 = vld [vmem:[%s1977 + $0x1a] sm:$0xff]
        %v2497 = vld [vmem:[%s1977 + $0x22] sm:$0xff]
        %v2498 = vld [vmem:[%s1977 + $0x32] sm:$0xff]
        %v2499 = vld [vmem:[%s1977 + $0x3a] sm:$0xff]
        %v2500 = vld [vmem:[%s1977 + $0x4a] sm:$0xff]
        %v2501 = vld [vmem:[%s1977 + $0x52] sm:$0xff]
        %v2502 = vld [vmem:[%s1977 + $0x62] sm:$0xff]
        %v2503 = vld [vmem:[%s1977 + $0x6a] sm:$0xff]
        %v2504 = vld [vmem:[%s1977 + $0x7a] sm:$0xff]
        %v2505 = vld [vmem:[%s1977 + $0x82] sm:$0xff]
        %v2506 = vld [vmem:[%s1977 + $0x92] sm:$0xff]
        %v2507 = vld [vmem:[%s1977 + $0x9a] sm:$0xff]
        %v2508 = vld [vmem:[%s1977 + $0xaa] sm:$0xff]
        %v2509 = vld [vmem:[%s1977 + $0xb2] sm:$0xff]
        %v2510 = vld [vmem:[%s1977 + $0xc2] sm:$0xff]
        %v2511 = vld [vmem:[%s1977 + $0xca] sm:$0xff]
        %v2512 = vld [vmem:[%s1977 + $0xda] sm:$0xff]
        %v2513 = vld [vmem:[%s1977 + $0xe2] sm:$0xff]
        %v2514 = vld [vmem:[%s1977 + $0xf2] sm:$0xff]
        %v2515 = vld [vmem:[%s1977 + $0xfa] sm:$0xff]
        %v2516 = vld [vmem:[%s1977 + $0x10a] sm:$0xff]
        %v2517 = vld [vmem:[%s1977 + $0x112] sm:$0xff]
        %v2518 = vld [vmem:[%s1977 + $0x122] sm:$0xff]
        %v2519 = vld [vmem:[%s1977 + $0x12a] sm:$0xff]
        %v2520 = vld [vmem:[%s1977 + $0x13a] sm:$0xff]
        %v2521 = vld [vmem:[%s1977 + $0x142] sm:$0xff]
        %v2522 = vld [vmem:[%s1977 + $0x152] sm:$0xff]
        %v2523 = vld [vmem:[%s1977 + $0x15a] sm:$0xff]
        %v2524 = vld [vmem:[%s1977 + $0x16a] sm:$0xff]
        %v2525 = vld [vmem:[%s1977 + $0x172] sm:$0xff]
        %s2526 = scalar_lea.vmem %s173, 1024
        %v2527 = vld [vmem:[%s2526] sm:$0xff]
        %v2528 = vld [vmem:[%s2526 + $0x8] sm:$0xff]
        %v2529 = vld [vmem:[%s2526 + $0x10] sm:$0xff]
        %v2530 = vld [vmem:[%s2526 + $0x18] sm:$0xff]
        %v2531 = vld [vmem:[%s2526 + $0x20] sm:$0xff]
        %v2532 = vld [vmem:[%s2526 + $0x28] sm:$0xff]
        %v2533 = vld [vmem:[%s2526 + $0x30] sm:$0xff]
        %v2534 = vld [vmem:[%s2526 + $0x38] sm:$0xff]
        %v2535 = vld [vmem:[%s2526 + $0x40] sm:$0xff]
        %v2536 = vld [vmem:[%s2526 + $0x48] sm:$0xff]
        %v2537 = vld [vmem:[%s2526 + $0x50] sm:$0xff]
        %v2538 = vld [vmem:[%s2526 + $0x58] sm:$0xff]
        %v2539 = vld [vmem:[%s2526 + $0x60] sm:$0xff]
        %v2540 = vld [vmem:[%s2526 + $0x68] sm:$0xff]
        %v2541 = vld [vmem:[%s2526 + $0x70] sm:$0xff]
        %v2542 = vld [vmem:[%s2526 + $0x78] sm:$0xff]
        %2543 = vmatpush.msra.mxu0 %v2542
        %2544 = vmatpush.msra.mxu0 %v2541
        %2545 = vmatpush.msra.mxu0 %v2540
        %2546 = vmatpush.msra.mxu0 %v2539
        %2547 = vmatpush.msra.mxu0 %v2538
        %2548 = vmatpush.msra.mxu0 %v2537
        %2549 = vmatpush.msra.mxu0 %v2536
        %2550 = vmatpush.msra.mxu0 %v2535
        %2551 = vmatpush.msra.mxu0 %v2534
        %2552 = vmatpush.msra.mxu0 %v2533
        %2553 = vmatpush.msra.mxu0 %v2532
        %2554 = vmatpush.msra.mxu0 %v2531
        %2555 = vmatpush.msra.mxu0 %v2530
        %2556 = vmatpush.msra.mxu0 %v2529
        %2557 = vmatpush.msra.mxu0 %v2528
        %2558 = vmatpush.msra.mxu0 %v2527
        %2559 = vmatmul.f32.gmra.mxu0 %v2494
        %v2560 = vpop.f32.mrf.mxu0
        %v2561 = vadd.f32 0.0, %v2560
        %2562 = vmatmul.f32.gmra.mxu0 %v2495
        %v2563 = vpop.f32.mrf.mxu0
        %v2564 = vadd.f32 0.0, %v2563
        %2565 = vmatmul.f32.gmra.mxu0 %v2496
        %v2566 = vpop.f32.mrf.mxu0
        %v2567 = vadd.f32 0.0, %v2566
        %2568 = vmatmul.f32.gmra.mxu0 %v2497
        %v2569 = vpop.f32.mrf.mxu0
        %v2570 = vadd.f32 0.0, %v2569
        %2571 = vmatmul.f32.gmra.mxu0 %v2498
        %v2572 = vpop.f32.mrf.mxu0
        %v2573 = vadd.f32 0.0, %v2572
        %2574 = vmatmul.f32.gmra.mxu0 %v2499
        %v2575 = vpop.f32.mrf.mxu0
        %v2576 = vadd.f32 0.0, %v2575
        %2577 = vmatmul.f32.gmra.mxu0 %v2500
        %v2578 = vpop.f32.mrf.mxu0
        %v2579 = vadd.f32 0.0, %v2578
        %2580 = vmatmul.f32.gmra.mxu0 %v2501
        %v2581 = vpop.f32.mrf.mxu0
        %v2582 = vadd.f32 0.0, %v2581
        %2583 = vmatmul.f32.gmra.mxu0 %v2502
        %v2584 = vpop.f32.mrf.mxu0
        %v2585 = vadd.f32 0.0, %v2584
        %2586 = vmatmul.f32.gmra.mxu0 %v2503
        %v2587 = vpop.f32.mrf.mxu0
        %v2588 = vadd.f32 0.0, %v2587
        %2589 = vmatmul.f32.gmra.mxu0 %v2504
        %v2590 = vpop.f32.mrf.mxu0
        %v2591 = vadd.f32 0.0, %v2590
        %2592 = vmatmul.f32.gmra.mxu0 %v2505
        %v2593 = vpop.f32.mrf.mxu0
        %v2594 = vadd.f32 0.0, %v2593
        %2595 = vmatmul.f32.gmra.mxu0 %v2506
        %v2596 = vpop.f32.mrf.mxu0
        %v2597 = vadd.f32 0.0, %v2596
        %2598 = vmatmul.f32.gmra.mxu0 %v2507
        %v2599 = vpop.f32.mrf.mxu0
        %v2600 = vadd.f32 0.0, %v2599
        %2601 = vmatmul.f32.gmra.mxu0 %v2508
        %v2602 = vpop.f32.mrf.mxu0
        %v2603 = vadd.f32 0.0, %v2602
        %2604 = vmatmul.f32.gmra.mxu0 %v2509
        %v2605 = vpop.f32.mrf.mxu0
        %v2606 = vadd.f32 0.0, %v2605
        %2607 = vmatmul.f32.gmra.mxu0 %v2510
        %v2608 = vpop.f32.mrf.mxu0
        %v2609 = vadd.f32 0.0, %v2608
        %2610 = vmatmul.f32.gmra.mxu0 %v2511
        %v2611 = vpop.f32.mrf.mxu0
        %v2612 = vadd.f32 0.0, %v2611
        %2613 = vmatmul.f32.gmra.mxu0 %v2512
        %v2614 = vpop.f32.mrf.mxu0
        %v2615 = vadd.f32 0.0, %v2614
        %2616 = vmatmul.f32.gmra.mxu0 %v2513
        %v2617 = vpop.f32.mrf.mxu0
        %v2618 = vadd.f32 0.0, %v2617
        %2619 = vmatmul.f32.gmra.mxu0 %v2514
        %v2620 = vpop.f32.mrf.mxu0
        %v2621 = vadd.f32 0.0, %v2620
        %2622 = vmatmul.f32.gmra.mxu0 %v2515
        %v2623 = vpop.f32.mrf.mxu0
        %v2624 = vadd.f32 0.0, %v2623
        %2625 = vmatmul.f32.gmra.mxu0 %v2516
        %v2626 = vpop.f32.mrf.mxu0
        %v2627 = vadd.f32 0.0, %v2626
        %2628 = vmatmul.f32.gmra.mxu0 %v2517
        %v2629 = vpop.f32.mrf.mxu0
        %v2630 = vadd.f32 0.0, %v2629
        %2631 = vmatmul.f32.gmra.mxu0 %v2518
        %v2632 = vpop.f32.mrf.mxu0
        %v2633 = vadd.f32 0.0, %v2632
        %2634 = vmatmul.f32.gmra.mxu0 %v2519
        %v2635 = vpop.f32.mrf.mxu0
        %v2636 = vadd.f32 0.0, %v2635
        %2637 = vmatmul.f32.gmra.mxu0 %v2520
        %v2638 = vpop.f32.mrf.mxu0
        %v2639 = vadd.f32 0.0, %v2638
        %2640 = vmatmul.f32.gmra.mxu0 %v2521
        %v2641 = vpop.f32.mrf.mxu0
        %v2642 = vadd.f32 0.0, %v2641
        %2643 = vmatmul.f32.gmra.mxu0 %v2522
        %v2644 = vpop.f32.mrf.mxu0
        %v2645 = vadd.f32 0.0, %v2644
        %2646 = vmatmul.f32.gmra.mxu0 %v2523
        %v2647 = vpop.f32.mrf.mxu0
        %v2648 = vadd.f32 0.0, %v2647
        %2649 = vmatmul.f32.gmra.mxu0 %v2524
        %v2650 = vpop.f32.mrf.mxu0
        %v2651 = vadd.f32 0.0, %v2650
        %2652 = vmatmul.f32.gmra.mxu0 %v2525
        %v2653 = vpop.f32.mrf.mxu0
        %v2654 = vadd.f32 0.0, %v2653
        %2655 = vdwg.mxu0
        %v2656 = vld [vmem:[#allocation4] sm:$0xff]
        %v2657 = vld [vmem:[#allocation4 + $0x8] sm:$0xff]
        %v2658 = vld [vmem:[#allocation4 + $0x10] sm:$0xff]
        %v2659 = vld [vmem:[#allocation4 + $0x18] sm:$0xff]
        %v2660 = vld [vmem:[#allocation4 + $0x20] sm:$0xff]
        %v2661 = vld [vmem:[#allocation4 + $0x28] sm:$0xff]
        %v2662 = vld [vmem:[#allocation4 + $0x30] sm:$0xff]
        %v2663 = vld [vmem:[#allocation4 + $0x38] sm:$0xff]
        %v2664 = vld [vmem:[#allocation4 + $0x40] sm:$0xff]
        %v2665 = vld [vmem:[#allocation4 + $0x48] sm:$0xff]
        %v2666 = vld [vmem:[#allocation4 + $0x50] sm:$0xff]
        %v2667 = vld [vmem:[#allocation4 + $0x58] sm:$0xff]
        %v2668 = vld [vmem:[#allocation4 + $0x60] sm:$0xff]
        %v2669 = vld [vmem:[#allocation4 + $0x68] sm:$0xff]
        %v2670 = vld [vmem:[#allocation4 + $0x70] sm:$0xff]
        %v2671 = vld [vmem:[#allocation4 + $0x78] sm:$0xff]
        %v2672 = vld [vmem:[#allocation4 + $0x80] sm:$0xff]
        %v2673 = vld [vmem:[#allocation4 + $0x88] sm:$0xff]
        %v2674 = vld [vmem:[#allocation4 + $0x90] sm:$0xff]
        %v2675 = vld [vmem:[#allocation4 + $0x98] sm:$0xff]
        %v2676 = vld [vmem:[#allocation4 + $0xa0] sm:$0xff]
        %v2677 = vld [vmem:[#allocation4 + $0xa8] sm:$0xff]
        %v2678 = vld [vmem:[#allocation4 + $0xb0] sm:$0xff]
        %v2679 = vld [vmem:[#allocation4 + $0xb8] sm:$0xff]
        %v2680 = vld [vmem:[#allocation4 + $0xc0] sm:$0xff]
        %v2681 = vld [vmem:[#allocation4 + $0xc8] sm:$0xff]
        %v2682 = vld [vmem:[#allocation4 + $0xd0] sm:$0xff]
        %v2683 = vld [vmem:[#allocation4 + $0xd8] sm:$0xff]
        %v2684 = vld [vmem:[#allocation4 + $0xe0] sm:$0xff]
        %v2685 = vld [vmem:[#allocation4 + $0xe8] sm:$0xff]
        %v2686 = vld [vmem:[#allocation4 + $0xf0] sm:$0xff]
        %v2687 = vld [vmem:[#allocation4 + $0xf8] sm:$0xff]
        %v2688 = vadd.f32 %v2656, %v2561
        %v2689 = vadd.f32 %v2657, %v2564
        %v2690 = vadd.f32 %v2658, %v2567
        %v2691 = vadd.f32 %v2659, %v2570
        %v2692 = vadd.f32 %v2660, %v2573
        %v2693 = vadd.f32 %v2661, %v2576
        %v2694 = vadd.f32 %v2662, %v2579
        %v2695 = vadd.f32 %v2663, %v2582
        %v2696 = vadd.f32 %v2664, %v2585
        %v2697 = vadd.f32 %v2665, %v2588
        %v2698 = vadd.f32 %v2666, %v2591
        %v2699 = vadd.f32 %v2667, %v2594
        %v2700 = vadd.f32 %v2668, %v2597
        %v2701 = vadd.f32 %v2669, %v2600
        %v2702 = vadd.f32 %v2670, %v2603
        %v2703 = vadd.f32 %v2671, %v2606
        %v2704 = vadd.f32 %v2672, %v2609
        %v2705 = vadd.f32 %v2673, %v2612
        %v2706 = vadd.f32 %v2674, %v2615
        %v2707 = vadd.f32 %v2675, %v2618
        %v2708 = vadd.f32 %v2676, %v2621
        %v2709 = vadd.f32 %v2677, %v2624
        %v2710 = vadd.f32 %v2678, %v2627
        %v2711 = vadd.f32 %v2679, %v2630
        %v2712 = vadd.f32 %v2680, %v2633
        %v2713 = vadd.f32 %v2681, %v2636
        %v2714 = vadd.f32 %v2682, %v2639
        %v2715 = vadd.f32 %v2683, %v2642
        %v2716 = vadd.f32 %v2684, %v2645
        %v2717 = vadd.f32 %v2685, %v2648
        %v2718 = vadd.f32 %v2686, %v2651
        %v2719 = vadd.f32 %v2687, %v2654
        %2720 = vst [vmem:[#allocation4] sm:$0xff] %v2688
        %2721 = vst [vmem:[#allocation4 + $0x8] sm:$0xff] %v2689
        %2722 = vst [vmem:[#allocation4 + $0x10] sm:$0xff] %v2690
        %2723 = vst [vmem:[#allocation4 + $0x18] sm:$0xff] %v2691
        %2724 = vst [vmem:[#allocation4 + $0x20] sm:$0xff] %v2692
        %2725 = vst [vmem:[#allocation4 + $0x28] sm:$0xff] %v2693
        %2726 = vst [vmem:[#allocation4 + $0x30] sm:$0xff] %v2694
        %2727 = vst [vmem:[#allocation4 + $0x38] sm:$0xff] %v2695
        %2728 = vst [vmem:[#allocation4 + $0x40] sm:$0xff] %v2696
        %2729 = vst [vmem:[#allocation4 + $0x48] sm:$0xff] %v2697
        %2730 = vst [vmem:[#allocation4 + $0x50] sm:$0xff] %v2698
        %2731 = vst [vmem:[#allocation4 + $0x58] sm:$0xff] %v2699
        %2732 = vst [vmem:[#allocation4 + $0x60] sm:$0xff] %v2700
        %2733 = vst [vmem:[#allocation4 + $0x68] sm:$0xff] %v2701
        %2734 = vst [vmem:[#allocation4 + $0x70] sm:$0xff] %v2702
        %2735 = vst [vmem:[#allocation4 + $0x78] sm:$0xff] %v2703
        %2736 = vst [vmem:[#allocation4 + $0x80] sm:$0xff] %v2704
        %2737 = vst [vmem:[#allocation4 + $0x88] sm:$0xff] %v2705
        %2738 = vst [vmem:[#allocation4 + $0x90] sm:$0xff] %v2706
        %2739 = vst [vmem:[#allocation4 + $0x98] sm:$0xff] %v2707
        %2740 = vst [vmem:[#allocation4 + $0xa0] sm:$0xff] %v2708
        %2741 = vst [vmem:[#allocation4 + $0xa8] sm:$0xff] %v2709
        %2742 = vst [vmem:[#allocation4 + $0xb0] sm:$0xff] %v2710
        %2743 = vst [vmem:[#allocation4 + $0xb8] sm:$0xff] %v2711
        %2744 = vst [vmem:[#allocation4 + $0xc0] sm:$0xff] %v2712
        %2745 = vst [vmem:[#allocation4 + $0xc8] sm:$0xff] %v2713
        %2746 = vst [vmem:[#allocation4 + $0xd0] sm:$0xff] %v2714
        %2747 = vst [vmem:[#allocation4 + $0xd8] sm:$0xff] %v2715
        %2748 = vst [vmem:[#allocation4 + $0xe0] sm:$0xff] %v2716
        %2749 = vst [vmem:[#allocation4 + $0xe8] sm:$0xff] %v2717
        %2750 = vst [vmem:[#allocation4 + $0xf0] sm:$0xff] %v2718
        %2751 = vst [vmem:[#allocation4 + $0xf8] sm:$0xff] %v2719
        %v2752 = vld [vmem:[#allocation4] sm:$0xff]
        %v2753 = vld [vmem:[#allocation4 + $0x8] sm:$0xff]
        %v2754 = vld [vmem:[#allocation4 + $0x10] sm:$0xff]
        %v2755 = vld [vmem:[#allocation4 + $0x18] sm:$0xff]
        %v2756 = vld [vmem:[#allocation4 + $0x20] sm:$0xff]
        %v2757 = vld [vmem:[#allocation4 + $0x28] sm:$0xff]
        %v2758 = vld [vmem:[#allocation4 + $0x30] sm:$0xff]
        %v2759 = vld [vmem:[#allocation4 + $0x38] sm:$0xff]
        %v2760 = vld [vmem:[#allocation4 + $0x40] sm:$0xff]
        %v2761 = vld [vmem:[#allocation4 + $0x48] sm:$0xff]
        %v2762 = vld [vmem:[#allocation4 + $0x50] sm:$0xff]
        %v2763 = vld [vmem:[#allocation4 + $0x58] sm:$0xff]
        %v2764 = vld [vmem:[#allocation4 + $0x60] sm:$0xff]
        %v2765 = vld [vmem:[#allocation4 + $0x68] sm:$0xff]
        %v2766 = vld [vmem:[#allocation4 + $0x70] sm:$0xff]
        %v2767 = vld [vmem:[#allocation4 + $0x78] sm:$0xff]
        %v2768 = vld [vmem:[#allocation4 + $0x80] sm:$0xff]
        %v2769 = vld [vmem:[#allocation4 + $0x88] sm:$0xff]
        %v2770 = vld [vmem:[#allocation4 + $0x90] sm:$0xff]
        %v2771 = vld [vmem:[#allocation4 + $0x98] sm:$0xff]
        %v2772 = vld [vmem:[#allocation4 + $0xa0] sm:$0xff]
        %v2773 = vld [vmem:[#allocation4 + $0xa8] sm:$0xff]
        %v2774 = vld [vmem:[#allocation4 + $0xb0] sm:$0xff]
        %v2775 = vld [vmem:[#allocation4 + $0xb8] sm:$0xff]
        %v2776 = vld [vmem:[#allocation4 + $0xc0] sm:$0xff]
        %v2777 = vld [vmem:[#allocation4 + $0xc8] sm:$0xff]
        %v2778 = vld [vmem:[#allocation4 + $0xd0] sm:$0xff]
        %v2779 = vld [vmem:[#allocation4 + $0xd8] sm:$0xff]
        %v2780 = vld [vmem:[#allocation4 + $0xe0] sm:$0xff]
        %v2781 = vld [vmem:[#allocation4 + $0xe8] sm:$0xff]
        %v2782 = vld [vmem:[#allocation4 + $0xf0] sm:$0xff]
        %v2783 = vld [vmem:[#allocation4 + $0xf8] sm:$0xff]
        %v2784 = vld [vmem:[%s176] sm:$0x1]
        %v2786 = vperm.slane %v2784, 0
        %v2788 = vadd.f32 %v2752, %v2786
        %v2789 = vadd.f32 %v2753, %v2786
        %v2790 = vadd.f32 %v2754, %v2786
        %v2791 = vadd.f32 %v2755, %v2786
        %v2792 = vadd.f32 %v2756, %v2786
        %v2793 = vadd.f32 %v2757, %v2786
        %v2794 = vadd.f32 %v2758, %v2786
        %v2795 = vadd.f32 %v2759, %v2786
        %v2796 = vadd.f32 %v2760, %v2786
        %v2797 = vadd.f32 %v2761, %v2786
        %v2798 = vadd.f32 %v2762, %v2786
        %v2799 = vadd.f32 %v2763, %v2786
        %v2800 = vadd.f32 %v2764, %v2786
        %v2801 = vadd.f32 %v2765, %v2786
        %v2802 = vadd.f32 %v2766, %v2786
        %v2803 = vadd.f32 %v2767, %v2786
        %v2804 = vadd.f32 %v2768, %v2786
        %v2805 = vadd.f32 %v2769, %v2786
        %v2806 = vadd.f32 %v2770, %v2786
        %v2807 = vadd.f32 %v2771, %v2786
        %v2808 = vadd.f32 %v2772, %v2786
        %v2809 = vadd.f32 %v2773, %v2786
        %v2810 = vadd.f32 %v2774, %v2786
        %v2811 = vadd.f32 %v2775, %v2786
        %v2812 = vadd.f32 %v2776, %v2786
        %v2813 = vadd.f32 %v2777, %v2786
        %v2814 = vadd.f32 %v2778, %v2786
        %v2815 = vadd.f32 %v2779, %v2786
        %v2816 = vadd.f32 %v2780, %v2786
        %v2817 = vadd.f32 %v2781, %v2786
        %v2818 = vadd.f32 %v2782, %v2786
        %v2819 = vadd.f32 %v2783, %v2786
        %v2820 = vmax.f32 %v2788, 0.0
        %v2821 = vmax.f32 %v2789, 0.0
        %v2822 = vmax.f32 %v2790, 0.0
        %v2823 = vmax.f32 %v2791, 0.0
        %v2824 = vmax.f32 %v2792, 0.0
        %v2825 = vmax.f32 %v2793, 0.0
        %v2826 = vmax.f32 %v2794, 0.0
        %v2827 = vmax.f32 %v2795, 0.0
        %v2828 = vmax.f32 %v2796, 0.0
        %v2829 = vmax.f32 %v2797, 0.0
        %v2830 = vmax.f32 %v2798, 0.0
        %v2831 = vmax.f32 %v2799, 0.0
        %v2832 = vmax.f32 %v2800, 0.0
        %v2833 = vmax.f32 %v2801, 0.0
        %v2834 = vmax.f32 %v2802, 0.0
        %v2835 = vmax.f32 %v2803, 0.0
        %v2836 = vmax.f32 %v2804, 0.0
        %v2837 = vmax.f32 %v2805, 0.0
        %v2838 = vmax.f32 %v2806, 0.0
        %v2839 = vmax.f32 %v2807, 0.0
        %v2840 = vmax.f32 %v2808, 0.0
        %v2841 = vmax.f32 %v2809, 0.0
        %v2842 = vmax.f32 %v2810, 0.0
        %v2843 = vmax.f32 %v2811, 0.0
        %v2844 = vmax.f32 %v2812, 0.0
        %v2845 = vmax.f32 %v2813, 0.0
        %v2846 = vmax.f32 %v2814, 0.0
        %v2847 = vmax.f32 %v2815, 0.0
        %v2848 = vmax.f32 %v2816, 0.0
        %v2849 = vmax.f32 %v2817, 0.0
        %v2850 = vmax.f32 %v2818, 0.0
        %v2851 = vmax.f32 %v2819, 0.0
        %2852 = vst [vmem:[%s169] sm:$0xff] %v2820
        %2853 = vst [vmem:[%s169 + $0x8] sm:$0xff] %v2821
        %2854 = vst [vmem:[%s169 + $0x10] sm:$0xff] %v2822
        %2855 = vst [vmem:[%s169 + $0x18] sm:$0xff] %v2823
        %2856 = vst [vmem:[%s169 + $0x20] sm:$0xff] %v2824
        %2857 = vst [vmem:[%s169 + $0x28] sm:$0xff] %v2825
        %2858 = vst [vmem:[%s169 + $0x30] sm:$0xff] %v2826
        %2859 = vst [vmem:[%s169 + $0x38] sm:$0xff] %v2827
        %2860 = vst [vmem:[%s169 + $0x40] sm:$0xff] %v2828
        %2861 = vst [vmem:[%s169 + $0x48] sm:$0xff] %v2829
        %2862 = vst [vmem:[%s169 + $0x50] sm:$0xff] %v2830
        %2863 = vst [vmem:[%s169 + $0x58] sm:$0xff] %v2831
        %2864 = vst [vmem:[%s169 + $0x60] sm:$0xff] %v2832
        %2865 = vst [vmem:[%s169 + $0x68] sm:$0xff] %v2833
        %2866 = vst [vmem:[%s169 + $0x70] sm:$0xff] %v2834
        %2867 = vst [vmem:[%s169 + $0x78] sm:$0xff] %v2835
        %2868 = vst [vmem:[%s169 + $0x80] sm:$0xff] %v2836
        %2869 = vst [vmem:[%s169 + $0x88] sm:$0xff] %v2837
        %2870 = vst [vmem:[%s169 + $0x90] sm:$0xff] %v2838
        %2871 = vst [vmem:[%s169 + $0x98] sm:$0xff] %v2839
        %2872 = vst [vmem:[%s169 + $0xa0] sm:$0xff] %v2840
        %2873 = vst [vmem:[%s169 + $0xa8] sm:$0xff] %v2841
        %2874 = vst [vmem:[%s169 + $0xb0] sm:$0xff] %v2842
        %2875 = vst [vmem:[%s169 + $0xb8] sm:$0xff] %v2843
        %2876 = vst [vmem:[%s169 + $0xc0] sm:$0xff] %v2844
        %2877 = vst [vmem:[%s169 + $0xc8] sm:$0xff] %v2845
        %2878 = vst [vmem:[%s169 + $0xd0] sm:$0xff] %v2846
        %2879 = vst [vmem:[%s169 + $0xd8] sm:$0xff] %v2847
        %2880 = vst [vmem:[%s169 + $0xe0] sm:$0xff] %v2848
        %2881 = vst [vmem:[%s169 + $0xe8] sm:$0xff] %v2849
        %2882 = vst [vmem:[%s169 + $0xf0] sm:$0xff] %v2850
        %2883 = vst [vmem:[%s169 + $0xf8] sm:$0xff] %v2851
        %s2884 = sand.u32 %s100, 1
        %s2885 = scalar_lea.sflag [#allocation6], %s2884
        %s2886 = sand.u32 %s100, 1
        %s2887 = smul.addr %s2886, 256
        %s2888 = scalar_lea.vmem [#allocation5], %s2887
        // Predicated region
        $region81: #{tpu_custom_call.1} parent=27 // pred_check
          %p2889 = pneg %p110
        $region82: #{tpu_custom_call.1} parent=27 // pred_check_branch
          %2891 = sbr.rel (%p2889) target = $region84
        $region83: #{tpu_custom_call.1} parent=27 // pred_region
          %s2892 = smul.u32 16, %s24
          %2894 = vsyncadd %s2885, 0
          %s2895 = smul.addr %s2892, 2
          %s2896 = sadd.s32 %s23, %s2895
          %s2897 = smul.addr %s22, 32
          %s2898 = sadd.s32 %s2896, %s2897
          %s2899 = smul.addr %s2898, 8
          %s2900 = scalar_lea.hbm %s3, %s2899
          %s2901 = sshll.u32 %s2888, 4
          %s2902 = int_to_ptr.vmem [resolvable:$true] %s2901
          %s2903 = sshll.u32 %s2900, 4
          %s2904 = int_to_ptr.hbm [resolvable:$true] %s2903
          %2909 = dma.vmem_to_hbm [thread:$0]  %s2902, 4096, %s2904, %s2885, 128, 128, 8
        $region84: #{tpu_custom_call.1} parent=27 // pred_fallthru
          _
      $region28: #{tpu_custom_call.1} parent=5 // pred_fallthru
        _
      %p2910 = scmp.le.s32.totalorder 2, %s12
      // Predicated region
      $region85: #{tpu_custom_call.1} parent=5 // pred_check
        %p2911 = pneg %p2910
      $region86: #{tpu_custom_call.1} parent=5 // pred_check_branch
        %2913 = sbr.rel (%p2911) target = $region88
      $region87: #{tpu_custom_call.1} parent=5 // pred_region
        %s2914 = ssub.s32 %s12, 2
        // Predicated region
        $region89: #{tpu_custom_call.1} parent=87 // pred_check
          %p2915 = pneg %p116
        $region90: #{tpu_custom_call.1} parent=87 // pred_check_branch
          %2917 = sbr.rel (%p2915) target = $region92
        $region91: #{tpu_custom_call.1} parent=87 // pred_region
          %s2918 = sand.u32 %s101, 1
          %s2919 = scalar_lea.sflag [#allocation6], %s2918
          %s2920 = sand.u32 %s101, 1
          %s2921 = smul.addr %s2920, 256
          %s2922 = scalar_lea.vmem [#allocation5], %s2921
          %2924 = dma.done %s2919, 4096
        $region92: #{tpu_custom_call.1} parent=87 // pred_fallthru
          _
      $region88: #{tpu_custom_call.1} parent=5 // pred_fallthru
        _
    $region6: #{tpu_custom_call.1} parent=1 // loop_footer
      %s16 = sadd.s32 1, %s12
    $region7: #{tpu_custom_call.1} parent=1 // loop_footer_branch
      %11 = sbr.rel target = $region3
    $region8: #{tpu_custom_call.1} parent=1 // loop_exit
      _
    %2925 = vsyncpa [#allocation6], 1
    %s2926 = scalar_lea.sflag [#allocation6], 1
    %2927 = vsyncpa %s2926, 1
  %2928 = vsyncmov [#allocation3]
  %s2929 = vpop.sfrf %2928
  %p2930 = scmp.eq.s32.totalorder %s2929, 0
  %p2931 = pneg %p2930
  %2933 = shalt.err (%p2931)
  %s2934 = scalar_lea.sflag [#allocation3], 1
  %2935 = vsyncmov %s2934
  %s2936 = vpop.sfrf %2935
  %p2937 = scmp.eq.s32.totalorder %s2936, 0
  %p2938 = pneg %p2937
  %2940 = shalt.err (%p2938)

</llo_original>
